<compile_context>
chip_gen: v6e
topology: v6e:2x2x1
jax: 0.10.0
libtpu: 0.0.40
codegen_flags: <defaults>
</compile_context>

<pallas_src>
import functools

import jax
import jax.numpy as jnp
from jax import lax
from jax.experimental import pallas as pl
from jax.experimental.pallas import tpu as pltpu

COMPUTE_DTYPE = jnp.bfloat16  # MXU operand dtype; f32 accumulation everywhere.


# --------------------------------------------------------------------------- #
# Kernels
# --------------------------------------------------------------------------- #
def encode_fused_kernel(a_ref, xw_ref, b12_ref, wml_ref, bml_ref, ml_ref):
    """Both GCN propagations with A_hat VMEM-resident (A read from HBM once).

    h  = A @ (X @ W12) + b12     (== concat([gcn1(x), gcn2(x)], dim=1))
    ml = A @ (h @ W_ml) + b_ml   (== [mu | logvar])
    """
    a = a_ref[...]
    h = jnp.dot(a, xw_ref[...], preferred_element_type=jnp.float32) + b12_ref[...]
    pre = jnp.dot(h.astype(COMPUTE_DTYPE), wml_ref[...],
                  preferred_element_type=jnp.float32)
    ml_ref[...] = (jnp.dot(a, pre.astype(COMPUTE_DTYPE),
                           preferred_element_type=jnp.float32) + bml_ref[...])


def encode_stage1_kernel(a_ref, xw_ref, b12_ref, wml_ref, pre_ref, acc_ref):
    """K-tiled: acc += A_tile @ XW_tile; on last K: pre = (acc + b12) @ W_ml."""
    @pl.when(pl.program_id(1) == 0)
    def _():
        acc_ref[...] = jnp.zeros_like(acc_ref)

    acc_ref[...] += jnp.dot(a_ref[...], xw_ref[...],
                            preferred_element_type=jnp.float32)

    @pl.when(pl.program_id(1) == pl.num_programs(1) - 1)
    def _():
        h = acc_ref[...] + b12_ref[...]
        # NOTE: last dim of pre is 2*H2 (<128 lanes) -> masked stores;
        # negligible at these hidden sizes.
        pre_ref[...] = jnp.dot(h.astype(COMPUTE_DTYPE), wml_ref[...],
                               preferred_element_type=jnp.float32
                               ).astype(pre_ref.dtype)


def encode_stage2_kernel(a_ref, pre_ref, bml_ref, ml_ref, acc_ref):
    """K-tiled: acc += A_tile @ pre_tile; on last K: ml = acc + b_ml."""
    @pl.when(pl.program_id(1) == 0)
    def _():
        acc_ref[...] = jnp.zeros_like(acc_ref)

    acc_ref[...] += jnp.dot(a_ref[...], pre_ref[...],
                            preferred_element_type=jnp.float32)

    @pl.when(pl.program_id(1) == pl.num_programs(1) - 1)
    def _():
        ml_ref[...] = acc_ref[...] + bml_ref[...]


def decoder_kernel(zr_ref, zc_ref, adj_ref):
    """adj tile = sigmoid(z_rows @ z_cols^T), without materializing z.T."""
    logits = lax.dot_general(zr_ref[...], zc_ref[...],
                             dimension_numbers=(((1,), (1,)), ((), ())),
                             preferred_element_type=jnp.float32)
    # sigmoid(x) == 0.5 * (tanh(0.5 * x) + 1): single EUP transcendental.
    adj_ref[...] = 0.5 * (jnp.tanh(0.5 * logits) + 1.0)


# --------------------------------------------------------------------------- #
# Helpers
# --------------------------------------------------------------------------- #
def _round_up(v, m):
    return ((v + m - 1) // m) * m


def _pick_tile(n_pad, desired):
    """Largest tile from a candidate list that divides the padded size."""
    for t in (desired, 1024, 512, 384, 256, 128):
        if t <= n_pad and n_pad % t == 0:
            return t
    return 128


# --------------------------------------------------------------------------- #
# Wrapper
# --------------------------------------------------------------------------- #
def gcn_merge_forward(a_hat, x, params, *, row_tile=512, k_tile=512,
                      dec_tile=512, fuse_encode=None):
    """Forward pass of GCNMerge (eval mode).

    a_hat: dense normalized adjacency D^-1/2 (A+I) D^-1/2, ideally pre-cast to
           bf16 once outside jit. Returns (adj_recon, mu, logvar) in f32.
    dec_tile: 512 is a good default on v5e/v6e; raise to 1024 on v7x.
    """
    (w1, b1, w2, b2, wmu, bmu, wlv, blv) = params
    n, f = x.shape
    h1 = w1.shape[1]
    h2 = wmu.shape[1]

    # Fused weights / biases. Column order preserves concat((h1, h2), dim=1)
    # and [mu | logvar] ordering.
    w12 = jnp.concatenate([w1, w2], axis=1)                    # (F, 2*H1)
    b12 = jnp.concatenate([b1, b2]).reshape(1, -1)             # (1, 2*H1) f32
    wml = jnp.concatenate([wmu, wlv], axis=1)                  # (2*H1, 2*H2)
    bml = jnp.concatenate([bmu, blv]).reshape(1, -1)           # (1, 2*H2) f32

    # A_hat should already be in COMPUTE_DTYPE (cast once, outside jit).
    a_c = a_hat if a_hat.dtype == COMPUTE_DTYPE else a_hat.astype(COMPUTE_DTYPE)

    # Hoisted feature transform: XW = X @ W12 (tiny, f32 accumulate).
    xw = jnp.dot(x.astype(jnp.float32), w12.astype(jnp.float32))   # (N, 2*H1)
    xw_c = xw.astype(COMPUTE_DTYPE)
    wml_c = wml.astype(COMPUTE_DTYPE)

    # Pad N to a multiple of 128 (zero rows/cols) so tiles always divide.
    n_pad = _round_up(n, 128)
    if n_pad != n:
        a_c = jnp.pad(a_c, ((0, n_pad - n), (0, n_pad - n)))
        xw_c = jnp.pad(xw_c, ((0, n_pad - n), (0, 0)))

    a_bytes = n_pad * n_pad * 2  # bf16
    if fuse_encode is None:
        # A fits comfortably in VMEM -> read A from HBM once for both hops.
        fuse_encode = a_bytes <= 18 * 1024 * 1024

    vmem_cap = pltpu.CompilerParams(vmem_limit_bytes=32 * 1024 * 1024)

    if fuse_encode:
        # ---- single fused encode call, A_hat VMEM-resident ----
        ml = pl.pallas_call(
            encode_fused_kernel,
            out_shape=jax.ShapeDtypeStruct((n_pad, 2 * h2), jnp.float32),
            compiler_params=vmem_cap,
            cost_estimate=pl.CostEstimate(
                flops=2 * n_pad * n_pad * 2 * h1 + 2 * n_pad * 2 * h1 * 2 * h2
                      + 2 * n_pad * n_pad * 2 * h2,
                transcendentals=0,
                bytes_accessed=a_bytes + n_pad * 2 * h1 * 2 + n_pad * 2 * h2 * 4),
        )(a_c, xw_c, b12, wml_c, bml)
    else:
        # ---- two-stage encode, tiled over (rows, K) with f32 accumulators ----
        tm = _pick_tile(n_pad, row_tile)
        tk = _pick_tile(n_pad, k_tile)
        rows, ks = n_pad // tm, n_pad // tk
        cparams = pltpu.CompilerParams(
            dimension_semantics=("parallel", "arbitrary"),
            vmem_limit_bytes=32 * 1024 * 1024)

        # stage 1: pre = (A @ XW + b12) @ W_ml
        pre = pl.pallas_call(
            encode_stage1_kernel,
            out_shape=jax.ShapeDtypeStruct((n_pad, 2 * h2), COMPUTE_DTYPE),
            grid_spec=pltpu.PrefetchScalarGridSpec(
                num_scalar_prefetch=0, grid=(rows, ks),
                in_specs=[pl.BlockSpec((tm, tk), lambda i, k: (i, k)),       # A
                          pl.BlockSpec((tk, 2 * h1), lambda i, k: (k, 0)),   # XW
                          pl.BlockSpec((1, 2 * h1), lambda i, k: (0, 0)),    # b12
                          pl.BlockSpec((2 * h1, 2 * h2), lambda i, k: (0, 0))],
                out_specs=pl.BlockSpec((tm, 2 * h2), lambda i, k: (i, 0)),
                scratch_shapes=[pltpu.VMEM((tm, 2 * h1), jnp.float32)]),
            compiler_params=cparams,
        )(a_c, xw_c, b12, wml_c)

        # stage 2: [mu | logvar] = A @ pre + b_ml
        ml = pl.pallas_call(
            encode_stage2_kernel,
            out_shape=jax.ShapeDtypeStruct((n_pad, 2 * h2), jnp.float32),
            grid_spec=pltpu.PrefetchScalarGridSpec(
                num_scalar_prefetch=0, grid=(rows, ks),
                in_specs=[pl.BlockSpec((tm, tk), lambda i, k: (i, k)),       # A
                          pl.BlockSpec((tk, 2 * h2), lambda i, k: (k, 0)),   # pre
                          pl.BlockSpec((1, 2 * h2), lambda i, k: (0, 0))],   # b_ml
                out_specs=pl.BlockSpec((tm, 2 * h2), lambda i, k: (i, 0)),
                scratch_shapes=[pltpu.VMEM((tm, 2 * h2), jnp.float32)]),
            compiler_params=cparams,
        )(a_c, pre, bml)

    mu = ml[:n, :h2]
    logvar = ml[:n, h2:]

    # ---- reparametrize (eval mode): z = mu ----
    # TODO(synk): training-mode z = mu + randn*exp(logstd) would use
    # pltpu.prng_seed + pltpu.stateful_normal; eval semantics implemented here.
    # z stays f32: the decoder is HBM-write-bound so f32 MXU operands are free.
    z = ml[:, :h2] if n_pad == n else jnp.pad(mu, ((0, n_pad - n), (0, 0)))

    # ---- InnerProductDecoder.forward_all(z, sigmoid=True), tiled (tn, tn) ----
    tn = _pick_tile(n_pad, dec_tile)
    gd = n_pad // tn
    adj_full = pl.pallas_call(
        decoder_kernel,
        out_shape=jax.ShapeDtypeStruct((n_pad, n_pad), jnp.float32),
        grid_spec=pltpu.PrefetchScalarGridSpec(
            num_scalar_prefetch=0, grid=(gd, gd),
            in_specs=[pl.BlockSpec((tn, h2), lambda i, j: (i, 0)),   # z rows
                      pl.BlockSpec((tn, h2), lambda i, j: (j, 0))],  # z cols
            out_specs=pl.BlockSpec((tn, tn), lambda i, j: (i, j))),
        compiler_params=pltpu.CompilerParams(
            dimension_semantics=("parallel", "parallel"),
            vmem_limit_bytes=32 * 1024 * 1024),
        cost_estimate=pl.CostEstimate(
            flops=2 * n_pad * n_pad * h2, transcendentals=n_pad * n_pad,
            bytes_accessed=2 * n_pad * h2 * 4 + n_pad * n_pad * 4),
    )(z, z)

    adj = adj_full if n_pad == n else adj_full[:n, :n]
    return adj, mu, logvar


# --------------------------------------------------------------------------- #
# Graph / parameter helpers
# --------------------------------------------------------------------------- #
def normalized_adjacency(edge_index, num_nodes):
    """Dense D^-1/2 (A + I) D^-1/2 — GCNConv's symmetric normalization (f32).

    Self-loops are *filled* (not added) so pre-existing self-loops don't
    double-count (matches PyG add_remaining_self_loops).
    """
    src, dst = edge_index[0], edge_index[1]
    a = jnp.zeros((num_nodes, num_nodes), jnp.float32)
    a = a.at[dst, src].set(1.0)                             # messages src -> dst
    a = jnp.where(jnp.eye(num_nodes, dtype=bool), 1.0, a)   # remaining self loops
    deg = a.sum(axis=1)
    d_inv_sqrt = jax.lax.rsqrt(deg)
    return a * d_inv_sqrt[:, None] * d_inv_sqrt[None, :]


def glorot(key, shape):
    fan_in, fan_out = shape
    limit = jnp.sqrt(6.0 / (fan_in + fan_out))
    return jax.random.uniform(key, shape, jnp.float32, -limit, limit)


def reference_forward(a, x, params):
    """Pure-JAX f32 reference of the PyTorch module (eval mode)."""
    w1, b1, w2, b2, wmu, bmu, wlv, blv = params
    hid1 = a @ (x @ w1) + b1
    hid2 = a @ (x @ w2) + b2
    hc = jnp.concatenate([hid1, hid2], axis=1)
    mu = a @ (hc @ wmu) + bmu
    lv = a @ (hc @ wlv) + blv
    adj = jax.nn.sigmoid(mu @ mu.T)
    return adj, mu, lv


if __name__ == "__main__":
    # Shapes consistent with the module:
    #   input_feat_dim = 16, hidden_dim1 = 8, hidden_dim2 = 4
    #   mul = (8 + 8) // 4 = 4  ->  mu/logvar GCNConv input dim = 16 = 2*hidden_dim1
    # N = 300 is deliberately NOT a multiple of 128 to exercise the padding path.
    N_NODES = 300
    IN_DIM, H1, H2 = 16, 8, 4

    key = jax.random.PRNGKey(0)
    kx, k1, k2, k3, k4 = jax.random.split(key, 5)

    x = jax.random.normal(kx, (N_NODES, IN_DIM), jnp.float32)

    # Deterministic ring graph (both directions), edge_index shape (2, 2N).
    idx = jnp.arange(N_NODES)
    nxt = (idx + 1) % N_NODES
    edge_index = jnp.stack([jnp.concatenate([idx, nxt]),
                            jnp.concatenate([nxt, idx])], axis=0)

    a_hat_f32 = normalized_adjacency(edge_index, N_NODES)
    # Cast A_hat to bf16 ONCE, outside jit (perf review: no per-call cast pass).
    a_hat = a_hat_f32.astype(COMPUTE_DTYPE)

    # Glorot weights, zero bias (GCNConv defaults).
    params = (glorot(k1, (IN_DIM, H1)), jnp.zeros((H1,), jnp.float32),      # gcn1
              glorot(k2, (IN_DIM, H1)), jnp.zeros((H1,), jnp.float32),      # gcn2
              glorot(k3, (2 * H1, H2)), jnp.zeros((H2,), jnp.float32),      # mu_gcn
              glorot(k4, (2 * H1, H2)), jnp.zeros((H2,), jnp.float32))      # logvar_gcn

    fwd = jax.jit(gcn_merge_forward,
                  static_argnames=("row_tile", "k_tile", "dec_tile", "fuse_encode"))

    # Path 1: fused encode (A VMEM-resident), large decoder tiles.
    adj_f, mu_f, lv_f = fwd(a_hat, x, params)
    # Path 2: K-tiled two-stage encode + 128-tile decoder (large-N code path).
    adj_t, mu_t, lv_t = fwd(a_hat, x, params, fuse_encode=False,
                            row_tile=128, k_tile=128, dec_tile=128)
    jax.block_until_ready((adj_f, mu_f, lv_f, adj_t, mu_t, lv_t))

    adj_r, mu_r, lv_r = reference_forward(a_hat_f32, x, params)

    def _check(name, got, want, tol=5e-2):
        err = float(jnp.max(jnp.abs(got - want)))
        assert err < tol, f"{name}: max abs err {err}"

    for tag, (adj_k, mu_k, lv_k) in (("fused", (adj_f, mu_f, lv_f)),
                                     ("tiled", (adj_t, mu_t, lv_t))):
        assert adj_k.shape == (N_NODES, N_NODES)
        assert mu_k.shape == (N_NODES, H2) and lv_k.shape == (N_NODES, H2)
        assert bool(jnp.all(jnp.isfinite(adj_k)))
        assert bool(jnp.all((adj_k >= 0.0) & (adj_k <= 1.0)))
        _check(f"{tag}.mu", mu_k, mu_r)
        _check(f"{tag}.logvar", lv_k, lv_r)
        _check(f"{tag}.adj", adj_k, adj_r)

    print("KERNEL_OK")
</pallas_src>

<mosaic_0001>
module attributes {stable_mosaic.version = 11 : i64} {
  func.func @encode_fused_kernel(%arg0: memref<384x384xbf16, #tpu.memory_space<vmem>>, %arg1: memref<384x16xbf16, #tpu.memory_space<vmem>>, %arg2: memref<1x16xf32, #tpu.memory_space<vmem>>, %arg3: memref<16x8xbf16, #tpu.memory_space<vmem>>, %arg4: memref<1x8xf32, #tpu.memory_space<vmem>>, %arg5: memref<384x8xf32, #tpu.memory_space<vmem>>) attributes {dimension_semantics = [], scalar_prefetch = 0 : i64, scratch_operands = 0 : i64, tpu.core_type = #tpu.core_type<tc>} {
    %c0 = arith.constant 0 : index
    %c0_0 = arith.constant 0 : index
    %0 = vector.load %arg0[%c0, %c0_0] : memref<384x384xbf16, #tpu.memory_space<vmem>>, vector<384x384xbf16>
    %c0_1 = arith.constant 0 : index
    %c0_2 = arith.constant 0 : index
    %1 = vector.load %arg1[%c0_1, %c0_2] : memref<384x16xbf16, #tpu.memory_space<vmem>>, vector<384x16xbf16>
    %cst = arith.constant dense<0.000000e+00> : vector<384x16xf32>
    %2 = tpu.matmul %0, %1, %cst {dimension_numbers = #tpu.dot_dimension_numbers<[1], [0], [0], [1], [0, 0, 1, 1], [], []>} : vector<384x384xbf16>, vector<384x16xbf16>, vector<384x16xf32> -> vector<384x16xf32>
    %c0_3 = arith.constant 0 : index
    %c0_4 = arith.constant 0 : index
    %3 = vector.load %arg2[%c0_3, %c0_4] : memref<1x16xf32, #tpu.memory_space<vmem>>, vector<1x16xf32>
    %4 = vector.broadcast %3 : vector<1x16xf32> to vector<384x16xf32>
    %5 = arith.addf %2, %4 : vector<384x16xf32>
    %6 = arith.truncf %5 : vector<384x16xf32> to vector<384x16xbf16>
    %c0_5 = arith.constant 0 : index
    %c0_6 = arith.constant 0 : index
    %7 = vector.load %arg3[%c0_5, %c0_6] : memref<16x8xbf16, #tpu.memory_space<vmem>>, vector<16x8xbf16>
    %cst_7 = arith.constant dense<0.000000e+00> : vector<384x8xf32>
    %8 = tpu.matmul %6, %7, %cst_7 {dimension_numbers = #tpu.dot_dimension_numbers<[1], [0], [0], [1], [0, 0, 1, 1], [], []>} : vector<384x16xbf16>, vector<16x8xbf16>, vector<384x8xf32> -> vector<384x8xf32>
    %9 = arith.truncf %8 : vector<384x8xf32> to vector<384x8xbf16>
    %cst_8 = arith.constant dense<0.000000e+00> : vector<384x8xf32>
    %10 = tpu.matmul %0, %9, %cst_8 {dimension_numbers = #tpu.dot_dimension_numbers<[1], [0], [0], [1], [0, 0, 1, 1], [], []>} : vector<384x384xbf16>, vector<384x8xbf16>, vector<384x8xf32> -> vector<384x8xf32>
    %c0_9 = arith.constant 0 : index
    %c0_10 = arith.constant 0 : index
    %11 = vector.load %arg4[%c0_9, %c0_10] : memref<1x8xf32, #tpu.memory_space<vmem>>, vector<1x8xf32>
    %12 = vector.broadcast %11 : vector<1x8xf32> to vector<384x8xf32>
    %13 = arith.addf %10, %12 : vector<384x8xf32>
    %c0_11 = arith.constant 0 : index
    %c0_12 = arith.constant 0 : index
    %14 = vector.load %arg5[%c0_11, %c0_12] : memref<384x8xf32, #tpu.memory_space<vmem>>, vector<384x8xf32>
    tpu.vector_store %arg5[%c0_11, %c0_12], %13 {strides = array<i32>} : memref<384x8xf32, #tpu.memory_space<vmem>>, vector<384x8xf32>,
    return
  }
}

module attributes {stable_mosaic.version = 11 : i64} {
  func.func @decoder_kernel(%arg0: i32, %arg1: i32, %arg2: memref<384x4xf32, #tpu.memory_space<vmem>>, %arg3: memref<384x4xf32, #tpu.memory_space<vmem>>, %arg4: memref<384x384xf32, #tpu.memory_space<vmem>>) attributes {dimension_semantics = [#tpu.dimension_semantics<parallel>, #tpu.dimension_semantics<parallel>], iteration_bounds = array<i64: 1, 1>, scalar_prefetch = 0 : i64, scratch_operands = 0 : i64, tpu.core_type = #tpu.core_type<tc>, window_params = [{transform_indices = @transform_0, window_bounds = array<i64: 384, 4>}, {transform_indices = @transform_1, window_bounds = array<i64: 384, 4>}, {transform_indices = @transform_2, window_bounds = array<i64: 384, 384>}]} {
    %c0 = arith.constant 0 : index
    %c0_0 = arith.constant 0 : index
    %0 = vector.load %arg2[%c0, %c0_0] : memref<384x4xf32, #tpu.memory_space<vmem>>, vector<384x4xf32>
    %c0_1 = arith.constant 0 : index
    %c0_2 = arith.constant 0 : index
    %1 = vector.load %arg3[%c0_1, %c0_2] : memref<384x4xf32, #tpu.memory_space<vmem>>, vector<384x4xf32>
    %cst = arith.constant dense<0.000000e+00> : vector<384x384xf32>
    %2 = tpu.matmul %0, %1, %cst {dimension_numbers = #tpu.dot_dimension_numbers<[1], [1], [0], [0], [0, 0, 1, 0], [], []>} : vector<384x4xf32>, vector<384x4xf32>, vector<384x384xf32> -> vector<384x384xf32>
    %cst_3 = arith.constant 5.000000e-01 : f32
    %3 = vector.broadcast %cst_3 : f32 to vector<384x384xf32>
    %4 = arith.mulf %3, %2 : vector<384x384xf32>
    %5 = math.tanh %4 : vector<384x384xf32>
    %cst_4 = arith.constant 1.000000e+00 : f32
    %6 = vector.broadcast %cst_4 : f32 to vector<384x384xf32>
    %7 = arith.addf %5, %6 : vector<384x384xf32>
    %cst_5 = arith.constant 5.000000e-01 : f32
    %8 = vector.broadcast %cst_5 : f32 to vector<384x384xf32>
    %9 = arith.mulf %8, %7 : vector<384x384xf32>
    %c0_6 = arith.constant 0 : index
    %c0_7 = arith.constant 0 : index
    %10 = vector.load %arg4[%c0_6, %c0_7] : memref<384x384xf32, #tpu.memory_space<vmem>>, vector<384x384xf32>
    tpu.vector_store %arg4[%c0_6, %c0_7], %9 {strides = array<i32>} : memref<384x384xf32, #tpu.memory_space<vmem>>, vector<384x384xf32>,
    return
  }
  func.func @transform_0(%arg0: i32, %arg1: i32) -> (i32, i32) {
    %c0_i32 = arith.constant 0 : i32
    %c0_i32_0 = arith.constant 0 : i32
    return %arg0, %c0_i32 : i32, i32
  }
  func.func @transform_1(%arg0: i32, %arg1: i32) -> (i32, i32) {
    %c0_i32 = arith.constant 0 : i32
    %c0_i32_0 = arith.constant 0 : i32
    return %arg1, %c0_i32 : i32, i32
  }
  func.func @transform_2(%arg0: i32, %arg1: i32) -> (i32, i32) {
    %c0_i32 = arith.constant 0 : i32
    return %arg0, %arg1 : i32, i32
  }
}

</mosaic_0001>

<llo_original>
// kernel: gcn_merge_forward.3
$region0: #{gcn_merge_forward.3}
  #allocation0 [shape = 'u32[]', space=smem, size = 0x4, offset = 0x4, fixed_abs, tag = 'smem constant byte address 0x4 - core index']
  #allocation1 [shape = 'u32[144,128]{1,0:T(1,128)}', space=vmem, size = 0x12000, scoped, tag = 'internal scratch']
  %s0 = inlined_call_operand.vmem [shape: f32[384,4], index: 0, kind: input, shape index: {}, may-alias: {0,1}]
  %s1 = inlined_call_operand.vmem [shape: f32[384,4], index: 1, kind: input, shape index: {}, may-alias: {0,1}]
  %s2 = inlined_call_operand.vmem [shape: f32[384,384], index: 2, kind: output, shape index: {}]
  %s3 = sld [smem:[#allocation0]]
  $region18: #{gcn_merge_forward.3} parent=0
    _
  %s5 = ssub.s32 1, %s3
  %s6 = scalar_select 0, %s5, %s3
  // Predicated region
  $region2: #{gcn_merge_forward.3} parent=0 // pred_check
    _
  $region3: #{gcn_merge_forward.3} parent=0 // pred_check_branch
    %8 = sbr.rel (0) target = $region5
  $region4: #{gcn_merge_forward.3} parent=0 // pred_region
    _
  $region5: #{gcn_merge_forward.3} parent=0 // pred_fallthru
    _
  // Predicated region
  $region6: #{gcn_merge_forward.3} parent=0 // pred_check
    _
  $region7: #{gcn_merge_forward.3} parent=0 // pred_check_branch
    %10 = sbr.rel (0) target = $region9
  $region8: #{gcn_merge_forward.3} parent=0 // pred_region
    _
  $region9: #{gcn_merge_forward.3} parent=0 // pred_fallthru
    _
  %v11 = vld [vmem:[%s0] sm:$0xff]
  %v12 = vld [vmem:[%s0 + $0x8] sm:$0xff]
  %v13 = vld [vmem:[%s0 + $0x10] sm:$0xff]
  %v14 = vld [vmem:[%s0 + $0x18] sm:$0xff]
  %v15 = vld [vmem:[%s0 + $0x20] sm:$0xff]
  %v16 = vld [vmem:[%s0 + $0x28] sm:$0xff]
  %v17 = vld [vmem:[%s0 + $0x30] sm:$0xff]
  %v18 = vld [vmem:[%s0 + $0x38] sm:$0xff]
  %v19 = vld [vmem:[%s0 + $0x40] sm:$0xff]
  %v20 = vld [vmem:[%s0 + $0x48] sm:$0xff]
  %v21 = vld [vmem:[%s0 + $0x50] sm:$0xff]
  %v22 = vld [vmem:[%s0 + $0x58] sm:$0xff]
  %v23 = vld [vmem:[%s0 + $0x60] sm:$0xff]
  %v24 = vld [vmem:[%s0 + $0x68] sm:$0xff]
  %v25 = vld [vmem:[%s0 + $0x70] sm:$0xff]
  %v26 = vld [vmem:[%s0 + $0x78] sm:$0xff]
  %v27 = vld [vmem:[%s0 + $0x80] sm:$0xff]
  %v28 = vld [vmem:[%s0 + $0x88] sm:$0xff]
  %v29 = vld [vmem:[%s0 + $0x90] sm:$0xff]
  %v30 = vld [vmem:[%s0 + $0x98] sm:$0xff]
  %v31 = vld [vmem:[%s0 + $0xa0] sm:$0xff]
  %v32 = vld [vmem:[%s0 + $0xa8] sm:$0xff]
  %v33 = vld [vmem:[%s0 + $0xb0] sm:$0xff]
  %v34 = vld [vmem:[%s0 + $0xb8] sm:$0xff]
  %v35 = vld [vmem:[%s0 + $0xc0] sm:$0xff]
  %v36 = vld [vmem:[%s0 + $0xc8] sm:$0xff]
  %v37 = vld [vmem:[%s0 + $0xd0] sm:$0xff]
  %v38 = vld [vmem:[%s0 + $0xd8] sm:$0xff]
  %v39 = vld [vmem:[%s0 + $0xe0] sm:$0xff]
  %v40 = vld [vmem:[%s0 + $0xe8] sm:$0xff]
  %v41 = vld [vmem:[%s0 + $0xf0] sm:$0xff]
  %v42 = vld [vmem:[%s0 + $0xf8] sm:$0xff]
  %v43 = vld [vmem:[%s0 + $0x100] sm:$0xff]
  %v44 = vld [vmem:[%s0 + $0x108] sm:$0xff]
  %v45 = vld [vmem:[%s0 + $0x110] sm:$0xff]
  %v46 = vld [vmem:[%s0 + $0x118] sm:$0xff]
  %v47 = vld [vmem:[%s0 + $0x120] sm:$0xff]
  %v48 = vld [vmem:[%s0 + $0x128] sm:$0xff]
  %v49 = vld [vmem:[%s0 + $0x130] sm:$0xff]
  %v50 = vld [vmem:[%s0 + $0x138] sm:$0xff]
  %v51 = vld [vmem:[%s0 + $0x140] sm:$0xff]
  %v52 = vld [vmem:[%s0 + $0x148] sm:$0xff]
  %v53 = vld [vmem:[%s0 + $0x150] sm:$0xff]
  %v54 = vld [vmem:[%s0 + $0x158] sm:$0xff]
  %v55 = vld [vmem:[%s0 + $0x160] sm:$0xff]
  %v56 = vld [vmem:[%s0 + $0x168] sm:$0xff]
  %v57 = vld [vmem:[%s0 + $0x170] sm:$0xff]
  %v58 = vld [vmem:[%s0 + $0x178] sm:$0xff]
  %v59 = vld [vmem:[%s1] sm:$0xff]
  %v60 = vld [vmem:[%s1 + $0x8] sm:$0xff]
  %v61 = vld [vmem:[%s1 + $0x10] sm:$0xff]
  %v62 = vld [vmem:[%s1 + $0x18] sm:$0xff]
  %v63 = vld [vmem:[%s1 + $0x20] sm:$0xff]
  %v64 = vld [vmem:[%s1 + $0x28] sm:$0xff]
  %v65 = vld [vmem:[%s1 + $0x30] sm:$0xff]
  %v66 = vld [vmem:[%s1 + $0x38] sm:$0xff]
  %v67 = vld [vmem:[%s1 + $0x40] sm:$0xff]
  %v68 = vld [vmem:[%s1 + $0x48] sm:$0xff]
  %v69 = vld [vmem:[%s1 + $0x50] sm:$0xff]
  %v70 = vld [vmem:[%s1 + $0x58] sm:$0xff]
  %v71 = vld [vmem:[%s1 + $0x60] sm:$0xff]
  %v72 = vld [vmem:[%s1 + $0x68] sm:$0xff]
  %v73 = vld [vmem:[%s1 + $0x70] sm:$0xff]
  %v74 = vld [vmem:[%s1 + $0x78] sm:$0xff]
  %v75 = vld [vmem:[%s1 + $0x80] sm:$0xff]
  %v76 = vld [vmem:[%s1 + $0x88] sm:$0xff]
  %v77 = vld [vmem:[%s1 + $0x90] sm:$0xff]
  %v78 = vld [vmem:[%s1 + $0x98] sm:$0xff]
  %v79 = vld [vmem:[%s1 + $0xa0] sm:$0xff]
  %v80 = vld [vmem:[%s1 + $0xa8] sm:$0xff]
  %v81 = vld [vmem:[%s1 + $0xb0] sm:$0xff]
  %v82 = vld [vmem:[%s1 + $0xb8] sm:$0xff]
  %v83 = vld [vmem:[%s1 + $0xc0] sm:$0xff]
  %v84 = vld [vmem:[%s1 + $0xc8] sm:$0xff]
  %v85 = vld [vmem:[%s1 + $0xd0] sm:$0xff]
  %v86 = vld [vmem:[%s1 + $0xd8] sm:$0xff]
  %v87 = vld [vmem:[%s1 + $0xe0] sm:$0xff]
  %v88 = vld [vmem:[%s1 + $0xe8] sm:$0xff]
  %v89 = vld [vmem:[%s1 + $0xf0] sm:$0xff]
  %v90 = vld [vmem:[%s1 + $0xf8] sm:$0xff]
  %v91 = vld [vmem:[%s1 + $0x100] sm:$0xff]
  %v92 = vld [vmem:[%s1 + $0x108] sm:$0xff]
  %v93 = vld [vmem:[%s1 + $0x110] sm:$0xff]
  %v94 = vld [vmem:[%s1 + $0x118] sm:$0xff]
  %v95 = vld [vmem:[%s1 + $0x120] sm:$0xff]
  %v96 = vld [vmem:[%s1 + $0x128] sm:$0xff]
  %v97 = vld [vmem:[%s1 + $0x130] sm:$0xff]
  %v98 = vld [vmem:[%s1 + $0x138] sm:$0xff]
  %v99 = vld [vmem:[%s1 + $0x140] sm:$0xff]
  %v100 = vld [vmem:[%s1 + $0x148] sm:$0xff]
  %v101 = vld [vmem:[%s1 + $0x150] sm:$0xff]
  %v102 = vld [vmem:[%s1 + $0x158] sm:$0xff]
  %v103 = vld [vmem:[%s1 + $0x160] sm:$0xff]
  %v104 = vld [vmem:[%s1 + $0x168] sm:$0xff]
  %v105 = vld [vmem:[%s1 + $0x170] sm:$0xff]
  %v106 = vld [vmem:[%s1 + $0x178] sm:$0xff]
  %vm107 = vcmask 31744
  %v109 = vsel %vm107, %v11, 0
  %v112 = vsel %vm107, %v12, 0
  %v115 = vsel %vm107, %v13, 0
  %v118 = vsel %vm107, %v14, 0
  %v121 = vsel %vm107, %v15, 0
  %v124 = vsel %vm107, %v16, 0
  %v127 = vsel %vm107, %v17, 0
  %v130 = vsel %vm107, %v18, 0
  %v133 = vsel %vm107, %v19, 0
  %v136 = vsel %vm107, %v20, 0
  %v139 = vsel %vm107, %v21, 0
  %v142 = vsel %vm107, %v22, 0
  %v145 = vsel %vm107, %v23, 0
  %v148 = vsel %vm107, %v24, 0
  %v151 = vsel %vm107, %v25, 0
  %v154 = vsel %vm107, %v26, 0
  %v157 = vsel %vm107, %v27, 0
  %v160 = vsel %vm107, %v28, 0
  %v163 = vsel %vm107, %v29, 0
  %v166 = vsel %vm107, %v30, 0
  %v169 = vsel %vm107, %v31, 0
  %v172 = vsel %vm107, %v32, 0
  %v175 = vsel %vm107, %v33, 0
  %v178 = vsel %vm107, %v34, 0
  %v181 = vsel %vm107, %v35, 0
  %v184 = vsel %vm107, %v36, 0
  %v187 = vsel %vm107, %v37, 0
  %v190 = vsel %vm107, %v38, 0
  %v193 = vsel %vm107, %v39, 0
  %v196 = vsel %vm107, %v40, 0
  %v199 = vsel %vm107, %v41, 0
  %v202 = vsel %vm107, %v42, 0
  %v205 = vsel %vm107, %v43, 0
  %v208 = vsel %vm107, %v44, 0
  %v211 = vsel %vm107, %v45, 0
  %v214 = vsel %vm107, %v46, 0
  %v217 = vsel %vm107, %v47, 0
  %v220 = vsel %vm107, %v48, 0
  %v223 = vsel %vm107, %v49, 0
  %v226 = vsel %vm107, %v50, 0
  %v229 = vsel %vm107, %v51, 0
  %v232 = vsel %vm107, %v52, 0
  %v235 = vsel %vm107, %v53, 0
  %v238 = vsel %vm107, %v54, 0
  %v241 = vsel %vm107, %v55, 0
  %v244 = vsel %vm107, %v56, 0
  %v247 = vsel %vm107, %v57, 0
  %v250 = vsel %vm107, %v58, 0
  %v253 = vsel %vm107, %v59, 0
  %v256 = vsel %vm107, %v60, 0
  %v259 = vsel %vm107, %v61, 0
  %v262 = vsel %vm107, %v62, 0
  %v265 = vsel %vm107, %v63, 0
  %v268 = vsel %vm107, %v64, 0
  %v271 = vsel %vm107, %v65, 0
  %v274 = vsel %vm107, %v66, 0
  %v277 = vsel %vm107, %v67, 0
  %v280 = vsel %vm107, %v68, 0
  %v283 = vsel %vm107, %v69, 0
  %v286 = vsel %vm107, %v70, 0
  %v289 = vsel %vm107, %v71, 0
  %v292 = vsel %vm107, %v72, 0
  %v295 = vsel %vm107, %v73, 0
  %v298 = vsel %vm107, %v74, 0
  %v301 = vsel %vm107, %v75, 0
  %v304 = vsel %vm107, %v76, 0
  %v307 = vsel %vm107, %v77, 0
  %v310 = vsel %vm107, %v78, 0
  %v313 = vsel %vm107, %v79, 0
  %v316 = vsel %vm107, %v80, 0
  %v319 = vsel %vm107, %v81, 0
  %v322 = vsel %vm107, %v82, 0
  %v325 = vsel %vm107, %v83, 0
  %v328 = vsel %vm107, %v84, 0
  %v331 = vsel %vm107, %v85, 0
  %v334 = vsel %vm107, %v86, 0
  %v337 = vsel %vm107, %v87, 0
  %v340 = vsel %vm107, %v88, 0
  %v343 = vsel %vm107, %v89, 0
  %v346 = vsel %vm107, %v90, 0
  %v349 = vsel %vm107, %v91, 0
  %v352 = vsel %vm107, %v92, 0
  %v355 = vsel %vm107, %v93, 0
  %v358 = vsel %vm107, %v94, 0
  %v361 = vsel %vm107, %v95, 0
  %v364 = vsel %vm107, %v96, 0
  %v367 = vsel %vm107, %v97, 0
  %v370 = vsel %vm107, %v98, 0
  %v373 = vsel %vm107, %v99, 0
  %v376 = vsel %vm107, %v100, 0
  %v379 = vsel %vm107, %v101, 0
  %v382 = vsel %vm107, %v102, 0
  %v385 = vsel %vm107, %v103, 0
  %v388 = vsel %vm107, %v104, 0
  %v391 = vsel %vm107, %v105, 0
  %v394 = vsel %vm107, %v106, 0
  %396 = vmatprep.subr.mxu0 0.0
  %397 = vmatpush1.xpose.msra.mxu0 %v298
  %398 = vmatprep.subr.mxu0 0.0
  %399 = vmatpush1.xpose.msra.mxu0 %v295
  %400 = vmatprep.subr.mxu0 0.0
  %401 = vmatpush1.xpose.msra.mxu0 %v292
  %402 = vmatprep.subr.mxu0 0.0
  %403 = vmatpush1.xpose.msra.mxu0 %v289
  %404 = vmatprep.subr.mxu0 0.0
  %405 = vmatpush1.xpose.msra.mxu0 %v286
  %406 = vmatprep.subr.mxu0 0.0
  %407 = vmatpush1.xpose.msra.mxu0 %v283
  %408 = vmatprep.subr.mxu0 0.0
  %409 = vmatpush1.xpose.msra.mxu0 %v280
  %410 = vmatprep.subr.mxu0 0.0
  %411 = vmatpush1.xpose.msra.mxu0 %v277
  %412 = vmatprep.subr.mxu0 0.0
  %413 = vmatpush1.xpose.msra.mxu0 %v274
  %414 = vmatprep.subr.mxu0 0.0
  %415 = vmatpush1.xpose.msra.mxu0 %v271
  %416 = vmatprep.subr.mxu0 0.0
  %417 = vmatpush1.xpose.msra.mxu0 %v268
  %418 = vmatprep.subr.mxu0 0.0
  %419 = vmatpush1.xpose.msra.mxu0 %v265
  %420 = vmatprep.subr.mxu0 0.0
  %421 = vmatpush1.xpose.msra.mxu0 %v262
  %422 = vmatprep.subr.mxu0 0.0
  %423 = vmatpush1.xpose.msra.mxu0 %v259
  %424 = vmatprep.subr.mxu0 0.0
  %425 = vmatpush1.xpose.msra.mxu0 %v256
  %426 = vmatprep.subr.mxu0 0.0
  %427 = vmatpush1.xpose.msra.mxu0 %v253
  %428 = vmatprep.subr.mxu0 0.0
  %429 = vmatpush2.xpose.msra.mxu0 %v346
  %430 = vmatprep.subr.mxu0 0.0
  %431 = vmatpush2.xpose.msra.mxu0 %v343
  %432 = vmatprep.subr.mxu0 0.0
  %433 = vmatpush2.xpose.msra.mxu0 %v340
  %434 = vmatprep.subr.mxu0 0.0
  %435 = vmatpush2.xpose.msra.mxu0 %v337
  %436 = vmatprep.subr.mxu0 0.0
  %437 = vmatpush2.xpose.msra.mxu0 %v334
  %438 = vmatprep.subr.mxu0 0.0
  %439 = vmatpush2.xpose.msra.mxu0 %v331
  %440 = vmatprep.subr.mxu0 0.0
  %441 = vmatpush2.xpose.msra.mxu0 %v328
  %442 = vmatprep.subr.mxu0 0.0
  %443 = vmatpush2.xpose.msra.mxu0 %v325
  %444 = vmatprep.subr.mxu0 0.0
  %445 = vmatpush2.xpose.msra.mxu0 %v322
  %446 = vmatprep.subr.mxu0 0.0
  %447 = vmatpush2.xpose.msra.mxu0 %v319
  %448 = vmatprep.subr.mxu0 0.0
  %449 = vmatpush2.xpose.msra.mxu0 %v316
  %450 = vmatprep.subr.mxu0 0.0
  %451 = vmatpush2.xpose.msra.mxu0 %v313
  %452 = vmatprep.subr.mxu0 0.0
  %453 = vmatpush2.xpose.msra.mxu0 %v310
  %454 = vmatprep.subr.mxu0 0.0
  %455 = vmatpush2.xpose.msra.mxu0 %v307
  %456 = vmatprep.subr.mxu0 0.0
  %457 = vmatpush2.xpose.msra.mxu0 %v304
  %458 = vmatprep.subr.mxu0 0.0
  %459 = vmatpush2.xpose.msra.mxu0 %v301
  %460 = vmatprep.mubr.f32.mxu0 0.0
  %461 = vmatmul.mubr.f32.gmra.mxu0 %v109
  %v462 = vpop.f32.mrf.mxu0
  %v463 = vadd.f32 0.0, %v462
  %v464 = vpop.f32.mrf.mxu0
  %v465 = vadd.f32 0.0, %v464
  %466 = vmatprep.mubr.f32.mxu0 0.0
  %467 = vmatmul.mubr.f32.gmra.mxu0 %v112
  %v468 = vpop.f32.mrf.mxu0
  %v469 = vadd.f32 0.0, %v468
  %v470 = vpop.f32.mrf.mxu0
  %v471 = vadd.f32 0.0, %v470
  %472 = vmatprep.mubr.f32.mxu0 0.0
  %473 = vmatmul.mubr.f32.gmra.mxu0 %v115
  %v474 = vpop.f32.mrf.mxu0
  %v475 = vadd.f32 0.0, %v474
  %v476 = vpop.f32.mrf.mxu0
  %v477 = vadd.f32 0.0, %v476
  %478 = vmatprep.mubr.f32.mxu0 0.0
  %479 = vmatmul.mubr.f32.gmra.mxu0 %v118
  %v480 = vpop.f32.mrf.mxu0
  %v481 = vadd.f32 0.0, %v480
  %v482 = vpop.f32.mrf.mxu0
  %v483 = vadd.f32 0.0, %v482
  %484 = vmatprep.mubr.f32.mxu0 0.0
  %485 = vmatmul.mubr.f32.gmra.mxu0 %v121
  %v486 = vpop.f32.mrf.mxu0
  %v487 = vadd.f32 0.0, %v486
  %v488 = vpop.f32.mrf.mxu0
  %v489 = vadd.f32 0.0, %v488
  %490 = vmatprep.mubr.f32.mxu0 0.0
  %491 = vmatmul.mubr.f32.gmra.mxu0 %v124
  %v492 = vpop.f32.mrf.mxu0
  %v493 = vadd.f32 0.0, %v492
  %v494 = vpop.f32.mrf.mxu0
  %v495 = vadd.f32 0.0, %v494
  %496 = vmatprep.mubr.f32.mxu0 0.0
  %497 = vmatmul.mubr.f32.gmra.mxu0 %v127
  %v498 = vpop.f32.mrf.mxu0
  %v499 = vadd.f32 0.0, %v498
  %v500 = vpop.f32.mrf.mxu0
  %v501 = vadd.f32 0.0, %v500
  %502 = vmatprep.mubr.f32.mxu0 0.0
  %503 = vmatmul.mubr.f32.gmra.mxu0 %v130
  %v504 = vpop.f32.mrf.mxu0
  %v505 = vadd.f32 0.0, %v504
  %v506 = vpop.f32.mrf.mxu0
  %v507 = vadd.f32 0.0, %v506
  %508 = vmatprep.mubr.f32.mxu0 0.0
  %509 = vmatmul.mubr.f32.gmra.mxu0 %v133
  %v510 = vpop.f32.mrf.mxu0
  %v511 = vadd.f32 0.0, %v510
  %v512 = vpop.f32.mrf.mxu0
  %v513 = vadd.f32 0.0, %v512
  %514 = vmatprep.mubr.f32.mxu0 0.0
  %515 = vmatmul.mubr.f32.gmra.mxu0 %v136
  %v516 = vpop.f32.mrf.mxu0
  %v517 = vadd.f32 0.0, %v516
  %v518 = vpop.f32.mrf.mxu0
  %v519 = vadd.f32 0.0, %v518
  %520 = vmatprep.mubr.f32.mxu0 0.0
  %521 = vmatmul.mubr.f32.gmra.mxu0 %v139
  %v522 = vpop.f32.mrf.mxu0
  %v523 = vadd.f32 0.0, %v522
  %v524 = vpop.f32.mrf.mxu0
  %v525 = vadd.f32 0.0, %v524
  %526 = vmatprep.mubr.f32.mxu0 0.0
  %527 = vmatmul.mubr.f32.gmra.mxu0 %v142
  %v528 = vpop.f32.mrf.mxu0
  %v529 = vadd.f32 0.0, %v528
  %v530 = vpop.f32.mrf.mxu0
  %v531 = vadd.f32 0.0, %v530
  %532 = vmatprep.mubr.f32.mxu0 0.0
  %533 = vmatmul.mubr.f32.gmra.mxu0 %v145
  %v534 = vpop.f32.mrf.mxu0
  %v535 = vadd.f32 0.0, %v534
  %v536 = vpop.f32.mrf.mxu0
  %v537 = vadd.f32 0.0, %v536
  %538 = vmatprep.mubr.f32.mxu0 0.0
  %539 = vmatmul.mubr.f32.gmra.mxu0 %v148
  %v540 = vpop.f32.mrf.mxu0
  %v541 = vadd.f32 0.0, %v540
  %v542 = vpop.f32.mrf.mxu0
  %v543 = vadd.f32 0.0, %v542
  %544 = vmatprep.mubr.f32.mxu0 0.0
  %545 = vmatmul.mubr.f32.gmra.mxu0 %v151
  %v546 = vpop.f32.mrf.mxu0
  %v547 = vadd.f32 0.0, %v546
  %v548 = vpop.f32.mrf.mxu0
  %v549 = vadd.f32 0.0, %v548
  %550 = vmatprep.mubr.f32.mxu0 0.0
  %551 = vmatmul.mubr.f32.gmra.mxu0 %v154
  %v552 = vpop.f32.mrf.mxu0
  %v553 = vadd.f32 0.0, %v552
  %v554 = vpop.f32.mrf.mxu0
  %v555 = vadd.f32 0.0, %v554
  %556 = vmatprep.mubr.f32.mxu0 0.0
  %557 = vmatmul.mubr.f32.gmra.mxu0 %v157
  %v558 = vpop.f32.mrf.mxu0
  %v559 = vadd.f32 0.0, %v558
  %v560 = vpop.f32.mrf.mxu0
  %v561 = vadd.f32 0.0, %v560
  %562 = vmatprep.mubr.f32.mxu0 0.0
  %563 = vmatmul.mubr.f32.gmra.mxu0 %v160
  %v564 = vpop.f32.mrf.mxu0
  %v565 = vadd.f32 0.0, %v564
  %v566 = vpop.f32.mrf.mxu0
  %v567 = vadd.f32 0.0, %v566
  %568 = vmatprep.mubr.f32.mxu0 0.0
  %569 = vmatmul.mubr.f32.gmra.mxu0 %v163
  %v570 = vpop.f32.mrf.mxu0
  %v571 = vadd.f32 0.0, %v570
  %v572 = vpop.f32.mrf.mxu0
  %v573 = vadd.f32 0.0, %v572
  %574 = vmatprep.mubr.f32.mxu0 0.0
  %575 = vmatmul.mubr.f32.gmra.mxu0 %v166
  %v576 = vpop.f32.mrf.mxu0
  %v577 = vadd.f32 0.0, %v576
  %v578 = vpop.f32.mrf.mxu0
  %v579 = vadd.f32 0.0, %v578
  %580 = vmatprep.mubr.f32.mxu0 0.0
  %581 = vmatmul.mubr.f32.gmra.mxu0 %v169
  %v582 = vpop.f32.mrf.mxu0
  %v583 = vadd.f32 0.0, %v582
  %v584 = vpop.f32.mrf.mxu0
  %v585 = vadd.f32 0.0, %v584
  %586 = vmatprep.mubr.f32.mxu0 0.0
  %587 = vmatmul.mubr.f32.gmra.mxu0 %v172
  %v588 = vpop.f32.mrf.mxu0
  %v589 = vadd.f32 0.0, %v588
  %v590 = vpop.f32.mrf.mxu0
  %v591 = vadd.f32 0.0, %v590
  %592 = vmatprep.mubr.f32.mxu0 0.0
  %593 = vmatmul.mubr.f32.gmra.mxu0 %v175
  %v594 = vpop.f32.mrf.mxu0
  %v595 = vadd.f32 0.0, %v594
  %v596 = vpop.f32.mrf.mxu0
  %v597 = vadd.f32 0.0, %v596
  %598 = vmatprep.mubr.f32.mxu0 0.0
  %599 = vmatmul.mubr.f32.gmra.mxu0 %v178
  %v600 = vpop.f32.mrf.mxu0
  %v601 = vadd.f32 0.0, %v600
  %v602 = vpop.f32.mrf.mxu0
  %v603 = vadd.f32 0.0, %v602
  %604 = vmatprep.mubr.f32.mxu0 0.0
  %605 = vmatmul.mubr.f32.gmra.mxu0 %v181
  %v606 = vpop.f32.mrf.mxu0
  %v607 = vadd.f32 0.0, %v606
  %v608 = vpop.f32.mrf.mxu0
  %v609 = vadd.f32 0.0, %v608
  %610 = vmatprep.mubr.f32.mxu0 0.0
  %611 = vmatmul.mubr.f32.gmra.mxu0 %v184
  %v612 = vpop.f32.mrf.mxu0
  %v613 = vadd.f32 0.0, %v612
  %v614 = vpop.f32.mrf.mxu0
  %v615 = vadd.f32 0.0, %v614
  %616 = vmatprep.mubr.f32.mxu0 0.0
  %617 = vmatmul.mubr.f32.gmra.mxu0 %v187
  %v618 = vpop.f32.mrf.mxu0
  %v619 = vadd.f32 0.0, %v618
  %v620 = vpop.f32.mrf.mxu0
  %v621 = vadd.f32 0.0, %v620
  %622 = vmatprep.mubr.f32.mxu0 0.0
  %623 = vmatmul.mubr.f32.gmra.mxu0 %v190
  %v624 = vpop.f32.mrf.mxu0
  %v625 = vadd.f32 0.0, %v624
  %v626 = vpop.f32.mrf.mxu0
  %v627 = vadd.f32 0.0, %v626
  %628 = vmatprep.mubr.f32.mxu0 0.0
  %629 = vmatmul.mubr.f32.gmra.mxu0 %v193
  %v630 = vpop.f32.mrf.mxu0
  %v631 = vadd.f32 0.0, %v630
  %v632 = vpop.f32.mrf.mxu0
  %v633 = vadd.f32 0.0, %v632
  %634 = vmatprep.mubr.f32.mxu0 0.0
  %635 = vmatmul.mubr.f32.gmra.mxu0 %v196
  %v636 = vpop.f32.mrf.mxu0
  %v637 = vadd.f32 0.0, %v636
  %v638 = vpop.f32.mrf.mxu0
  %v639 = vadd.f32 0.0, %v638
  %640 = vmatprep.mubr.f32.mxu0 0.0
  %641 = vmatmul.mubr.f32.gmra.mxu0 %v199
  %v642 = vpop.f32.mrf.mxu0
  %v643 = vadd.f32 0.0, %v642
  %v644 = vpop.f32.mrf.mxu0
  %v645 = vadd.f32 0.0, %v644
  %646 = vmatprep.mubr.f32.mxu0 0.0
  %647 = vmatmul.mubr.f32.gmra.mxu0 %v202
  %v648 = vpop.f32.mrf.mxu0
  %v649 = vadd.f32 0.0, %v648
  %v650 = vpop.f32.mrf.mxu0
  %v651 = vadd.f32 0.0, %v650
  %652 = vmatprep.mubr.f32.mxu0 0.0
  %653 = vmatmul.mubr.f32.gmra.mxu0 %v205
  %v654 = vpop.f32.mrf.mxu0
  %v655 = vadd.f32 0.0, %v654
  %v656 = vpop.f32.mrf.mxu0
  %v657 = vadd.f32 0.0, %v656
  %658 = vmatprep.mubr.f32.mxu0 0.0
  %659 = vmatmul.mubr.f32.gmra.mxu0 %v208
  %v660 = vpop.f32.mrf.mxu0
  %v661 = vadd.f32 0.0, %v660
  %v662 = vpop.f32.mrf.mxu0
  %v663 = vadd.f32 0.0, %v662
  %664 = vmatprep.mubr.f32.mxu0 0.0
  %665 = vmatmul.mubr.f32.gmra.mxu0 %v211
  %v666 = vpop.f32.mrf.mxu0
  %v667 = vadd.f32 0.0, %v666
  %v668 = vpop.f32.mrf.mxu0
  %v669 = vadd.f32 0.0, %v668
  %670 = vmatprep.mubr.f32.mxu0 0.0
  %671 = vmatmul.mubr.f32.gmra.mxu0 %v214
  %v672 = vpop.f32.mrf.mxu0
  %v673 = vadd.f32 0.0, %v672
  %v674 = vpop.f32.mrf.mxu0
  %v675 = vadd.f32 0.0, %v674
  %676 = vmatprep.mubr.f32.mxu0 0.0
  %677 = vmatmul.mubr.f32.gmra.mxu0 %v217
  %v678 = vpop.f32.mrf.mxu0
  %v679 = vadd.f32 0.0, %v678
  %v680 = vpop.f32.mrf.mxu0
  %v681 = vadd.f32 0.0, %v680
  %682 = vmatprep.mubr.f32.mxu0 0.0
  %683 = vmatmul.mubr.f32.gmra.mxu0 %v220
  %v684 = vpop.f32.mrf.mxu0
  %v685 = vadd.f32 0.0, %v684
  %v686 = vpop.f32.mrf.mxu0
  %v687 = vadd.f32 0.0, %v686
  %688 = vmatprep.mubr.f32.mxu0 0.0
  %689 = vmatmul.mubr.f32.gmra.mxu0 %v223
  %v690 = vpop.f32.mrf.mxu0
  %v691 = vadd.f32 0.0, %v690
  %v692 = vpop.f32.mrf.mxu0
  %v693 = vadd.f32 0.0, %v692
  %694 = vmatprep.mubr.f32.mxu0 0.0
  %695 = vmatmul.mubr.f32.gmra.mxu0 %v226
  %v696 = vpop.f32.mrf.mxu0
  %v697 = vadd.f32 0.0, %v696
  %v698 = vpop.f32.mrf.mxu0
  %v699 = vadd.f32 0.0, %v698
  %700 = vmatprep.mubr.f32.mxu0 0.0
  %701 = vmatmul.mubr.f32.gmra.mxu0 %v229
  %v702 = vpop.f32.mrf.mxu0
  %v703 = vadd.f32 0.0, %v702
  %v704 = vpop.f32.mrf.mxu0
  %v705 = vadd.f32 0.0, %v704
  %706 = vmatprep.mubr.f32.mxu0 0.0
  %707 = vmatmul.mubr.f32.gmra.mxu0 %v232
  %v708 = vpop.f32.mrf.mxu0
  %v709 = vadd.f32 0.0, %v708
  %v710 = vpop.f32.mrf.mxu0
  %v711 = vadd.f32 0.0, %v710
  %712 = vmatprep.mubr.f32.mxu0 0.0
  %713 = vmatmul.mubr.f32.gmra.mxu0 %v235
  %v714 = vpop.f32.mrf.mxu0
  %v715 = vadd.f32 0.0, %v714
  %v716 = vpop.f32.mrf.mxu0
  %v717 = vadd.f32 0.0, %v716
  %718 = vmatprep.mubr.f32.mxu0 0.0
  %719 = vmatmul.mubr.f32.gmra.mxu0 %v238
  %v720 = vpop.f32.mrf.mxu0
  %v721 = vadd.f32 0.0, %v720
  %v722 = vpop.f32.mrf.mxu0
  %v723 = vadd.f32 0.0, %v722
  %724 = vmatprep.mubr.f32.mxu0 0.0
  %725 = vmatmul.mubr.f32.gmra.mxu0 %v241
  %v726 = vpop.f32.mrf.mxu0
  %v727 = vadd.f32 0.0, %v726
  %v728 = vpop.f32.mrf.mxu0
  %v729 = vadd.f32 0.0, %v728
  %730 = vmatprep.mubr.f32.mxu0 0.0
  %731 = vmatmul.mubr.f32.gmra.mxu0 %v244
  %v732 = vpop.f32.mrf.mxu0
  %v733 = vadd.f32 0.0, %v732
  %v734 = vpop.f32.mrf.mxu0
  %v735 = vadd.f32 0.0, %v734
  %736 = vmatprep.mubr.f32.mxu0 0.0
  %737 = vmatmul.mubr.f32.gmra.mxu0 %v247
  %v738 = vpop.f32.mrf.mxu0
  %v739 = vadd.f32 0.0, %v738
  %v740 = vpop.f32.mrf.mxu0
  %v741 = vadd.f32 0.0, %v740
  %742 = vmatprep.mubr.f32.mxu0 0.0
  %743 = vmatmul.mubr.f32.gmra.mxu0 %v250
  %v744 = vpop.f32.mrf.mxu0
  %v745 = vadd.f32 0.0, %v744
  %v746 = vpop.f32.mrf.mxu0
  %v747 = vadd.f32 0.0, %v746
  %748 = vdwg.mxu0
  %749 = vmatprep.subr.mxu0 0.0
  %750 = vmatpush1.xpose.msra.mxu0 %v394
  %751 = vmatprep.subr.mxu0 0.0
  %752 = vmatpush1.xpose.msra.mxu0 %v391
  %753 = vmatprep.subr.mxu0 0.0
  %754 = vmatpush1.xpose.msra.mxu0 %v388
  %755 = vmatprep.subr.mxu0 0.0
  %756 = vmatpush1.xpose.msra.mxu0 %v385
  %757 = vmatprep.subr.mxu0 0.0
  %758 = vmatpush1.xpose.msra.mxu0 %v382
  %759 = vmatprep.subr.mxu0 0.0
  %760 = vmatpush1.xpose.msra.mxu0 %v379
  %761 = vmatprep.subr.mxu0 0.0
  %762 = vmatpush1.xpose.msra.mxu0 %v376
  %763 = vmatprep.subr.mxu0 0.0
  %764 = vmatpush1.xpose.msra.mxu0 %v373
  %765 = vmatprep.subr.mxu0 0.0
  %766 = vmatpush1.xpose.msra.mxu0 %v370
  %767 = vmatprep.subr.mxu0 0.0
  %768 = vmatpush1.xpose.msra.mxu0 %v367
  %769 = vmatprep.subr.mxu0 0.0
  %770 = vmatpush1.xpose.msra.mxu0 %v364
  %771 = vmatprep.subr.mxu0 0.0
  %772 = vmatpush1.xpose.msra.mxu0 %v361
  %773 = vmatprep.subr.mxu0 0.0
  %774 = vmatpush1.xpose.msra.mxu0 %v358
  %775 = vmatprep.subr.mxu0 0.0
  %776 = vmatpush1.xpose.msra.mxu0 %v355
  %777 = vmatprep.subr.mxu0 0.0
  %778 = vmatpush1.xpose.msra.mxu0 %v352
  %779 = vmatprep.subr.mxu0 0.0
  %780 = vmatpush1.xpose.msra.mxu0 %v349
  %781 = vmatprep.subr.mxu0 0.0
  %782 = vmatpush2.xpose.msra.mxu0 0.0
  %783 = vmatprep.subr.mxu0 0.0
  %784 = vmatpush2.xpose.msra.mxu0 0.0
  %785 = vmatprep.subr.mxu0 0.0
  %786 = vmatpush2.xpose.msra.mxu0 0.0
  %787 = vmatprep.subr.mxu0 0.0
  %788 = vmatpush2.xpose.msra.mxu0 0.0
  %789 = vmatprep.subr.mxu0 0.0
  %790 = vmatpush2.xpose.msra.mxu0 0.0
  %791 = vmatprep.subr.mxu0 0.0
  %792 = vmatpush2.xpose.msra.mxu0 0.0
  %793 = vmatprep.subr.mxu0 0.0
  %794 = vmatpush2.xpose.msra.mxu0 0.0
  %795 = vmatprep.subr.mxu0 0.0
  %796 = vmatpush2.xpose.msra.mxu0 0.0
  %797 = vmatprep.subr.mxu0 0.0
  %798 = vmatpush2.xpose.msra.mxu0 0.0
  %799 = vmatprep.subr.mxu0 0.0
  %800 = vmatpush2.xpose.msra.mxu0 0.0
  %801 = vmatprep.subr.mxu0 0.0
  %802 = vmatpush2.xpose.msra.mxu0 0.0
  %803 = vmatprep.subr.mxu0 0.0
  %804 = vmatpush2.xpose.msra.mxu0 0.0
  %805 = vmatprep.subr.mxu0 0.0
  %806 = vmatpush2.xpose.msra.mxu0 0.0
  %807 = vmatprep.subr.mxu0 0.0
  %808 = vmatpush2.xpose.msra.mxu0 0.0
  %809 = vmatprep.subr.mxu0 0.0
  %810 = vmatpush2.xpose.msra.mxu0 0.0
  %811 = vmatprep.subr.mxu0 0.0
  %812 = vmatpush2.xpose.msra.mxu0 0.0
  %813 = vmatprep.mubr.f32.mxu0 0.0
  %814 = vmatmul.mubr.f32.gmra.mxu0 %v109
  %v815 = vpop.f32.mrf.mxu0
  %v816 = vadd.f32 0.0, %v815
  %v817 = vpop.f32.mrf.mxu0
  %818 = vmatprep.mubr.f32.mxu0 0.0
  %819 = vmatmul.mubr.f32.gmra.mxu0 %v112
  %v820 = vpop.f32.mrf.mxu0
  %v821 = vadd.f32 0.0, %v820
  %v822 = vpop.f32.mrf.mxu0
  %823 = vmatprep.mubr.f32.mxu0 0.0
  %824 = vmatmul.mubr.f32.gmra.mxu0 %v115
  %v825 = vpop.f32.mrf.mxu0
  %v826 = vadd.f32 0.0, %v825
  %v827 = vpop.f32.mrf.mxu0
  %828 = vmatprep.mubr.f32.mxu0 0.0
  %829 = vmatmul.mubr.f32.gmra.mxu0 %v118
  %v830 = vpop.f32.mrf.mxu0
  %v831 = vadd.f32 0.0, %v830
  %v832 = vpop.f32.mrf.mxu0
  %833 = vmatprep.mubr.f32.mxu0 0.0
  %834 = vmatmul.mubr.f32.gmra.mxu0 %v121
  %v835 = vpop.f32.mrf.mxu0
  %v836 = vadd.f32 0.0, %v835
  %v837 = vpop.f32.mrf.mxu0
  %838 = vmatprep.mubr.f32.mxu0 0.0
  %839 = vmatmul.mubr.f32.gmra.mxu0 %v124
  %v840 = vpop.f32.mrf.mxu0
  %v841 = vadd.f32 0.0, %v840
  %v842 = vpop.f32.mrf.mxu0
  %843 = vmatprep.mubr.f32.mxu0 0.0
  %844 = vmatmul.mubr.f32.gmra.mxu0 %v127
  %v845 = vpop.f32.mrf.mxu0
  %v846 = vadd.f32 0.0, %v845
  %v847 = vpop.f32.mrf.mxu0
  %848 = vmatprep.mubr.f32.mxu0 0.0
  %849 = vmatmul.mubr.f32.gmra.mxu0 %v130
  %v850 = vpop.f32.mrf.mxu0
  %v851 = vadd.f32 0.0, %v850
  %v852 = vpop.f32.mrf.mxu0
  %853 = vmatprep.mubr.f32.mxu0 0.0
  %854 = vmatmul.mubr.f32.gmra.mxu0 %v133
  %v855 = vpop.f32.mrf.mxu0
  %v856 = vadd.f32 0.0, %v855
  %v857 = vpop.f32.mrf.mxu0
  %858 = vmatprep.mubr.f32.mxu0 0.0
  %859 = vmatmul.mubr.f32.gmra.mxu0 %v136
  %v860 = vpop.f32.mrf.mxu0
  %v861 = vadd.f32 0.0, %v860
  %v862 = vpop.f32.mrf.mxu0
  %863 = vmatprep.mubr.f32.mxu0 0.0
  %864 = vmatmul.mubr.f32.gmra.mxu0 %v139
  %v865 = vpop.f32.mrf.mxu0
  %v866 = vadd.f32 0.0, %v865
  %v867 = vpop.f32.mrf.mxu0
  %868 = vmatprep.mubr.f32.mxu0 0.0
  %869 = vmatmul.mubr.f32.gmra.mxu0 %v142
  %v870 = vpop.f32.mrf.mxu0
  %v871 = vadd.f32 0.0, %v870
  %v872 = vpop.f32.mrf.mxu0
  %873 = vmatprep.mubr.f32.mxu0 0.0
  %874 = vmatmul.mubr.f32.gmra.mxu0 %v145
  %v875 = vpop.f32.mrf.mxu0
  %v876 = vadd.f32 0.0, %v875
  %v877 = vpop.f32.mrf.mxu0
  %878 = vmatprep.mubr.f32.mxu0 0.0
  %879 = vmatmul.mubr.f32.gmra.mxu0 %v148
  %v880 = vpop.f32.mrf.mxu0
  %v881 = vadd.f32 0.0, %v880
  %v882 = vpop.f32.mrf.mxu0
  %883 = vmatprep.mubr.f32.mxu0 0.0
  %884 = vmatmul.mubr.f32.gmra.mxu0 %v151
  %v885 = vpop.f32.mrf.mxu0
  %v886 = vadd.f32 0.0, %v885
  %v887 = vpop.f32.mrf.mxu0
  %888 = vmatprep.mubr.f32.mxu0 0.0
  %889 = vmatmul.mubr.f32.gmra.mxu0 %v154
  %v890 = vpop.f32.mrf.mxu0
  %v891 = vadd.f32 0.0, %v890
  %v892 = vpop.f32.mrf.mxu0
  %893 = vmatprep.mubr.f32.mxu0 0.0
  %894 = vmatmul.mubr.f32.gmra.mxu0 %v157
  %v895 = vpop.f32.mrf.mxu0
  %v896 = vadd.f32 0.0, %v895
  %v897 = vpop.f32.mrf.mxu0
  %898 = vmatprep.mubr.f32.mxu0 0.0
  %899 = vmatmul.mubr.f32.gmra.mxu0 %v160
  %v900 = vpop.f32.mrf.mxu0
  %v901 = vadd.f32 0.0, %v900
  %v902 = vpop.f32.mrf.mxu0
  %903 = vmatprep.mubr.f32.mxu0 0.0
  %904 = vmatmul.mubr.f32.gmra.mxu0 %v163
  %v905 = vpop.f32.mrf.mxu0
  %v906 = vadd.f32 0.0, %v905
  %v907 = vpop.f32.mrf.mxu0
  %908 = vmatprep.mubr.f32.mxu0 0.0
  %909 = vmatmul.mubr.f32.gmra.mxu0 %v166
  %v910 = vpop.f32.mrf.mxu0
  %v911 = vadd.f32 0.0, %v910
  %v912 = vpop.f32.mrf.mxu0
  %913 = vmatprep.mubr.f32.mxu0 0.0
  %914 = vmatmul.mubr.f32.gmra.mxu0 %v169
  %v915 = vpop.f32.mrf.mxu0
  %v916 = vadd.f32 0.0, %v915
  %v917 = vpop.f32.mrf.mxu0
  %918 = vmatprep.mubr.f32.mxu0 0.0
  %919 = vmatmul.mubr.f32.gmra.mxu0 %v172
  %v920 = vpop.f32.mrf.mxu0
  %v921 = vadd.f32 0.0, %v920
  %v922 = vpop.f32.mrf.mxu0
  %923 = vmatprep.mubr.f32.mxu0 0.0
  %924 = vmatmul.mubr.f32.gmra.mxu0 %v175
  %v925 = vpop.f32.mrf.mxu0
  %v926 = vadd.f32 0.0, %v925
  %v927 = vpop.f32.mrf.mxu0
  %928 = vmatprep.mubr.f32.mxu0 0.0
  %929 = vmatmul.mubr.f32.gmra.mxu0 %v178
  %v930 = vpop.f32.mrf.mxu0
  %v931 = vadd.f32 0.0, %v930
  %v932 = vpop.f32.mrf.mxu0
  %933 = vmatprep.mubr.f32.mxu0 0.0
  %934 = vmatmul.mubr.f32.gmra.mxu0 %v181
  %v935 = vpop.f32.mrf.mxu0
  %v936 = vadd.f32 0.0, %v935
  %v937 = vpop.f32.mrf.mxu0
  %938 = vmatprep.mubr.f32.mxu0 0.0
  %939 = vmatmul.mubr.f32.gmra.mxu0 %v184
  %v940 = vpop.f32.mrf.mxu0
  %v941 = vadd.f32 0.0, %v940
  %v942 = vpop.f32.mrf.mxu0
  %943 = vmatprep.mubr.f32.mxu0 0.0
  %944 = vmatmul.mubr.f32.gmra.mxu0 %v187
  %v945 = vpop.f32.mrf.mxu0
  %v946 = vadd.f32 0.0, %v945
  %v947 = vpop.f32.mrf.mxu0
  %948 = vmatprep.mubr.f32.mxu0 0.0
  %949 = vmatmul.mubr.f32.gmra.mxu0 %v190
  %v950 = vpop.f32.mrf.mxu0
  %v951 = vadd.f32 0.0, %v950
  %v952 = vpop.f32.mrf.mxu0
  %953 = vmatprep.mubr.f32.mxu0 0.0
  %954 = vmatmul.mubr.f32.gmra.mxu0 %v193
  %v955 = vpop.f32.mrf.mxu0
  %v956 = vadd.f32 0.0, %v955
  %v957 = vpop.f32.mrf.mxu0
  %958 = vmatprep.mubr.f32.mxu0 0.0
  %959 = vmatmul.mubr.f32.gmra.mxu0 %v196
  %v960 = vpop.f32.mrf.mxu0
  %v961 = vadd.f32 0.0, %v960
  %v962 = vpop.f32.mrf.mxu0
  %963 = vmatprep.mubr.f32.mxu0 0.0
  %964 = vmatmul.mubr.f32.gmra.mxu0 %v199
  %v965 = vpop.f32.mrf.mxu0
  %v966 = vadd.f32 0.0, %v965
  %v967 = vpop.f32.mrf.mxu0
  %968 = vmatprep.mubr.f32.mxu0 0.0
  %969 = vmatmul.mubr.f32.gmra.mxu0 %v202
  %v970 = vpop.f32.mrf.mxu0
  %v971 = vadd.f32 0.0, %v970
  %v972 = vpop.f32.mrf.mxu0
  %973 = vmatprep.mubr.f32.mxu0 0.0
  %974 = vmatmul.mubr.f32.gmra.mxu0 %v205
  %v975 = vpop.f32.mrf.mxu0
  %v976 = vadd.f32 0.0, %v975
  %v977 = vpop.f32.mrf.mxu0
  %978 = vmatprep.mubr.f32.mxu0 0.0
  %979 = vmatmul.mubr.f32.gmra.mxu0 %v208
  %v980 = vpop.f32.mrf.mxu0
  %v981 = vadd.f32 0.0, %v980
  %v982 = vpop.f32.mrf.mxu0
  %983 = vmatprep.mubr.f32.mxu0 0.0
  %984 = vmatmul.mubr.f32.gmra.mxu0 %v211
  %v985 = vpop.f32.mrf.mxu0
  %v986 = vadd.f32 0.0, %v985
  %v987 = vpop.f32.mrf.mxu0
  %988 = vmatprep.mubr.f32.mxu0 0.0
  %989 = vmatmul.mubr.f32.gmra.mxu0 %v214
  %v990 = vpop.f32.mrf.mxu0
  %v991 = vadd.f32 0.0, %v990
  %v992 = vpop.f32.mrf.mxu0
  %993 = vmatprep.mubr.f32.mxu0 0.0
  %994 = vmatmul.mubr.f32.gmra.mxu0 %v217
  %v995 = vpop.f32.mrf.mxu0
  %v996 = vadd.f32 0.0, %v995
  %v997 = vpop.f32.mrf.mxu0
  %998 = vmatprep.mubr.f32.mxu0 0.0
  %999 = vmatmul.mubr.f32.gmra.mxu0 %v220
  %v1000 = vpop.f32.mrf.mxu0
  %v1001 = vadd.f32 0.0, %v1000
  %v1002 = vpop.f32.mrf.mxu0
  %1003 = vmatprep.mubr.f32.mxu0 0.0
  %1004 = vmatmul.mubr.f32.gmra.mxu0 %v223
  %v1005 = vpop.f32.mrf.mxu0
  %v1006 = vadd.f32 0.0, %v1005
  %v1007 = vpop.f32.mrf.mxu0
  %1008 = vmatprep.mubr.f32.mxu0 0.0
  %1009 = vmatmul.mubr.f32.gmra.mxu0 %v226
  %v1010 = vpop.f32.mrf.mxu0
  %v1011 = vadd.f32 0.0, %v1010
  %v1012 = vpop.f32.mrf.mxu0
  %1013 = vmatprep.mubr.f32.mxu0 0.0
  %1014 = vmatmul.mubr.f32.gmra.mxu0 %v229
  %v1015 = vpop.f32.mrf.mxu0
  %v1016 = vadd.f32 0.0, %v1015
  %v1017 = vpop.f32.mrf.mxu0
  %1018 = vmatprep.mubr.f32.mxu0 0.0
  %1019 = vmatmul.mubr.f32.gmra.mxu0 %v232
  %v1020 = vpop.f32.mrf.mxu0
  %v1021 = vadd.f32 0.0, %v1020
  %v1022 = vpop.f32.mrf.mxu0
  %1023 = vmatprep.mubr.f32.mxu0 0.0
  %1024 = vmatmul.mubr.f32.gmra.mxu0 %v235
  %v1025 = vpop.f32.mrf.mxu0
  %v1026 = vadd.f32 0.0, %v1025
  %v1027 = vpop.f32.mrf.mxu0
  %1028 = vmatprep.mubr.f32.mxu0 0.0
  %1029 = vmatmul.mubr.f32.gmra.mxu0 %v238
  %v1030 = vpop.f32.mrf.mxu0
  %v1031 = vadd.f32 0.0, %v1030
  %v1032 = vpop.f32.mrf.mxu0
  %1033 = vmatprep.mubr.f32.mxu0 0.0
  %1034 = vmatmul.mubr.f32.gmra.mxu0 %v241
  %v1035 = vpop.f32.mrf.mxu0
  %v1036 = vadd.f32 0.0, %v1035
  %v1037 = vpop.f32.mrf.mxu0
  %1038 = vmatprep.mubr.f32.mxu0 0.0
  %1039 = vmatmul.mubr.f32.gmra.mxu0 %v244
  %v1040 = vpop.f32.mrf.mxu0
  %v1041 = vadd.f32 0.0, %v1040
  %v1042 = vpop.f32.mrf.mxu0
  %1043 = vmatprep.mubr.f32.mxu0 0.0
  %1044 = vmatmul.mubr.f32.gmra.mxu0 %v247
  %v1045 = vpop.f32.mrf.mxu0
  %v1046 = vadd.f32 0.0, %v1045
  %v1047 = vpop.f32.mrf.mxu0
  %1048 = vmatprep.mubr.f32.mxu0 0.0
  %1049 = vmatmul.mubr.f32.gmra.mxu0 %v250
  %v1050 = vpop.f32.mrf.mxu0
  %v1051 = vadd.f32 0.0, %v1050
  %v1052 = vpop.f32.mrf.mxu0
  %1053 = vdwg.mxu0
  %v1054 = vmul.f32 %v463, 0.5
  %v1055 = vmul.f32 %v465, 0.5
  %v1056 = vmul.f32 %v816, 0.5
  %v1057 = vmul.f32 %v469, 0.5
  %v1058 = vmul.f32 %v471, 0.5
  %v1059 = vmul.f32 %v821, 0.5
  %v1060 = vmul.f32 %v475, 0.5
  %v1061 = vmul.f32 %v477, 0.5
  %v1062 = vmul.f32 %v826, 0.5
  %v1063 = vmul.f32 %v481, 0.5
  %v1064 = vmul.f32 %v483, 0.5
  %v1065 = vmul.f32 %v831, 0.5
  %v1066 = vmul.f32 %v487, 0.5
  %v1067 = vmul.f32 %v489, 0.5
  %v1068 = vmul.f32 %v836, 0.5
  %v1069 = vmul.f32 %v493, 0.5
  %v1070 = vmul.f32 %v495, 0.5
  %v1071 = vmul.f32 %v841, 0.5
  %v1072 = vmul.f32 %v499, 0.5
  %v1073 = vmul.f32 %v501, 0.5
  %v1074 = vmul.f32 %v846, 0.5
  %v1075 = vmul.f32 %v505, 0.5
  %v1076 = vmul.f32 %v507, 0.5
  %v1077 = vmul.f32 %v851, 0.5
  %v1078 = vmul.f32 %v511, 0.5
  %v1079 = vmul.f32 %v513, 0.5
  %v1080 = vmul.f32 %v856, 0.5
  %v1081 = vmul.f32 %v517, 0.5
  %v1082 = vmul.f32 %v519, 0.5
  %v1083 = vmul.f32 %v861, 0.5
  %v1084 = vmul.f32 %v523, 0.5
  %v1085 = vmul.f32 %v525, 0.5
  %v1086 = vmul.f32 %v866, 0.5
  %v1087 = vmul.f32 %v529, 0.5
  %v1088 = vmul.f32 %v531, 0.5
  %v1089 = vmul.f32 %v871, 0.5
  %v1090 = vmul.f32 %v535, 0.5
  %v1091 = vmul.f32 %v537, 0.5
  %v1092 = vmul.f32 %v876, 0.5
  %v1093 = vmul.f32 %v541, 0.5
  %v1094 = vmul.f32 %v543, 0.5
  %v1095 = vmul.f32 %v881, 0.5
  %v1096 = vmul.f32 %v547, 0.5
  %v1097 = vmul.f32 %v549, 0.5
  %v1098 = vmul.f32 %v886, 0.5
  %v1099 = vmul.f32 %v553, 0.5
  %v1100 = vmul.f32 %v555, 0.5
  %v1101 = vmul.f32 %v891, 0.5
  %v1102 = vmul.f32 %v559, 0.5
  %v1103 = vmul.f32 %v561, 0.5
  %v1104 = vmul.f32 %v896, 0.5
  %v1105 = vmul.f32 %v565, 0.5
  %v1106 = vmul.f32 %v567, 0.5
  %v1107 = vmul.f32 %v901, 0.5
  %v1108 = vmul.f32 %v571, 0.5
  %v1109 = vmul.f32 %v573, 0.5
  %v1110 = vmul.f32 %v906, 0.5
  %v1111 = vmul.f32 %v577, 0.5
  %v1112 = vmul.f32 %v579, 0.5
  %v1113 = vmul.f32 %v911, 0.5
  %v1114 = vmul.f32 %v583, 0.5
  %v1115 = vmul.f32 %v585, 0.5
  %v1116 = vmul.f32 %v916, 0.5
  %v1117 = vmul.f32 %v589, 0.5
  %v1118 = vmul.f32 %v591, 0.5
  %v1119 = vmul.f32 %v921, 0.5
  %v1120 = vmul.f32 %v595, 0.5
  %v1121 = vmul.f32 %v597, 0.5
  %v1122 = vmul.f32 %v926, 0.5
  %v1123 = vmul.f32 %v601, 0.5
  %v1124 = vmul.f32 %v603, 0.5
  %v1125 = vmul.f32 %v931, 0.5
  %v1126 = vmul.f32 %v607, 0.5
  %v1127 = vmul.f32 %v609, 0.5
  %v1128 = vmul.f32 %v936, 0.5
  %v1129 = vmul.f32 %v613, 0.5
  %v1130 = vmul.f32 %v615, 0.5
  %v1131 = vmul.f32 %v941, 0.5
  %v1132 = vmul.f32 %v619, 0.5
  %v1133 = vmul.f32 %v621, 0.5
  %v1134 = vmul.f32 %v946, 0.5
  %v1135 = vmul.f32 %v625, 0.5
  %v1136 = vmul.f32 %v627, 0.5
  %v1137 = vmul.f32 %v951, 0.5
  %v1138 = vmul.f32 %v631, 0.5
  %v1139 = vmul.f32 %v633, 0.5
  %v1140 = vmul.f32 %v956, 0.5
  %v1141 = vmul.f32 %v637, 0.5
  %v1142 = vmul.f32 %v639, 0.5
  %v1143 = vmul.f32 %v961, 0.5
  %v1144 = vmul.f32 %v643, 0.5
  %v1145 = vmul.f32 %v645, 0.5
  %v1146 = vmul.f32 %v966, 0.5
  %v1147 = vmul.f32 %v649, 0.5
  %v1148 = vmul.f32 %v651, 0.5
  %v1149 = vmul.f32 %v971, 0.5
  %v1150 = vmul.f32 %v655, 0.5
  %v1151 = vmul.f32 %v657, 0.5
  %v1152 = vmul.f32 %v976, 0.5
  %v1153 = vmul.f32 %v661, 0.5
  %v1154 = vmul.f32 %v663, 0.5
  %v1155 = vmul.f32 %v981, 0.5
  %v1156 = vmul.f32 %v667, 0.5
  %v1157 = vmul.f32 %v669, 0.5
  %v1158 = vmul.f32 %v986, 0.5
  %v1159 = vmul.f32 %v673, 0.5
  %v1160 = vmul.f32 %v675, 0.5
  %v1161 = vmul.f32 %v991, 0.5
  %v1162 = vmul.f32 %v679, 0.5
  %v1163 = vmul.f32 %v681, 0.5
  %v1164 = vmul.f32 %v996, 0.5
  %v1165 = vmul.f32 %v685, 0.5
  %v1166 = vmul.f32 %v687, 0.5
  %v1167 = vmul.f32 %v1001, 0.5
  %v1168 = vmul.f32 %v691, 0.5
  %v1169 = vmul.f32 %v693, 0.5
  %v1170 = vmul.f32 %v1006, 0.5
  %v1171 = vmul.f32 %v697, 0.5
  %v1172 = vmul.f32 %v699, 0.5
  %v1173 = vmul.f32 %v1011, 0.5
  %v1174 = vmul.f32 %v703, 0.5
  %v1175 = vmul.f32 %v705, 0.5
  %v1176 = vmul.f32 %v1016, 0.5
  %v1177 = vmul.f32 %v709, 0.5
  %v1178 = vmul.f32 %v711, 0.5
  %v1179 = vmul.f32 %v1021, 0.5
  %v1180 = vmul.f32 %v715, 0.5
  %v1181 = vmul.f32 %v717, 0.5
  %v1182 = vmul.f32 %v1026, 0.5
  %v1183 = vmul.f32 %v721, 0.5
  %v1184 = vmul.f32 %v723, 0.5
  %v1185 = vmul.f32 %v1031, 0.5
  %v1186 = vmul.f32 %v727, 0.5
  %v1187 = vmul.f32 %v729, 0.5
  %v1188 = vmul.f32 %v1036, 0.5
  %v1189 = vmul.f32 %v733, 0.5
  %v1190 = vmul.f32 %v735, 0.5
  %v1191 = vmul.f32 %v1041, 0.5
  %v1192 = vmul.f32 %v739, 0.5
  %v1193 = vmul.f32 %v741, 0.5
  %v1194 = vmul.f32 %v1046, 0.5
  %v1195 = vmul.f32 %v745, 0.5
  %v1196 = vmul.f32 %v747, 0.5
  %v1197 = vmul.f32 %v1051, 0.5
  %v1198 = vtanh.pop %v1054
  %v1199 = vtanh.pop %v1055
  %v1200 = vtanh.pop %v1056
  %v1201 = vtanh.pop %v1057
  %v1202 = vtanh.pop %v1058
  %v1203 = vtanh.pop %v1059
  %v1204 = vtanh.pop %v1060
  %v1205 = vtanh.pop %v1061
  %v1206 = vtanh.pop %v1062
  %v1207 = vtanh.pop %v1063
  %v1208 = vtanh.pop %v1064
  %v1209 = vtanh.pop %v1065
  %v1210 = vtanh.pop %v1066
  %v1211 = vtanh.pop %v1067
  %v1212 = vtanh.pop %v1068
  %v1213 = vtanh.pop %v1069
  %v1214 = vtanh.pop %v1070
  %v1215 = vtanh.pop %v1071
  %v1216 = vtanh.pop %v1072
  %v1217 = vtanh.pop %v1073
  %v1218 = vtanh.pop %v1074
  %v1219 = vtanh.pop %v1075
  %v1220 = vtanh.pop %v1076
  %v1221 = vtanh.pop %v1077
  %v1222 = vtanh.pop %v1078
  %v1223 = vtanh.pop %v1079
  %v1224 = vtanh.pop %v1080
  %v1225 = vtanh.pop %v1081
  %v1226 = vtanh.pop %v1082
  %v1227 = vtanh.pop %v1083
  %v1228 = vtanh.pop %v1084
  %v1229 = vtanh.pop %v1085
  %v1230 = vtanh.pop %v1086
  %v1231 = vtanh.pop %v1087
  %v1232 = vtanh.pop %v1088
  %v1233 = vtanh.pop %v1089
  %v1234 = vtanh.pop %v1090
  %v1235 = vtanh.pop %v1091
  %v1236 = vtanh.pop %v1092
  %v1237 = vtanh.pop %v1093
  %v1238 = vtanh.pop %v1094
  %v1239 = vtanh.pop %v1095
  %v1240 = vtanh.pop %v1096
  %v1241 = vtanh.pop %v1097
  %v1242 = vtanh.pop %v1098
  %v1243 = vtanh.pop %v1099
  %v1244 = vtanh.pop %v1100
  %v1245 = vtanh.pop %v1101
  %v1246 = vtanh.pop %v1102
  %v1247 = vtanh.pop %v1103
  %v1248 = vtanh.pop %v1104
  %v1249 = vtanh.pop %v1105
  %v1250 = vtanh.pop %v1106
  %v1251 = vtanh.pop %v1107
  %v1252 = vtanh.pop %v1108
  %v1253 = vtanh.pop %v1109
  %v1254 = vtanh.pop %v1110
  %v1255 = vtanh.pop %v1111
  %v1256 = vtanh.pop %v1112
  %v1257 = vtanh.pop %v1113
  %v1258 = vtanh.pop %v1114
  %v1259 = vtanh.pop %v1115
  %v1260 = vtanh.pop %v1116
  %v1261 = vtanh.pop %v1117
  %v1262 = vtanh.pop %v1118
  %v1263 = vtanh.pop %v1119
  %v1264 = vtanh.pop %v1120
  %v1265 = vtanh.pop %v1121
  %v1266 = vtanh.pop %v1122
  %v1267 = vtanh.pop %v1123
  %v1268 = vtanh.pop %v1124
  %v1269 = vtanh.pop %v1125
  %v1270 = vtanh.pop %v1126
  %v1271 = vtanh.pop %v1127
  %v1272 = vtanh.pop %v1128
  %v1273 = vtanh.pop %v1129
  %v1274 = vtanh.pop %v1130
  %v1275 = vtanh.pop %v1131
  %v1276 = vtanh.pop %v1132
  %v1277 = vtanh.pop %v1133
  %v1278 = vtanh.pop %v1134
  %v1279 = vtanh.pop %v1135
  %v1280 = vtanh.pop %v1136
  %v1281 = vtanh.pop %v1137
  %v1282 = vtanh.pop %v1138
  %v1283 = vtanh.pop %v1139
  %v1284 = vtanh.pop %v1140
  %v1285 = vtanh.pop %v1141
  %v1286 = vtanh.pop %v1142
  %v1287 = vtanh.pop %v1143
  %v1288 = vtanh.pop %v1144
  %v1289 = vtanh.pop %v1145
  %v1290 = vtanh.pop %v1146
  %v1291 = vtanh.pop %v1147
  %v1292 = vtanh.pop %v1148
  %v1293 = vtanh.pop %v1149
  %v1294 = vtanh.pop %v1150
  %v1295 = vtanh.pop %v1151
  %v1296 = vtanh.pop %v1152
  %v1297 = vtanh.pop %v1153
  %v1298 = vtanh.pop %v1154
  %v1299 = vtanh.pop %v1155
  %v1300 = vtanh.pop %v1156
  %v1301 = vtanh.pop %v1157
  %v1302 = vtanh.pop %v1158
  %v1303 = vtanh.pop %v1159
  %v1304 = vtanh.pop %v1160
  %v1305 = vtanh.pop %v1161
  %v1306 = vtanh.pop %v1162
  %v1307 = vtanh.pop %v1163
  %v1308 = vtanh.pop %v1164
  %v1309 = vtanh.pop %v1165
  %v1310 = vtanh.pop %v1166
  %v1311 = vtanh.pop %v1167
  %v1312 = vtanh.pop %v1168
  %v1313 = vtanh.pop %v1169
  %v1314 = vtanh.pop %v1170
  %v1315 = vtanh.pop %v1171
  %v1316 = vtanh.pop %v1172
  %v1317 = vtanh.pop %v1173
  %v1318 = vtanh.pop %v1174
  %v1319 = vtanh.pop %v1175
  %v1320 = vtanh.pop %v1176
  %v1321 = vtanh.pop %v1177
  %v1322 = vtanh.pop %v1178
  %v1323 = vtanh.pop %v1179
  %v1324 = vtanh.pop %v1180
  %v1325 = vtanh.pop %v1181
  %v1326 = vtanh.pop %v1182
  %v1327 = vtanh.pop %v1183
  %v1328 = vtanh.pop %v1184
  %v1329 = vtanh.pop %v1185
  %v1330 = vtanh.pop %v1186
  %v1331 = vtanh.pop %v1187
  %v1332 = vtanh.pop %v1188
  %v1333 = vtanh.pop %v1189
  %v1334 = vtanh.pop %v1190
  %v1335 = vtanh.pop %v1191
  %v1336 = vtanh.pop %v1192
  %v1337 = vtanh.pop %v1193
  %v1338 = vtanh.pop %v1194
  %v1339 = vtanh.pop %v1195
  %v1340 = vtanh.pop %v1196
  %v1341 = vtanh.pop %v1197
  %v1342 = vadd.f32 %v1198, 1.0
  %v1343 = vadd.f32 %v1199, 1.0
  %v1344 = vadd.f32 %v1200, 1.0
  %v1345 = vadd.f32 %v1201, 1.0
  %v1346 = vadd.f32 %v1202, 1.0
  %v1347 = vadd.f32 %v1203, 1.0
  %v1348 = vadd.f32 %v1204, 1.0
  %v1349 = vadd.f32 %v1205, 1.0
  %v1350 = vadd.f32 %v1206, 1.0
  %v1351 = vadd.f32 %v1207, 1.0
  %v1352 = vadd.f32 %v1208, 1.0
  %v1353 = vadd.f32 %v1209, 1.0
  %v1354 = vadd.f32 %v1210, 1.0
  %v1355 = vadd.f32 %v1211, 1.0
  %v1356 = vadd.f32 %v1212, 1.0
  %v1357 = vadd.f32 %v1213, 1.0
  %v1358 = vadd.f32 %v1214, 1.0
  %v1359 = vadd.f32 %v1215, 1.0
  %v1360 = vadd.f32 %v1216, 1.0
  %v1361 = vadd.f32 %v1217, 1.0
  %v1362 = vadd.f32 %v1218, 1.0
  %v1363 = vadd.f32 %v1219, 1.0
  %v1364 = vadd.f32 %v1220, 1.0
  %v1365 = vadd.f32 %v1221, 1.0
  %v1366 = vadd.f32 %v1222, 1.0
  %v1367 = vadd.f32 %v1223, 1.0
  %v1368 = vadd.f32 %v1224, 1.0
  %v1369 = vadd.f32 %v1225, 1.0
  %v1370 = vadd.f32 %v1226, 1.0
  %v1371 = vadd.f32 %v1227, 1.0
  %v1372 = vadd.f32 %v1228, 1.0
  %v1373 = vadd.f32 %v1229, 1.0
  %v1374 = vadd.f32 %v1230, 1.0
  %v1375 = vadd.f32 %v1231, 1.0
  %v1376 = vadd.f32 %v1232, 1.0
  %v1377 = vadd.f32 %v1233, 1.0
  %v1378 = vadd.f32 %v1234, 1.0
  %v1379 = vadd.f32 %v1235, 1.0
  %v1380 = vadd.f32 %v1236, 1.0
  %v1381 = vadd.f32 %v1237, 1.0
  %v1382 = vadd.f32 %v1238, 1.0
  %v1383 = vadd.f32 %v1239, 1.0
  %v1384 = vadd.f32 %v1240, 1.0
  %v1385 = vadd.f32 %v1241, 1.0
  %v1386 = vadd.f32 %v1242, 1.0
  %v1387 = vadd.f32 %v1243, 1.0
  %v1388 = vadd.f32 %v1244, 1.0
  %v1389 = vadd.f32 %v1245, 1.0
  %v1390 = vadd.f32 %v1246, 1.0
  %v1391 = vadd.f32 %v1247, 1.0
  %v1392 = vadd.f32 %v1248, 1.0
  %v1393 = vadd.f32 %v1249, 1.0
  %v1394 = vadd.f32 %v1250, 1.0
  %v1395 = vadd.f32 %v1251, 1.0
  %v1396 = vadd.f32 %v1252, 1.0
  %v1397 = vadd.f32 %v1253, 1.0
  %v1398 = vadd.f32 %v1254, 1.0
  %v1399 = vadd.f32 %v1255, 1.0
  %v1400 = vadd.f32 %v1256, 1.0
  %v1401 = vadd.f32 %v1257, 1.0
  %v1402 = vadd.f32 %v1258, 1.0
  %v1403 = vadd.f32 %v1259, 1.0
  %v1404 = vadd.f32 %v1260, 1.0
  %v1405 = vadd.f32 %v1261, 1.0
  %v1406 = vadd.f32 %v1262, 1.0
  %v1407 = vadd.f32 %v1263, 1.0
  %v1408 = vadd.f32 %v1264, 1.0
  %v1409 = vadd.f32 %v1265, 1.0
  %v1410 = vadd.f32 %v1266, 1.0
  %v1411 = vadd.f32 %v1267, 1.0
  %v1412 = vadd.f32 %v1268, 1.0
  %v1413 = vadd.f32 %v1269, 1.0
  %v1414 = vadd.f32 %v1270, 1.0
  %v1415 = vadd.f32 %v1271, 1.0
  %v1416 = vadd.f32 %v1272, 1.0
  %v1417 = vadd.f32 %v1273, 1.0
  %v1418 = vadd.f32 %v1274, 1.0
  %v1419 = vadd.f32 %v1275, 1.0
  %v1420 = vadd.f32 %v1276, 1.0
  %v1421 = vadd.f32 %v1277, 1.0
  %v1422 = vadd.f32 %v1278, 1.0
  %v1423 = vadd.f32 %v1279, 1.0
  %v1424 = vadd.f32 %v1280, 1.0
  %v1425 = vadd.f32 %v1281, 1.0
  %v1426 = vadd.f32 %v1282, 1.0
  %v1427 = vadd.f32 %v1283, 1.0
  %v1428 = vadd.f32 %v1284, 1.0
  %v1429 = vadd.f32 %v1285, 1.0
  %v1430 = vadd.f32 %v1286, 1.0
  %v1431 = vadd.f32 %v1287, 1.0
  %v1432 = vadd.f32 %v1288, 1.0
  %v1433 = vadd.f32 %v1289, 1.0
  %v1434 = vadd.f32 %v1290, 1.0
  %v1435 = vadd.f32 %v1291, 1.0
  %v1436 = vadd.f32 %v1292, 1.0
  %v1437 = vadd.f32 %v1293, 1.0
  %v1438 = vadd.f32 %v1294, 1.0
  %v1439 = vadd.f32 %v1295, 1.0
  %v1440 = vadd.f32 %v1296, 1.0
  %v1441 = vadd.f32 %v1297, 1.0
  %v1442 = vadd.f32 %v1298, 1.0
  %v1443 = vadd.f32 %v1299, 1.0
  %v1444 = vadd.f32 %v1300, 1.0
  %v1445 = vadd.f32 %v1301, 1.0
  %v1446 = vadd.f32 %v1302, 1.0
  %v1447 = vadd.f32 %v1303, 1.0
  %v1448 = vadd.f32 %v1304, 1.0
  %v1449 = vadd.f32 %v1305, 1.0
  %v1450 = vadd.f32 %v1306, 1.0
  %v1451 = vadd.f32 %v1307, 1.0
  %v1452 = vadd.f32 %v1308, 1.0
  %v1453 = vadd.f32 %v1309, 1.0
  %v1454 = vadd.f32 %v1310, 1.0
  %v1455 = vadd.f32 %v1311, 1.0
  %v1456 = vadd.f32 %v1312, 1.0
  %v1457 = vadd.f32 %v1313, 1.0
  %v1458 = vadd.f32 %v1314, 1.0
  %v1459 = vadd.f32 %v1315, 1.0
  %v1460 = vadd.f32 %v1316, 1.0
  %v1461 = vadd.f32 %v1317, 1.0
  %v1462 = vadd.f32 %v1318, 1.0
  %v1463 = vadd.f32 %v1319, 1.0
  %v1464 = vadd.f32 %v1320, 1.0
  %v1465 = vadd.f32 %v1321, 1.0
  %v1466 = vadd.f32 %v1322, 1.0
  %v1467 = vadd.f32 %v1323, 1.0
  %v1468 = vadd.f32 %v1324, 1.0
  %v1469 = vadd.f32 %v1325, 1.0
  %v1470 = vadd.f32 %v1326, 1.0
  %v1471 = vadd.f32 %v1327, 1.0
  %v1472 = vadd.f32 %v1328, 1.0
  %v1473 = vadd.f32 %v1329, 1.0
  %v1474 = vadd.f32 %v1330, 1.0
  %v1475 = vadd.f32 %v1331, 1.0
  %v1476 = vadd.f32 %v1332, 1.0
  %v1477 = vadd.f32 %v1333, 1.0
  %v1478 = vadd.f32 %v1334, 1.0
  %v1479 = vadd.f32 %v1335, 1.0
  %v1480 = vadd.f32 %v1336, 1.0
  %v1481 = vadd.f32 %v1337, 1.0
  %v1482 = vadd.f32 %v1338, 1.0
  %v1483 = vadd.f32 %v1339, 1.0
  %v1484 = vadd.f32 %v1340, 1.0
  %v1485 = vadd.f32 %v1341, 1.0
  %v1486 = vmul.f32 %v1342, 0.5
  %v1487 = vmul.f32 %v1343, 0.5
  %v1488 = vmul.f32 %v1344, 0.5
  %v1489 = vmul.f32 %v1345, 0.5
  %v1490 = vmul.f32 %v1346, 0.5
  %v1491 = vmul.f32 %v1347, 0.5
  %v1492 = vmul.f32 %v1348, 0.5
  %v1493 = vmul.f32 %v1349, 0.5
  %v1494 = vmul.f32 %v1350, 0.5
  %v1495 = vmul.f32 %v1351, 0.5
  %v1496 = vmul.f32 %v1352, 0.5
  %v1497 = vmul.f32 %v1353, 0.5
  %v1498 = vmul.f32 %v1354, 0.5
  %v1499 = vmul.f32 %v1355, 0.5
  %v1500 = vmul.f32 %v1356, 0.5
  %v1501 = vmul.f32 %v1357, 0.5
  %v1502 = vmul.f32 %v1358, 0.5
  %v1503 = vmul.f32 %v1359, 0.5
  %v1504 = vmul.f32 %v1360, 0.5
  %v1505 = vmul.f32 %v1361, 0.5
  %v1506 = vmul.f32 %v1362, 0.5
  %v1507 = vmul.f32 %v1363, 0.5
  %v1508 = vmul.f32 %v1364, 0.5
  %v1509 = vmul.f32 %v1365, 0.5
  %v1510 = vmul.f32 %v1366, 0.5
  %v1511 = vmul.f32 %v1367, 0.5
  %v1512 = vmul.f32 %v1368, 0.5
  %v1513 = vmul.f32 %v1369, 0.5
  %v1514 = vmul.f32 %v1370, 0.5
  %v1515 = vmul.f32 %v1371, 0.5
  %v1516 = vmul.f32 %v1372, 0.5
  %v1517 = vmul.f32 %v1373, 0.5
  %v1518 = vmul.f32 %v1374, 0.5
  %v1519 = vmul.f32 %v1375, 0.5
  %v1520 = vmul.f32 %v1376, 0.5
  %v1521 = vmul.f32 %v1377, 0.5
  %v1522 = vmul.f32 %v1378, 0.5
  %v1523 = vmul.f32 %v1379, 0.5
  %v1524 = vmul.f32 %v1380, 0.5
  %v1525 = vmul.f32 %v1381, 0.5
  %v1526 = vmul.f32 %v1382, 0.5
  %v1527 = vmul.f32 %v1383, 0.5
  %v1528 = vmul.f32 %v1384, 0.5
  %v1529 = vmul.f32 %v1385, 0.5
  %v1530 = vmul.f32 %v1386, 0.5
  %v1531 = vmul.f32 %v1387, 0.5
  %v1532 = vmul.f32 %v1388, 0.5
  %v1533 = vmul.f32 %v1389, 0.5
  %v1534 = vmul.f32 %v1390, 0.5
  %v1535 = vmul.f32 %v1391, 0.5
  %v1536 = vmul.f32 %v1392, 0.5
  %v1537 = vmul.f32 %v1393, 0.5
  %v1538 = vmul.f32 %v1394, 0.5
  %v1539 = vmul.f32 %v1395, 0.5
  %v1540 = vmul.f32 %v1396, 0.5
  %v1541 = vmul.f32 %v1397, 0.5
  %v1542 = vmul.f32 %v1398, 0.5
  %v1543 = vmul.f32 %v1399, 0.5
  %v1544 = vmul.f32 %v1400, 0.5
  %v1545 = vmul.f32 %v1401, 0.5
  %v1546 = vmul.f32 %v1402, 0.5
  %v1547 = vmul.f32 %v1403, 0.5
  %v1548 = vmul.f32 %v1404, 0.5
  %v1549 = vmul.f32 %v1405, 0.5
  %v1550 = vmul.f32 %v1406, 0.5
  %v1551 = vmul.f32 %v1407, 0.5
  %v1552 = vmul.f32 %v1408, 0.5
  %v1553 = vmul.f32 %v1409, 0.5
  %v1554 = vmul.f32 %v1410, 0.5
  %v1555 = vmul.f32 %v1411, 0.5
  %v1556 = vmul.f32 %v1412, 0.5
  %v1557 = vmul.f32 %v1413, 0.5
  %v1558 = vmul.f32 %v1414, 0.5
  %v1559 = vmul.f32 %v1415, 0.5
  %v1560 = vmul.f32 %v1416, 0.5
  %v1561 = vmul.f32 %v1417, 0.5
  %v1562 = vmul.f32 %v1418, 0.5
  %v1563 = vmul.f32 %v1419, 0.5
  %v1564 = vmul.f32 %v1420, 0.5
  %v1565 = vmul.f32 %v1421, 0.5
  %v1566 = vmul.f32 %v1422, 0.5
  %v1567 = vmul.f32 %v1423, 0.5
  %v1568 = vmul.f32 %v1424, 0.5
  %v1569 = vmul.f32 %v1425, 0.5
  %v1570 = vmul.f32 %v1426, 0.5
  %v1571 = vmul.f32 %v1427, 0.5
  %v1572 = vmul.f32 %v1428, 0.5
  %v1573 = vmul.f32 %v1429, 0.5
  %v1574 = vmul.f32 %v1430, 0.5
  %v1575 = vmul.f32 %v1431, 0.5
  %v1576 = vmul.f32 %v1432, 0.5
  %v1577 = vmul.f32 %v1433, 0.5
  %v1578 = vmul.f32 %v1434, 0.5
  %v1579 = vmul.f32 %v1435, 0.5
  %v1580 = vmul.f32 %v1436, 0.5
  %v1581 = vmul.f32 %v1437, 0.5
  %v1582 = vmul.f32 %v1438, 0.5
  %v1583 = vmul.f32 %v1439, 0.5
  %v1584 = vmul.f32 %v1440, 0.5
  %v1585 = vmul.f32 %v1441, 0.5
  %v1586 = vmul.f32 %v1442, 0.5
  %v1587 = vmul.f32 %v1443, 0.5
  %v1588 = vmul.f32 %v1444, 0.5
  %v1589 = vmul.f32 %v1445, 0.5
  %v1590 = vmul.f32 %v1446, 0.5
  %v1591 = vmul.f32 %v1447, 0.5
  %v1592 = vmul.f32 %v1448, 0.5
  %v1593 = vmul.f32 %v1449, 0.5
  %v1594 = vmul.f32 %v1450, 0.5
  %v1595 = vmul.f32 %v1451, 0.5
  %v1596 = vmul.f32 %v1452, 0.5
  %v1597 = vmul.f32 %v1453, 0.5
  %v1598 = vmul.f32 %v1454, 0.5
  %v1599 = vmul.f32 %v1455, 0.5
  %v1600 = vmul.f32 %v1456, 0.5
  %v1601 = vmul.f32 %v1457, 0.5
  %v1602 = vmul.f32 %v1458, 0.5
  %v1603 = vmul.f32 %v1459, 0.5
  %v1604 = vmul.f32 %v1460, 0.5
  %v1605 = vmul.f32 %v1461, 0.5
  %v1606 = vmul.f32 %v1462, 0.5
  %v1607 = vmul.f32 %v1463, 0.5
  %v1608 = vmul.f32 %v1464, 0.5
  %v1609 = vmul.f32 %v1465, 0.5
  %v1610 = vmul.f32 %v1466, 0.5
  %v1611 = vmul.f32 %v1467, 0.5
  %v1612 = vmul.f32 %v1468, 0.5
  %v1613 = vmul.f32 %v1469, 0.5
  %v1614 = vmul.f32 %v1470, 0.5
  %v1615 = vmul.f32 %v1471, 0.5
  %v1616 = vmul.f32 %v1472, 0.5
  %v1617 = vmul.f32 %v1473, 0.5
  %v1618 = vmul.f32 %v1474, 0.5
  %v1619 = vmul.f32 %v1475, 0.5
  %v1620 = vmul.f32 %v1476, 0.5
  %v1621 = vmul.f32 %v1477, 0.5
  %v1622 = vmul.f32 %v1478, 0.5
  %v1623 = vmul.f32 %v1479, 0.5
  %v1624 = vmul.f32 %v1480, 0.5
  %v1625 = vmul.f32 %v1481, 0.5
  %v1626 = vmul.f32 %v1482, 0.5
  %v1627 = vmul.f32 %v1483, 0.5
  %v1628 = vmul.f32 %v1484, 0.5
  %v1629 = vmul.f32 %v1485, 0.5
  %1630 = vst [vmem:[%s2] sm:$0xff] %v1486
  %1631 = vst [vmem:[%s2 + $0x8] sm:$0xff] %v1487
  %1632 = vst [vmem:[%s2 + $0x10] sm:$0xff] %v1488
  %1633 = vst [vmem:[%s2 + $0x18] sm:$0xff] %v1489
  %1634 = vst [vmem:[%s2 + $0x20] sm:$0xff] %v1490
  %1635 = vst [vmem:[%s2 + $0x28] sm:$0xff] %v1491
  %1636 = vst [vmem:[%s2 + $0x30] sm:$0xff] %v1492
  %1637 = vst [vmem:[%s2 + $0x38] sm:$0xff] %v1493
  %1638 = vst [vmem:[%s2 + $0x40] sm:$0xff] %v1494
  %1639 = vst [vmem:[%s2 + $0x48] sm:$0xff] %v1495
  %1640 = vst [vmem:[%s2 + $0x50] sm:$0xff] %v1496
  %1641 = vst [vmem:[%s2 + $0x58] sm:$0xff] %v1497
  %1642 = vst [vmem:[%s2 + $0x60] sm:$0xff] %v1498
  %1643 = vst [vmem:[%s2 + $0x68] sm:$0xff] %v1499
  %1644 = vst [vmem:[%s2 + $0x70] sm:$0xff] %v1500
  %1645 = vst [vmem:[%s2 + $0x78] sm:$0xff] %v1501
  %1646 = vst [vmem:[%s2 + $0x80] sm:$0xff] %v1502
  %1647 = vst [vmem:[%s2 + $0x88] sm:$0xff] %v1503
  %1648 = vst [vmem:[%s2 + $0x90] sm:$0xff] %v1504
  %1649 = vst [vmem:[%s2 + $0x98] sm:$0xff] %v1505
  %1650 = vst [vmem:[%s2 + $0xa0] sm:$0xff] %v1506
  %1651 = vst [vmem:[%s2 + $0xa8] sm:$0xff] %v1507
  %1652 = vst [vmem:[%s2 + $0xb0] sm:$0xff] %v1508
  %1653 = vst [vmem:[%s2 + $0xb8] sm:$0xff] %v1509
  %1654 = vst [vmem:[%s2 + $0xc0] sm:$0xff] %v1510
  %1655 = vst [vmem:[%s2 + $0xc8] sm:$0xff] %v1511
  %1656 = vst [vmem:[%s2 + $0xd0] sm:$0xff] %v1512
  %1657 = vst [vmem:[%s2 + $0xd8] sm:$0xff] %v1513
  %1658 = vst [vmem:[%s2 + $0xe0] sm:$0xff] %v1514
  %1659 = vst [vmem:[%s2 + $0xe8] sm:$0xff] %v1515
  %1660 = vst [vmem:[%s2 + $0xf0] sm:$0xff] %v1516
  %1661 = vst [vmem:[%s2 + $0xf8] sm:$0xff] %v1517
  %1662 = vst [vmem:[%s2 + $0x100] sm:$0xff] %v1518
  %1663 = vst [vmem:[%s2 + $0x108] sm:$0xff] %v1519
  %1664 = vst [vmem:[%s2 + $0x110] sm:$0xff] %v1520
  %1665 = vst [vmem:[%s2 + $0x118] sm:$0xff] %v1521
  %1666 = vst [vmem:[%s2 + $0x120] sm:$0xff] %v1522
  %1667 = vst [vmem:[%s2 + $0x128] sm:$0xff] %v1523
  %1668 = vst [vmem:[%s2 + $0x130] sm:$0xff] %v1524
  %1669 = vst [vmem:[%s2 + $0x138] sm:$0xff] %v1525
  %1670 = vst [vmem:[%s2 + $0x140] sm:$0xff] %v1526
  %1671 = vst [vmem:[%s2 + $0x148] sm:$0xff] %v1527
  %1672 = vst [vmem:[%s2 + $0x150] sm:$0xff] %v1528
  %1673 = vst [vmem:[%s2 + $0x158] sm:$0xff] %v1529
  %1674 = vst [vmem:[%s2 + $0x160] sm:$0xff] %v1530
  %1675 = vst [vmem:[%s2 + $0x168] sm:$0xff] %v1531
  %1676 = vst [vmem:[%s2 + $0x170] sm:$0xff] %v1532
  %1677 = vst [vmem:[%s2 + $0x178] sm:$0xff] %v1533
  %1678 = vst [vmem:[%s2 + $0x180] sm:$0xff] %v1534
  %1679 = vst [vmem:[%s2 + $0x188] sm:$0xff] %v1535
  %1680 = vst [vmem:[%s2 + $0x190] sm:$0xff] %v1536
  %1681 = vst [vmem:[%s2 + $0x198] sm:$0xff] %v1537
  %1682 = vst [vmem:[%s2 + $0x1a0] sm:$0xff] %v1538
  %1683 = vst [vmem:[%s2 + $0x1a8] sm:$0xff] %v1539
  %1684 = vst [vmem:[%s2 + $0x1b0] sm:$0xff] %v1540
  %1685 = vst [vmem:[%s2 + $0x1b8] sm:$0xff] %v1541
  %1686 = vst [vmem:[%s2 + $0x1c0] sm:$0xff] %v1542
  %1687 = vst [vmem:[%s2 + $0x1c8] sm:$0xff] %v1543
  %1688 = vst [vmem:[%s2 + $0x1d0] sm:$0xff] %v1544
  %1689 = vst [vmem:[%s2 + $0x1d8] sm:$0xff] %v1545
  %1690 = vst [vmem:[%s2 + $0x1e0] sm:$0xff] %v1546
  %1691 = vst [vmem:[%s2 + $0x1e8] sm:$0xff] %v1547
  %1692 = vst [vmem:[%s2 + $0x1f0] sm:$0xff] %v1548
  %1693 = vst [vmem:[%s2 + $0x1f8] sm:$0xff] %v1549
  %1694 = vst [vmem:[%s2 + $0x200] sm:$0xff] %v1550
  %1695 = vst [vmem:[%s2 + $0x208] sm:$0xff] %v1551
  %1696 = vst [vmem:[%s2 + $0x210] sm:$0xff] %v1552
  %1697 = vst [vmem:[%s2 + $0x218] sm:$0xff] %v1553
  %1698 = vst [vmem:[%s2 + $0x220] sm:$0xff] %v1554
  %1699 = vst [vmem:[%s2 + $0x228] sm:$0xff] %v1555
  %1700 = vst [vmem:[%s2 + $0x230] sm:$0xff] %v1556
  %1701 = vst [vmem:[%s2 + $0x238] sm:$0xff] %v1557
  %1702 = vst [vmem:[%s2 + $0x240] sm:$0xff] %v1558
  %1703 = vst [vmem:[%s2 + $0x248] sm:$0xff] %v1559
  %1704 = vst [vmem:[%s2 + $0x250] sm:$0xff] %v1560
  %1705 = vst [vmem:[%s2 + $0x258] sm:$0xff] %v1561
  %1706 = vst [vmem:[%s2 + $0x260] sm:$0xff] %v1562
  %1707 = vst [vmem:[%s2 + $0x268] sm:$0xff] %v1563
  %1708 = vst [vmem:[%s2 + $0x270] sm:$0xff] %v1564
  %1709 = vst [vmem:[%s2 + $0x278] sm:$0xff] %v1565
  %1710 = vst [vmem:[%s2 + $0x280] sm:$0xff] %v1566
  %1711 = vst [vmem:[%s2 + $0x288] sm:$0xff] %v1567
  %1712 = vst [vmem:[%s2 + $0x290] sm:$0xff] %v1568
  %1713 = vst [vmem:[%s2 + $0x298] sm:$0xff] %v1569
  %1714 = vst [vmem:[%s2 + $0x2a0] sm:$0xff] %v1570
  %1715 = vst [vmem:[%s2 + $0x2a8] sm:$0xff] %v1571
  %1716 = vst [vmem:[%s2 + $0x2b0] sm:$0xff] %v1572
  %1717 = vst [vmem:[%s2 + $0x2b8] sm:$0xff] %v1573
  %1718 = vst [vmem:[%s2 + $0x2c0] sm:$0xff] %v1574
  %1719 = vst [vmem:[%s2 + $0x2c8] sm:$0xff] %v1575
  %1720 = vst [vmem:[%s2 + $0x2d0] sm:$0xff] %v1576
  %1721 = vst [vmem:[%s2 + $0x2d8] sm:$0xff] %v1577
  %1722 = vst [vmem:[%s2 + $0x2e0] sm:$0xff] %v1578
  %1723 = vst [vmem:[%s2 + $0x2e8] sm:$0xff] %v1579
  %1724 = vst [vmem:[%s2 + $0x2f0] sm:$0xff] %v1580
  %1725 = vst [vmem:[%s2 + $0x2f8] sm:$0xff] %v1581
  %1726 = vst [vmem:[%s2 + $0x300] sm:$0xff] %v1582
  %1727 = vst [vmem:[%s2 + $0x308] sm:$0xff] %v1583
  %1728 = vst [vmem:[%s2 + $0x310] sm:$0xff] %v1584
  %1729 = vst [vmem:[%s2 + $0x318] sm:$0xff] %v1585
  %1730 = vst [vmem:[%s2 + $0x320] sm:$0xff] %v1586
  %1731 = vst [vmem:[%s2 + $0x328] sm:$0xff] %v1587
  %1732 = vst [vmem:[%s2 + $0x330] sm:$0xff] %v1588
  %1733 = vst [vmem:[%s2 + $0x338] sm:$0xff] %v1589
  %1734 = vst [vmem:[%s2 + $0x340] sm:$0xff] %v1590
  %1735 = vst [vmem:[%s2 + $0x348] sm:$0xff] %v1591
  %1736 = vst [vmem:[%s2 + $0x350] sm:$0xff] %v1592
  %1737 = vst [vmem:[%s2 + $0x358] sm:$0xff] %v1593
  %1738 = vst [vmem:[%s2 + $0x360] sm:$0xff] %v1594
  %1739 = vst [vmem:[%s2 + $0x368] sm:$0xff] %v1595
  %1740 = vst [vmem:[%s2 + $0x370] sm:$0xff] %v1596
  %1741 = vst [vmem:[%s2 + $0x378] sm:$0xff] %v1597
  %1742 = vst [vmem:[%s2 + $0x380] sm:$0xff] %v1598
  %1743 = vst [vmem:[%s2 + $0x388] sm:$0xff] %v1599
  %1744 = vst [vmem:[%s2 + $0x390] sm:$0xff] %v1600
  %1745 = vst [vmem:[%s2 + $0x398] sm:$0xff] %v1601
  %1746 = vst [vmem:[%s2 + $0x3a0] sm:$0xff] %v1602
  %1747 = vst [vmem:[%s2 + $0x3a8] sm:$0xff] %v1603
  %1748 = vst [vmem:[%s2 + $0x3b0] sm:$0xff] %v1604
  %1749 = vst [vmem:[%s2 + $0x3b8] sm:$0xff] %v1605
  %1750 = vst [vmem:[%s2 + $0x3c0] sm:$0xff] %v1606
  %1751 = vst [vmem:[%s2 + $0x3c8] sm:$0xff] %v1607
  %1752 = vst [vmem:[%s2 + $0x3d0] sm:$0xff] %v1608
  %1753 = vst [vmem:[%s2 + $0x3d8] sm:$0xff] %v1609
  %1754 = vst [vmem:[%s2 + $0x3e0] sm:$0xff] %v1610
  %1755 = vst [vmem:[%s2 + $0x3e8] sm:$0xff] %v1611
  %1756 = vst [vmem:[%s2 + $0x3f0] sm:$0xff] %v1612
  %1757 = vst [vmem:[%s2 + $0x3f8] sm:$0xff] %v1613
  %1758 = vst [vmem:[%s2 + $0x400] sm:$0xff] %v1614
  %1759 = vst [vmem:[%s2 + $0x408] sm:$0xff] %v1615
  %1760 = vst [vmem:[%s2 + $0x410] sm:$0xff] %v1616
  %1761 = vst [vmem:[%s2 + $0x418] sm:$0xff] %v1617
  %1762 = vst [vmem:[%s2 + $0x420] sm:$0xff] %v1618
  %1763 = vst [vmem:[%s2 + $0x428] sm:$0xff] %v1619
  %1764 = vst [vmem:[%s2 + $0x430] sm:$0xff] %v1620
  %1765 = vst [vmem:[%s2 + $0x438] sm:$0xff] %v1621
  %1766 = vst [vmem:[%s2 + $0x440] sm:$0xff] %v1622
  %1767 = vst [vmem:[%s2 + $0x448] sm:$0xff] %v1623
  %1768 = vst [vmem:[%s2 + $0x450] sm:$0xff] %v1624
  %1769 = vst [vmem:[%s2 + $0x458] sm:$0xff] %v1625
  %1770 = vst [vmem:[%s2 + $0x460] sm:$0xff] %v1626
  %1771 = vst [vmem:[%s2 + $0x468] sm:$0xff] %v1627
  %1772 = vst [vmem:[%s2 + $0x470] sm:$0xff] %v1628
  %1773 = vst [vmem:[%s2 + $0x478] sm:$0xff] %v1629
  // Predicated region
  $region10: #{gcn_merge_forward.3} parent=0 // pred_check
    _
  $region11: #{gcn_merge_forward.3} parent=0 // pred_check_branch
    %1775 = sbr.rel (0) target = $region13
  $region12: #{gcn_merge_forward.3} parent=0 // pred_region
    _
  $region13: #{gcn_merge_forward.3} parent=0 // pred_fallthru
    _
  // Predicated region
  $region14: #{gcn_merge_forward.3} parent=0 // pred_check
    _
  $region15: #{gcn_merge_forward.3} parent=0 // pred_check_branch
    %1777 = sbr.rel (0) target = $region17
  $region16: #{gcn_merge_forward.3} parent=0 // pred_region
    _
  $region17: #{gcn_merge_forward.3} parent=0 // pred_fallthru
    _

// kernel: gcn_merge_forward.2
$region0: #{gcn_merge_forward.2}
  #allocation0 [shape = 'u32[]', space=smem, size = 0x4, offset = 0x4, fixed_abs, tag = 'smem constant byte address 0x4 - core index']
  #allocation1 [shape = 'u32[144,128]{1,0:T(1,128)}', space=vmem, size = 0x12000, scoped, tag = 'internal scratch']
  %s0 = inlined_call_operand.vmem [shape: bf16[384,384], index: 0, kind: input, shape index: {}]
  %s1 = inlined_call_operand.vmem [shape: bf16[384,16], index: 1, kind: input, shape index: {}]
  %s2 = inlined_call_operand.vmem [shape: f32[1,16], index: 2, kind: input, shape index: {}]
  %s3 = inlined_call_operand.vmem [shape: bf16[16,8], index: 3, kind: input, shape index: {}]
  %s4 = inlined_call_operand.vmem [shape: f32[1,8], index: 4, kind: input, shape index: {}]
  %s5 = inlined_call_operand.vmem [shape: f32[384,8], index: 5, kind: output, shape index: {}]
  %s6 = sld [smem:[#allocation0]]
  $region30: #{gcn_merge_forward.2} parent=0
    _
  %s8 = ssub.s32 1, %s6
  %s9 = scalar_select 0, %s8, %s6
  // Predicated region
  $region2: #{gcn_merge_forward.2} parent=0 // pred_check
    _
  $region3: #{gcn_merge_forward.2} parent=0 // pred_check_branch
    %11 = sbr.rel (0) target = $region5
  $region4: #{gcn_merge_forward.2} parent=0 // pred_region
    _
  $region5: #{gcn_merge_forward.2} parent=0 // pred_fallthru
    _
  // Predicated region
  $region6: #{gcn_merge_forward.2} parent=0 // pred_check
    _
  $region7: #{gcn_merge_forward.2} parent=0 // pred_check_branch
    %13 = sbr.rel (0) target = $region9
  $region8: #{gcn_merge_forward.2} parent=0 // pred_region
    _
  $region9: #{gcn_merge_forward.2} parent=0 // pred_fallthru
    _
  // Predicated region
  $region10: #{gcn_merge_forward.2} parent=0 // pred_check
    _
  $region11: #{gcn_merge_forward.2} parent=0 // pred_check_branch
    %15 = sbr.rel (0) target = $region13
  $region12: #{gcn_merge_forward.2} parent=0 // pred_region
    _
  $region13: #{gcn_merge_forward.2} parent=0 // pred_fallthru
    _
  // Predicated region
  $region14: #{gcn_merge_forward.2} parent=0 // pred_check
    _
  $region15: #{gcn_merge_forward.2} parent=0 // pred_check_branch
    %17 = sbr.rel (0) target = $region17
  $region16: #{gcn_merge_forward.2} parent=0 // pred_region
    _
  $region17: #{gcn_merge_forward.2} parent=0 // pred_fallthru
    _
  // Predicated region
  $region18: #{gcn_merge_forward.2} parent=0 // pred_check
    _
  $region19: #{gcn_merge_forward.2} parent=0 // pred_check_branch
    %19 = sbr.rel (0) target = $region21
  $region20: #{gcn_merge_forward.2} parent=0 // pred_region
    _
  $region21: #{gcn_merge_forward.2} parent=0 // pred_fallthru
    _
  %v21 = vld [vmem:[%s0] sm:$0xff]
  %v22 = vld [vmem:[%s0 + $0x8] sm:$0xf]
  %v23 = vld [vmem:[%s0 + $0xc] sm:$0xff]
  %v24 = vld [vmem:[%s0 + $0x14] sm:$0xf]
  %v25 = vld [vmem:[%s0 + $0x18] sm:$0xff]
  %v26 = vld [vmem:[%s0 + $0x20] sm:$0xf]
  %v27 = vld [vmem:[%s0 + $0x24] sm:$0xff]
  %v28 = vld [vmem:[%s0 + $0x2c] sm:$0xf]
  %v29 = vld [vmem:[%s0 + $0x30] sm:$0xff]
  %v30 = vld [vmem:[%s0 + $0x38] sm:$0xf]
  %v31 = vld [vmem:[%s0 + $0x3c] sm:$0xff]
  %v32 = vld [vmem:[%s0 + $0x44] sm:$0xf]
  %v33 = vld [vmem:[%s0 + $0x48] sm:$0xff]
  %v34 = vld [vmem:[%s0 + $0x50] sm:$0xf]
  %v35 = vld [vmem:[%s0 + $0x54] sm:$0xff]
  %v36 = vld [vmem:[%s0 + $0x5c] sm:$0xf]
  %v37 = vld [vmem:[%s0 + $0x60] sm:$0xff]
  %v38 = vld [vmem:[%s0 + $0x68] sm:$0xf]
  %v39 = vld [vmem:[%s0 + $0x6c] sm:$0xff]
  %v40 = vld [vmem:[%s0 + $0x74] sm:$0xf]
  %v41 = vld [vmem:[%s0 + $0x78] sm:$0xff]
  %v42 = vld [vmem:[%s0 + $0x80] sm:$0xf]
  %v43 = vld [vmem:[%s0 + $0x84] sm:$0xff]
  %v44 = vld [vmem:[%s0 + $0x8c] sm:$0xf]
  %v45 = vld [vmem:[%s0 + $0x90] sm:$0xff]
  %v46 = vld [vmem:[%s0 + $0x98] sm:$0xf]
  %v47 = vld [vmem:[%s0 + $0x9c] sm:$0xff]
  %v48 = vld [vmem:[%s0 + $0xa4] sm:$0xf]
  %v49 = vld [vmem:[%s0 + $0xa8] sm:$0xff]
  %v50 = vld [vmem:[%s0 + $0xb0] sm:$0xf]
  %v51 = vld [vmem:[%s0 + $0xb4] sm:$0xff]
  %v52 = vld [vmem:[%s0 + $0xbc] sm:$0xf]
  %v53 = vld [vmem:[%s0 + $0xc0] sm:$0xff]
  %v54 = vld [vmem:[%s0 + $0xc8] sm:$0xf]
  %v55 = vld [vmem:[%s0 + $0xcc] sm:$0xff]
  %v56 = vld [vmem:[%s0 + $0xd4] sm:$0xf]
  %v57 = vld [vmem:[%s0 + $0xd8] sm:$0xff]
  %v58 = vld [vmem:[%s0 + $0xe0] sm:$0xf]
  %v59 = vld [vmem:[%s0 + $0xe4] sm:$0xff]
  %v60 = vld [vmem:[%s0 + $0xec] sm:$0xf]
  %v61 = vld [vmem:[%s0 + $0xf0] sm:$0xff]
  %v62 = vld [vmem:[%s0 + $0xf8] sm:$0xf]
  %v63 = vld [vmem:[%s0 + $0xfc] sm:$0xff]
  %v64 = vld [vmem:[%s0 + $0x104] sm:$0xf]
  %v65 = vld [vmem:[%s0 + $0x108] sm:$0xff]
  %v66 = vld [vmem:[%s0 + $0x110] sm:$0xf]
  %v67 = vld [vmem:[%s0 + $0x114] sm:$0xff]
  %v68 = vld [vmem:[%s0 + $0x11c] sm:$0xf]
  %v69 = vld [vmem:[%s0 + $0x120] sm:$0xff]
  %v70 = vld [vmem:[%s0 + $0x128] sm:$0xf]
  %v71 = vld [vmem:[%s0 + $0x12c] sm:$0xff]
  %v72 = vld [vmem:[%s0 + $0x134] sm:$0xf]
  %v73 = vld [vmem:[%s0 + $0x138] sm:$0xff]
  %v74 = vld [vmem:[%s0 + $0x140] sm:$0xf]
  %v75 = vld [vmem:[%s0 + $0x144] sm:$0xff]
  %v76 = vld [vmem:[%s0 + $0x14c] sm:$0xf]
  %v77 = vld [vmem:[%s0 + $0x150] sm:$0xff]
  %v78 = vld [vmem:[%s0 + $0x158] sm:$0xf]
  %v79 = vld [vmem:[%s0 + $0x15c] sm:$0xff]
  %v80 = vld [vmem:[%s0 + $0x164] sm:$0xf]
  %v81 = vld [vmem:[%s0 + $0x168] sm:$0xff]
  %v82 = vld [vmem:[%s0 + $0x170] sm:$0xf]
  %v83 = vld [vmem:[%s0 + $0x174] sm:$0xff]
  %v84 = vld [vmem:[%s0 + $0x17c] sm:$0xf]
  %v85 = vld [vmem:[%s0 + $0x180] sm:$0xff]
  %v86 = vld [vmem:[%s0 + $0x188] sm:$0xf]
  %v87 = vld [vmem:[%s0 + $0x18c] sm:$0xff]
  %v88 = vld [vmem:[%s0 + $0x194] sm:$0xf]
  %v89 = vld [vmem:[%s0 + $0x198] sm:$0xff]
  %v90 = vld [vmem:[%s0 + $0x1a0] sm:$0xf]
  %v91 = vld [vmem:[%s0 + $0x1a4] sm:$0xff]
  %v92 = vld [vmem:[%s0 + $0x1ac] sm:$0xf]
  %v93 = vld [vmem:[%s0 + $0x1b0] sm:$0xff]
  %v94 = vld [vmem:[%s0 + $0x1b8] sm:$0xf]
  %v95 = vld [vmem:[%s0 + $0x1bc] sm:$0xff]
  %v96 = vld [vmem:[%s0 + $0x1c4] sm:$0xf]
  %v97 = vld [vmem:[%s0 + $0x1c8] sm:$0xff]
  %v98 = vld [vmem:[%s0 + $0x1d0] sm:$0xf]
  %v99 = vld [vmem:[%s0 + $0x1d4] sm:$0xff]
  %v100 = vld [vmem:[%s0 + $0x1dc] sm:$0xf]
  %v101 = vld [vmem:[%s0 + $0x1e0] sm:$0xff]
  %v102 = vld [vmem:[%s0 + $0x1e8] sm:$0xf]
  %v103 = vld [vmem:[%s0 + $0x1ec] sm:$0xff]
  %v104 = vld [vmem:[%s0 + $0x1f4] sm:$0xf]
  %v105 = vld [vmem:[%s0 + $0x1f8] sm:$0xff]
  %v106 = vld [vmem:[%s0 + $0x200] sm:$0xf]
  %v107 = vld [vmem:[%s0 + $0x204] sm:$0xff]
  %v108 = vld [vmem:[%s0 + $0x20c] sm:$0xf]
  %v109 = vld [vmem:[%s0 + $0x210] sm:$0xff]
  %v110 = vld [vmem:[%s0 + $0x218] sm:$0xf]
  %v111 = vld [vmem:[%s0 + $0x21c] sm:$0xff]
  %v112 = vld [vmem:[%s0 + $0x224] sm:$0xf]
  %v113 = vld [vmem:[%s0 + $0x228] sm:$0xff]
  %v114 = vld [vmem:[%s0 + $0x230] sm:$0xf]
  %v115 = vld [vmem:[%s0 + $0x234] sm:$0xff]
  %v116 = vld [vmem:[%s0 + $0x23c] sm:$0xf]
  %v117 = vld [vmem:[%s1] sm:$0xf]
  %v118 = vld [vmem:[%s1 + $0x4] sm:$0xf]
  %v119 = vld [vmem:[%s1 + $0x8] sm:$0xf]
  %v120 = vld [vmem:[%s1 + $0xc] sm:$0xf]
  %v121 = vld [vmem:[%s1 + $0x10] sm:$0xf]
  %v122 = vld [vmem:[%s1 + $0x14] sm:$0xf]
  %v123 = vld [vmem:[%s1 + $0x18] sm:$0xf]
  %v124 = vld [vmem:[%s1 + $0x1c] sm:$0xf]
  %v125 = vld [vmem:[%s1 + $0x20] sm:$0xf]
  %v126 = vld [vmem:[%s1 + $0x24] sm:$0xf]
  %v127 = vld [vmem:[%s1 + $0x28] sm:$0xf]
  %v128 = vld [vmem:[%s1 + $0x2c] sm:$0xf]
  %v129 = vld [vmem:[%s1 + $0x30] sm:$0xf]
  %v130 = vld [vmem:[%s1 + $0x34] sm:$0xf]
  %v131 = vld [vmem:[%s1 + $0x38] sm:$0xf]
  %v132 = vld [vmem:[%s1 + $0x3c] sm:$0xf]
  %v133 = vld [vmem:[%s1 + $0x40] sm:$0xf]
  %v134 = vld [vmem:[%s1 + $0x44] sm:$0xf]
  %v135 = vld [vmem:[%s1 + $0x48] sm:$0xf]
  %v136 = vld [vmem:[%s1 + $0x4c] sm:$0xf]
  %v137 = vld [vmem:[%s1 + $0x50] sm:$0xf]
  %v138 = vld [vmem:[%s1 + $0x54] sm:$0xf]
  %v139 = vld [vmem:[%s1 + $0x58] sm:$0xf]
  %v140 = vld [vmem:[%s1 + $0x5c] sm:$0xf]
  %v141 = vld [vmem:[%s1 + $0x60] sm:$0xf]
  %v142 = vld [vmem:[%s1 + $0x64] sm:$0xf]
  %v143 = vld [vmem:[%s1 + $0x68] sm:$0xf]
  %v144 = vld [vmem:[%s1 + $0x6c] sm:$0xf]
  %v145 = vld [vmem:[%s1 + $0x70] sm:$0xf]
  %v146 = vld [vmem:[%s1 + $0x74] sm:$0xf]
  %v147 = vld [vmem:[%s1 + $0x78] sm:$0xf]
  %v148 = vld [vmem:[%s1 + $0x7c] sm:$0xf]
  %v149 = vld [vmem:[%s1 + $0x80] sm:$0xf]
  %v150 = vld [vmem:[%s1 + $0x84] sm:$0xf]
  %v151 = vld [vmem:[%s1 + $0x88] sm:$0xf]
  %v152 = vld [vmem:[%s1 + $0x8c] sm:$0xf]
  %v153 = vld [vmem:[%s1 + $0x90] sm:$0xf]
  %v154 = vld [vmem:[%s1 + $0x94] sm:$0xf]
  %v155 = vld [vmem:[%s1 + $0x98] sm:$0xf]
  %v156 = vld [vmem:[%s1 + $0x9c] sm:$0xf]
  %v157 = vld [vmem:[%s1 + $0xa0] sm:$0xf]
  %v158 = vld [vmem:[%s1 + $0xa4] sm:$0xf]
  %v159 = vld [vmem:[%s1 + $0xa8] sm:$0xf]
  %v160 = vld [vmem:[%s1 + $0xac] sm:$0xf]
  %v161 = vld [vmem:[%s1 + $0xb0] sm:$0xf]
  %v162 = vld [vmem:[%s1 + $0xb4] sm:$0xf]
  %v163 = vld [vmem:[%s1 + $0xb8] sm:$0xf]
  %v164 = vld [vmem:[%s1 + $0xbc] sm:$0xf]
  %v165 = vld [vmem:[%s2] sm:$0x1]
  %v167 = vlaneseq
  %v168 = vshrl.u32 %v167, 7
  %v169 = vsub.s32 0, %v168
  %v170 = vrot.slane %v165, %v169
  %v268 = vunpack.c.l.b16 %v21
  %v269 = vunpack.c.h.b16 %v21
  %v270 = vunpack.c.l.b16 %v22
  %v271 = vunpack.c.l.b16 %v23
  %v272 = vunpack.c.h.b16 %v23
  %v273 = vunpack.c.l.b16 %v24
  %v274 = vunpack.c.l.b16 %v25
  %v275 = vunpack.c.h.b16 %v25
  %v276 = vunpack.c.l.b16 %v26
  %v277 = vunpack.c.l.b16 %v27
  %v278 = vunpack.c.h.b16 %v27
  %v279 = vunpack.c.l.b16 %v28
  %v280 = vunpack.c.l.b16 %v29
  %v281 = vunpack.c.h.b16 %v29
  %v282 = vunpack.c.l.b16 %v30
  %v283 = vunpack.c.l.b16 %v31
  %v284 = vunpack.c.h.b16 %v31
  %v285 = vunpack.c.l.b16 %v32
  %v286 = vunpack.c.l.b16 %v33
  %v287 = vunpack.c.h.b16 %v33
  %v288 = vunpack.c.l.b16 %v34
  %v289 = vunpack.c.l.b16 %v35
  %v290 = vunpack.c.h.b16 %v35
  %v291 = vunpack.c.l.b16 %v36
  %v292 = vunpack.c.l.b16 %v37
  %v293 = vunpack.c.h.b16 %v37
  %v294 = vunpack.c.l.b16 %v38
  %v295 = vunpack.c.l.b16 %v39
  %v296 = vunpack.c.h.b16 %v39
  %v297 = vunpack.c.l.b16 %v40
  %v298 = vunpack.c.l.b16 %v41
  %v299 = vunpack.c.h.b16 %v41
  %v300 = vunpack.c.l.b16 %v42
  %v301 = vunpack.c.l.b16 %v43
  %v302 = vunpack.c.h.b16 %v43
  %v303 = vunpack.c.l.b16 %v44
  %v304 = vunpack.c.l.b16 %v45
  %v305 = vunpack.c.h.b16 %v45
  %v306 = vunpack.c.l.b16 %v46
  %v307 = vunpack.c.l.b16 %v47
  %v308 = vunpack.c.h.b16 %v47
  %v309 = vunpack.c.l.b16 %v48
  %v310 = vunpack.c.l.b16 %v49
  %v311 = vunpack.c.h.b16 %v49
  %v312 = vunpack.c.l.b16 %v50
  %v313 = vunpack.c.l.b16 %v51
  %v314 = vunpack.c.h.b16 %v51
  %v315 = vunpack.c.l.b16 %v52
  %v316 = vunpack.c.l.b16 %v53
  %v317 = vunpack.c.h.b16 %v53
  %v318 = vunpack.c.l.b16 %v54
  %v319 = vunpack.c.l.b16 %v55
  %v320 = vunpack.c.h.b16 %v55
  %v321 = vunpack.c.l.b16 %v56
  %v322 = vunpack.c.l.b16 %v57
  %v323 = vunpack.c.h.b16 %v57
  %v324 = vunpack.c.l.b16 %v58
  %v325 = vunpack.c.l.b16 %v59
  %v326 = vunpack.c.h.b16 %v59
  %v327 = vunpack.c.l.b16 %v60
  %v328 = vunpack.c.l.b16 %v61
  %v329 = vunpack.c.h.b16 %v61
  %v330 = vunpack.c.l.b16 %v62
  %v331 = vunpack.c.l.b16 %v63
  %v332 = vunpack.c.h.b16 %v63
  %v333 = vunpack.c.l.b16 %v64
  %v334 = vunpack.c.l.b16 %v65
  %v335 = vunpack.c.h.b16 %v65
  %v336 = vunpack.c.l.b16 %v66
  %v337 = vunpack.c.l.b16 %v67
  %v338 = vunpack.c.h.b16 %v67
  %v339 = vunpack.c.l.b16 %v68
  %v340 = vunpack.c.l.b16 %v69
  %v341 = vunpack.c.h.b16 %v69
  %v342 = vunpack.c.l.b16 %v70
  %v343 = vunpack.c.l.b16 %v71
  %v344 = vunpack.c.h.b16 %v71
  %v345 = vunpack.c.l.b16 %v72
  %v346 = vunpack.c.l.b16 %v73
  %v347 = vunpack.c.h.b16 %v73
  %v348 = vunpack.c.l.b16 %v74
  %v349 = vunpack.c.l.b16 %v75
  %v350 = vunpack.c.h.b16 %v75
  %v351 = vunpack.c.l.b16 %v76
  %v352 = vunpack.c.l.b16 %v77
  %v353 = vunpack.c.h.b16 %v77
  %v354 = vunpack.c.l.b16 %v78
  %v355 = vunpack.c.l.b16 %v79
  %v356 = vunpack.c.h.b16 %v79
  %v357 = vunpack.c.l.b16 %v80
  %v358 = vunpack.c.l.b16 %v81
  %v359 = vunpack.c.h.b16 %v81
  %v360 = vunpack.c.l.b16 %v82
  %v361 = vunpack.c.l.b16 %v83
  %v362 = vunpack.c.h.b16 %v83
  %v363 = vunpack.c.l.b16 %v84
  %v364 = vunpack.c.l.b16 %v85
  %v365 = vunpack.c.h.b16 %v85
  %v366 = vunpack.c.l.b16 %v86
  %v367 = vunpack.c.l.b16 %v87
  %v368 = vunpack.c.h.b16 %v87
  %v369 = vunpack.c.l.b16 %v88
  %v370 = vunpack.c.l.b16 %v89
  %v371 = vunpack.c.h.b16 %v89
  %v372 = vunpack.c.l.b16 %v90
  %v373 = vunpack.c.l.b16 %v91
  %v374 = vunpack.c.h.b16 %v91
  %v375 = vunpack.c.l.b16 %v92
  %v376 = vunpack.c.l.b16 %v93
  %v377 = vunpack.c.h.b16 %v93
  %v378 = vunpack.c.l.b16 %v94
  %v379 = vunpack.c.l.b16 %v95
  %v380 = vunpack.c.h.b16 %v95
  %v381 = vunpack.c.l.b16 %v96
  %v382 = vunpack.c.l.b16 %v97
  %v383 = vunpack.c.h.b16 %v97
  %v384 = vunpack.c.l.b16 %v98
  %v385 = vunpack.c.l.b16 %v99
  %v386 = vunpack.c.h.b16 %v99
  %v387 = vunpack.c.l.b16 %v100
  %v388 = vunpack.c.l.b16 %v101
  %v389 = vunpack.c.h.b16 %v101
  %v390 = vunpack.c.l.b16 %v102
  %v391 = vunpack.c.l.b16 %v103
  %v392 = vunpack.c.h.b16 %v103
  %v393 = vunpack.c.l.b16 %v104
  %v394 = vunpack.c.l.b16 %v105
  %v395 = vunpack.c.h.b16 %v105
  %v396 = vunpack.c.l.b16 %v106
  %v397 = vunpack.c.l.b16 %v107
  %v398 = vunpack.c.h.b16 %v107
  %v399 = vunpack.c.l.b16 %v108
  %v400 = vunpack.c.l.b16 %v109
  %v401 = vunpack.c.h.b16 %v109
  %v402 = vunpack.c.l.b16 %v110
  %v403 = vunpack.c.l.b16 %v111
  %v404 = vunpack.c.h.b16 %v111
  %v405 = vunpack.c.l.b16 %v112
  %v406 = vunpack.c.l.b16 %v113
  %v407 = vunpack.c.h.b16 %v113
  %v408 = vunpack.c.l.b16 %v114
  %v409 = vunpack.c.l.b16 %v115
  %v410 = vunpack.c.h.b16 %v115
  %v411 = vunpack.c.l.b16 %v116
  %v412 = vpack.c.b16 %v271, %v268
  %v413 = vpack.c.b16 %v272, %v269
  %v414 = vpack.c.b16 %v273, %v270
  %v415 = vpack.c.b16 %v277, %v274
  %v416 = vpack.c.b16 %v278, %v275
  %v417 = vpack.c.b16 %v279, %v276
  %v418 = vpack.c.b16 %v283, %v280
  %v419 = vpack.c.b16 %v284, %v281
  %v420 = vpack.c.b16 %v285, %v282
  %v421 = vpack.c.b16 %v289, %v286
  %v422 = vpack.c.b16 %v290, %v287
  %v423 = vpack.c.b16 %v291, %v288
  %v424 = vpack.c.b16 %v295, %v292
  %v425 = vpack.c.b16 %v296, %v293
  %v426 = vpack.c.b16 %v297, %v294
  %v427 = vpack.c.b16 %v301, %v298
  %v428 = vpack.c.b16 %v302, %v299
  %v429 = vpack.c.b16 %v303, %v300
  %v430 = vpack.c.b16 %v307, %v304
  %v431 = vpack.c.b16 %v308, %v305
  %v432 = vpack.c.b16 %v309, %v306
  %v433 = vpack.c.b16 %v313, %v310
  %v434 = vpack.c.b16 %v314, %v311
  %v435 = vpack.c.b16 %v315, %v312
  %v436 = vpack.c.b16 %v319, %v316
  %v437 = vpack.c.b16 %v320, %v317
  %v438 = vpack.c.b16 %v321, %v318
  %v439 = vpack.c.b16 %v325, %v322
  %v440 = vpack.c.b16 %v326, %v323
  %v441 = vpack.c.b16 %v327, %v324
  %v442 = vpack.c.b16 %v331, %v328
  %v443 = vpack.c.b16 %v332, %v329
  %v444 = vpack.c.b16 %v333, %v330
  %v445 = vpack.c.b16 %v337, %v334
  %v446 = vpack.c.b16 %v338, %v335
  %v447 = vpack.c.b16 %v339, %v336
  %v448 = vpack.c.b16 %v343, %v340
  %v449 = vpack.c.b16 %v344, %v341
  %v450 = vpack.c.b16 %v345, %v342
  %v451 = vpack.c.b16 %v349, %v346
  %v452 = vpack.c.b16 %v350, %v347
  %v453 = vpack.c.b16 %v351, %v348
  %v454 = vpack.c.b16 %v355, %v352
  %v455 = vpack.c.b16 %v356, %v353
  %v456 = vpack.c.b16 %v357, %v354
  %v457 = vpack.c.b16 %v361, %v358
  %v458 = vpack.c.b16 %v362, %v359
  %v459 = vpack.c.b16 %v363, %v360
  %v460 = vpack.c.b16 %v367, %v364
  %v461 = vpack.c.b16 %v368, %v365
  %v462 = vpack.c.b16 %v369, %v366
  %v463 = vpack.c.b16 %v373, %v370
  %v464 = vpack.c.b16 %v374, %v371
  %v465 = vpack.c.b16 %v375, %v372
  %v466 = vpack.c.b16 %v379, %v376
  %v467 = vpack.c.b16 %v380, %v377
  %v468 = vpack.c.b16 %v381, %v378
  %v469 = vpack.c.b16 %v385, %v382
  %v470 = vpack.c.b16 %v386, %v383
  %v471 = vpack.c.b16 %v387, %v384
  %v472 = vpack.c.b16 %v391, %v388
  %v473 = vpack.c.b16 %v392, %v389
  %v474 = vpack.c.b16 %v393, %v390
  %v475 = vpack.c.b16 %v397, %v394
  %v476 = vpack.c.b16 %v398, %v395
  %v477 = vpack.c.b16 %v399, %v396
  %v478 = vpack.c.b16 %v403, %v400
  %v479 = vpack.c.b16 %v404, %v401
  %v480 = vpack.c.b16 %v405, %v402
  %v481 = vpack.c.b16 %v409, %v406
  %v482 = vpack.c.b16 %v410, %v407
  %v483 = vpack.c.b16 %v411, %v408
  %v604 = vunpack.c.l.b16 %v117
  %v605 = vunpack.c.l.b16 %v118
  %v606 = vunpack.c.l.b16 %v119
  %v607 = vunpack.c.l.b16 %v120
  %v608 = vunpack.c.l.b16 %v121
  %v609 = vunpack.c.l.b16 %v122
  %v610 = vunpack.c.l.b16 %v123
  %v611 = vunpack.c.l.b16 %v124
  %v612 = vunpack.c.l.b16 %v125
  %v613 = vunpack.c.l.b16 %v126
  %v614 = vunpack.c.l.b16 %v127
  %v615 = vunpack.c.l.b16 %v128
  %v616 = vunpack.c.l.b16 %v129
  %v617 = vunpack.c.l.b16 %v130
  %v618 = vunpack.c.l.b16 %v131
  %v619 = vunpack.c.l.b16 %v132
  %v620 = vunpack.c.l.b16 %v133
  %v621 = vunpack.c.l.b16 %v134
  %v622 = vunpack.c.l.b16 %v135
  %v623 = vunpack.c.l.b16 %v136
  %v624 = vunpack.c.l.b16 %v137
  %v625 = vunpack.c.l.b16 %v138
  %v626 = vunpack.c.l.b16 %v139
  %v627 = vunpack.c.l.b16 %v140
  %v628 = vunpack.c.l.b16 %v141
  %v629 = vunpack.c.l.b16 %v142
  %v630 = vunpack.c.l.b16 %v143
  %v631 = vunpack.c.l.b16 %v144
  %v632 = vunpack.c.l.b16 %v145
  %v633 = vunpack.c.l.b16 %v146
  %v634 = vunpack.c.l.b16 %v147
  %v635 = vunpack.c.l.b16 %v148
  %v636 = vunpack.c.l.b16 %v149
  %v637 = vunpack.c.l.b16 %v150
  %v638 = vunpack.c.l.b16 %v151
  %v639 = vunpack.c.l.b16 %v152
  %v640 = vunpack.c.l.b16 %v153
  %v641 = vunpack.c.l.b16 %v154
  %v642 = vunpack.c.l.b16 %v155
  %v643 = vunpack.c.l.b16 %v156
  %v644 = vunpack.c.l.b16 %v157
  %v645 = vunpack.c.l.b16 %v158
  %v646 = vunpack.c.l.b16 %v159
  %v647 = vunpack.c.l.b16 %v160
  %v648 = vunpack.c.l.b16 %v161
  %v649 = vunpack.c.l.b16 %v162
  %v650 = vunpack.c.l.b16 %v163
  %v651 = vunpack.c.l.b16 %v164
  %v652 = vpack.c.b16 %v605, %v604
  %v653 = vpack.c.b16 %v607, %v606
  %v654 = vpack.c.b16 %v609, %v608
  %v655 = vpack.c.b16 %v611, %v610
  %v656 = vpack.c.b16 %v613, %v612
  %v657 = vpack.c.b16 %v615, %v614
  %v658 = vpack.c.b16 %v617, %v616
  %v659 = vpack.c.b16 %v619, %v618
  %v660 = vpack.c.b16 %v621, %v620
  %v661 = vpack.c.b16 %v623, %v622
  %v662 = vpack.c.b16 %v625, %v624
  %v663 = vpack.c.b16 %v627, %v626
  %v664 = vpack.c.b16 %v629, %v628
  %v665 = vpack.c.b16 %v631, %v630
  %v666 = vpack.c.b16 %v633, %v632
  %v667 = vpack.c.b16 %v635, %v634
  %v668 = vpack.c.b16 %v637, %v636
  %v669 = vpack.c.b16 %v639, %v638
  %v670 = vpack.c.b16 %v641, %v640
  %v671 = vpack.c.b16 %v643, %v642
  %v672 = vpack.c.b16 %v645, %v644
  %v673 = vpack.c.b16 %v647, %v646
  %v674 = vpack.c.b16 %v649, %v648
  %v675 = vpack.c.b16 %v651, %v650
  %700 = vmatprep.subr.bf16.mxu0 0
  %701 = vmatpush1.bf16.msra.mxu0 %v659
  %702 = vmatprep.subr.bf16.mxu0 0
  %703 = vmatpush1.bf16.msra.mxu0 %v658
  %704 = vmatprep.subr.bf16.mxu0 0
  %705 = vmatpush1.bf16.msra.mxu0 %v657
  %706 = vmatprep.subr.bf16.mxu0 0
  %707 = vmatpush1.bf16.msra.mxu0 %v656
  %708 = vmatprep.subr.bf16.mxu0 0
  %709 = vmatpush1.bf16.msra.mxu0 %v655
  %710 = vmatprep.subr.bf16.mxu0 0
  %711 = vmatpush1.bf16.msra.mxu0 %v654
  %712 = vmatprep.subr.bf16.mxu0 0
  %713 = vmatpush1.bf16.msra.mxu0 %v653
  %714 = vmatprep.subr.bf16.mxu0 0
  %715 = vmatpush1.bf16.msra.mxu0 %v652
  %716 = vmatprep.subr.bf16.mxu0 0
  %717 = vmatpush2.bf16.msra.mxu0 %v667
  %718 = vmatprep.subr.bf16.mxu0 0
  %719 = vmatpush2.bf16.msra.mxu0 %v666
  %720 = vmatprep.subr.bf16.mxu0 0
  %721 = vmatpush2.bf16.msra.mxu0 %v665
  %722 = vmatprep.subr.bf16.mxu0 0
  %723 = vmatpush2.bf16.msra.mxu0 %v664
  %724 = vmatprep.subr.bf16.mxu0 0
  %725 = vmatpush2.bf16.msra.mxu0 %v663
  %726 = vmatprep.subr.bf16.mxu0 0
  %727 = vmatpush2.bf16.msra.mxu0 %v662
  %728 = vmatprep.subr.bf16.mxu0 0
  %729 = vmatpush2.bf16.msra.mxu0 %v661
  %730 = vmatprep.subr.bf16.mxu0 0
  %731 = vmatpush2.bf16.msra.mxu0 %v660
  %732 = vmatprep.mubr.bf16.mxu0 %v413
  %733 = vmatmul.mubr.bf16.gmra.mxu0 %v412
  %v734 = vpop.f32.mrf.mxu0
  %v735 = vadd.f32 %v170, %v734
  %v736 = vpop.f32.mrf.mxu0
  %v737 = vpop.f32.mrf.mxu0
  %v738 = vadd.f32 %v170, %v737
  %v739 = vpop.f32.mrf.mxu0
  %740 = vmatprep.mubr.bf16.mxu0 %v416
  %741 = vmatmul.mubr.bf16.gmra.mxu0 %v415
  %v742 = vpop.f32.mrf.mxu0
  %v743 = vadd.f32 %v170, %v742
  %v744 = vpop.f32.mrf.mxu0
  %v745 = vpop.f32.mrf.mxu0
  %v746 = vadd.f32 %v170, %v745
  %v747 = vpop.f32.mrf.mxu0
  %748 = vmatprep.mubr.bf16.mxu0 %v419
  %749 = vmatmul.mubr.bf16.gmra.mxu0 %v418
  %v750 = vpop.f32.mrf.mxu0
  %v751 = vadd.f32 %v170, %v750
  %v752 = vpop.f32.mrf.mxu0
  %v753 = vpop.f32.mrf.mxu0
  %v754 = vadd.f32 %v170, %v753
  %v755 = vpop.f32.mrf.mxu0
  %756 = vmatprep.mubr.bf16.mxu0 %v422
  %757 = vmatmul.mubr.bf16.gmra.mxu0 %v421
  %v758 = vpop.f32.mrf.mxu0
  %v759 = vadd.f32 %v170, %v758
  %v760 = vpop.f32.mrf.mxu0
  %v761 = vpop.f32.mrf.mxu0
  %v762 = vadd.f32 %v170, %v761
  %v763 = vpop.f32.mrf.mxu0
  %764 = vmatprep.mubr.bf16.mxu0 %v425
  %765 = vmatmul.mubr.bf16.gmra.mxu0 %v424
  %v766 = vpop.f32.mrf.mxu0
  %v767 = vadd.f32 %v170, %v766
  %v768 = vpop.f32.mrf.mxu0
  %v769 = vpop.f32.mrf.mxu0
  %v770 = vadd.f32 %v170, %v769
  %v771 = vpop.f32.mrf.mxu0
  %772 = vmatprep.mubr.bf16.mxu0 %v428
  %773 = vmatmul.mubr.bf16.gmra.mxu0 %v427
  %v774 = vpop.f32.mrf.mxu0
  %v775 = vadd.f32 %v170, %v774
  %v776 = vpop.f32.mrf.mxu0
  %v777 = vpop.f32.mrf.mxu0
  %v778 = vadd.f32 %v170, %v777
  %v779 = vpop.f32.mrf.mxu0
  %780 = vmatprep.mubr.bf16.mxu0 %v431
  %781 = vmatmul.mubr.bf16.gmra.mxu0 %v430
  %v782 = vpop.f32.mrf.mxu0
  %v783 = vadd.f32 %v170, %v782
  %v784 = vpop.f32.mrf.mxu0
  %v785 = vpop.f32.mrf.mxu0
  %v786 = vadd.f32 %v170, %v785
  %v787 = vpop.f32.mrf.mxu0
  %788 = vmatprep.mubr.bf16.mxu0 %v434
  %789 = vmatmul.mubr.bf16.gmra.mxu0 %v433
  %v790 = vpop.f32.mrf.mxu0
  %v791 = vadd.f32 %v170, %v790
  %v792 = vpop.f32.mrf.mxu0
  %v793 = vpop.f32.mrf.mxu0
  %v794 = vadd.f32 %v170, %v793
  %v795 = vpop.f32.mrf.mxu0
  %796 = vmatprep.mubr.bf16.mxu0 %v437
  %797 = vmatmul.mubr.bf16.gmra.mxu0 %v436
  %v798 = vpop.f32.mrf.mxu0
  %v799 = vadd.f32 %v170, %v798
  %v800 = vpop.f32.mrf.mxu0
  %v801 = vpop.f32.mrf.mxu0
  %v802 = vadd.f32 %v170, %v801
  %v803 = vpop.f32.mrf.mxu0
  %804 = vmatprep.mubr.bf16.mxu0 %v440
  %805 = vmatmul.mubr.bf16.gmra.mxu0 %v439
  %v806 = vpop.f32.mrf.mxu0
  %v807 = vadd.f32 %v170, %v806
  %v808 = vpop.f32.mrf.mxu0
  %v809 = vpop.f32.mrf.mxu0
  %v810 = vadd.f32 %v170, %v809
  %v811 = vpop.f32.mrf.mxu0
  %812 = vmatprep.mubr.bf16.mxu0 %v443
  %813 = vmatmul.mubr.bf16.gmra.mxu0 %v442
  %v814 = vpop.f32.mrf.mxu0
  %v815 = vadd.f32 %v170, %v814
  %v816 = vpop.f32.mrf.mxu0
  %v817 = vpop.f32.mrf.mxu0
  %v818 = vadd.f32 %v170, %v817
  %v819 = vpop.f32.mrf.mxu0
  %820 = vmatprep.mubr.bf16.mxu0 %v446
  %821 = vmatmul.mubr.bf16.gmra.mxu0 %v445
  %v822 = vpop.f32.mrf.mxu0
  %v823 = vadd.f32 %v170, %v822
  %v824 = vpop.f32.mrf.mxu0
  %v825 = vpop.f32.mrf.mxu0
  %v826 = vadd.f32 %v170, %v825
  %v827 = vpop.f32.mrf.mxu0
  %828 = vmatprep.mubr.bf16.mxu0 %v449
  %829 = vmatmul.mubr.bf16.gmra.mxu0 %v448
  %v830 = vpop.f32.mrf.mxu0
  %v831 = vadd.f32 %v170, %v830
  %v832 = vpop.f32.mrf.mxu0
  %v833 = vpop.f32.mrf.mxu0
  %v834 = vadd.f32 %v170, %v833
  %v835 = vpop.f32.mrf.mxu0
  %836 = vmatprep.mubr.bf16.mxu0 %v452
  %837 = vmatmul.mubr.bf16.gmra.mxu0 %v451
  %v838 = vpop.f32.mrf.mxu0
  %v839 = vadd.f32 %v170, %v838
  %v840 = vpop.f32.mrf.mxu0
  %v841 = vpop.f32.mrf.mxu0
  %v842 = vadd.f32 %v170, %v841
  %v843 = vpop.f32.mrf.mxu0
  %844 = vmatprep.mubr.bf16.mxu0 %v455
  %845 = vmatmul.mubr.bf16.gmra.mxu0 %v454
  %v846 = vpop.f32.mrf.mxu0
  %v847 = vadd.f32 %v170, %v846
  %v848 = vpop.f32.mrf.mxu0
  %v849 = vpop.f32.mrf.mxu0
  %v850 = vadd.f32 %v170, %v849
  %v851 = vpop.f32.mrf.mxu0
  %852 = vmatprep.mubr.bf16.mxu0 %v458
  %853 = vmatmul.mubr.bf16.gmra.mxu0 %v457
  %v854 = vpop.f32.mrf.mxu0
  %v855 = vadd.f32 %v170, %v854
  %v856 = vpop.f32.mrf.mxu0
  %v857 = vpop.f32.mrf.mxu0
  %v858 = vadd.f32 %v170, %v857
  %v859 = vpop.f32.mrf.mxu0
  %860 = vmatprep.mubr.bf16.mxu0 %v461
  %861 = vmatmul.mubr.bf16.gmra.mxu0 %v460
  %v862 = vpop.f32.mrf.mxu0
  %v863 = vadd.f32 %v170, %v862
  %v864 = vpop.f32.mrf.mxu0
  %v865 = vpop.f32.mrf.mxu0
  %v866 = vadd.f32 %v170, %v865
  %v867 = vpop.f32.mrf.mxu0
  %868 = vmatprep.mubr.bf16.mxu0 %v464
  %869 = vmatmul.mubr.bf16.gmra.mxu0 %v463
  %v870 = vpop.f32.mrf.mxu0
  %v871 = vadd.f32 %v170, %v870
  %v872 = vpop.f32.mrf.mxu0
  %v873 = vpop.f32.mrf.mxu0
  %v874 = vadd.f32 %v170, %v873
  %v875 = vpop.f32.mrf.mxu0
  %876 = vmatprep.mubr.bf16.mxu0 %v467
  %877 = vmatmul.mubr.bf16.gmra.mxu0 %v466
  %v878 = vpop.f32.mrf.mxu0
  %v879 = vadd.f32 %v170, %v878
  %v880 = vpop.f32.mrf.mxu0
  %v881 = vpop.f32.mrf.mxu0
  %v882 = vadd.f32 %v170, %v881
  %v883 = vpop.f32.mrf.mxu0
  %884 = vmatprep.mubr.bf16.mxu0 %v470
  %885 = vmatmul.mubr.bf16.gmra.mxu0 %v469
  %v886 = vpop.f32.mrf.mxu0
  %v887 = vadd.f32 %v170, %v886
  %v888 = vpop.f32.mrf.mxu0
  %v889 = vpop.f32.mrf.mxu0
  %v890 = vadd.f32 %v170, %v889
  %v891 = vpop.f32.mrf.mxu0
  %892 = vmatprep.mubr.bf16.mxu0 %v473
  %893 = vmatmul.mubr.bf16.gmra.mxu0 %v472
  %v894 = vpop.f32.mrf.mxu0
  %v895 = vadd.f32 %v170, %v894
  %v896 = vpop.f32.mrf.mxu0
  %v897 = vpop.f32.mrf.mxu0
  %v898 = vadd.f32 %v170, %v897
  %v899 = vpop.f32.mrf.mxu0
  %900 = vmatprep.mubr.bf16.mxu0 %v476
  %901 = vmatmul.mubr.bf16.gmra.mxu0 %v475
  %v902 = vpop.f32.mrf.mxu0
  %v903 = vadd.f32 %v170, %v902
  %v904 = vpop.f32.mrf.mxu0
  %v905 = vpop.f32.mrf.mxu0
  %v906 = vadd.f32 %v170, %v905
  %v907 = vpop.f32.mrf.mxu0
  %908 = vmatprep.mubr.bf16.mxu0 %v479
  %909 = vmatmul.mubr.bf16.gmra.mxu0 %v478
  %v910 = vpop.f32.mrf.mxu0
  %v911 = vadd.f32 %v170, %v910
  %v912 = vpop.f32.mrf.mxu0
  %v913 = vpop.f32.mrf.mxu0
  %v914 = vadd.f32 %v170, %v913
  %v915 = vpop.f32.mrf.mxu0
  %916 = vmatprep.mubr.bf16.mxu0 %v482
  %917 = vmatmul.mubr.bf16.gmra.mxu0 %v481
  %v918 = vpop.f32.mrf.mxu0
  %v919 = vadd.f32 %v170, %v918
  %v920 = vpop.f32.mrf.mxu0
  %v921 = vpop.f32.mrf.mxu0
  %v922 = vadd.f32 %v170, %v921
  %v923 = vpop.f32.mrf.mxu0
  %924 = vdwg.mxu0
  %925 = vmatprep.subr.bf16.mxu0 0
  %926 = vmatpush1.bf16.msra.mxu0 %v675
  %927 = vmatprep.subr.bf16.mxu0 0
  %928 = vmatpush1.bf16.msra.mxu0 %v674
  %929 = vmatprep.subr.bf16.mxu0 0
  %930 = vmatpush1.bf16.msra.mxu0 %v673
  %931 = vmatprep.subr.bf16.mxu0 0
  %932 = vmatpush1.bf16.msra.mxu0 %v672
  %933 = vmatprep.subr.bf16.mxu0 0
  %934 = vmatpush1.bf16.msra.mxu0 %v671
  %935 = vmatprep.subr.bf16.mxu0 0
  %936 = vmatpush1.bf16.msra.mxu0 %v670
  %937 = vmatprep.subr.bf16.mxu0 0
  %938 = vmatpush1.bf16.msra.mxu0 %v669
  %939 = vmatprep.subr.bf16.mxu0 0
  %940 = vmatpush1.bf16.msra.mxu0 %v668
  %941 = vmatprep.subr.bf16.mxu0 0
  %942 = vmatpush2.bf16.msra.mxu0 0
  %943 = vmatprep.subr.bf16.mxu0 0
  %944 = vmatpush2.bf16.msra.mxu0 0
  %945 = vmatprep.subr.bf16.mxu0 0
  %946 = vmatpush2.bf16.msra.mxu0 0
  %947 = vmatprep.subr.bf16.mxu0 0
  %948 = vmatpush2.bf16.msra.mxu0 0
  %949 = vmatprep.subr.bf16.mxu0 0
  %950 = vmatpush2.bf16.msra.mxu0 0
  %951 = vmatprep.subr.bf16.mxu0 0
  %952 = vmatpush2.bf16.msra.mxu0 0
  %953 = vmatprep.subr.bf16.mxu0 0
  %954 = vmatpush2.bf16.msra.mxu0 0
  %955 = vmatprep.subr.bf16.mxu0 0
  %956 = vmatpush2.bf16.msra.mxu0 0
  %957 = vmatprep.mubr.bf16.mxu0 0
  %958 = vmatmul.mubr.bf16.gmra.mxu0 %v414
  %v959 = vpop.f32.mrf.mxu0
  %v960 = vadd.f32 %v735, %v959
  %v961 = vpop.f32.mrf.mxu0
  %v962 = vpop.f32.mrf.mxu0
  %v963 = vadd.f32 %v738, %v962
  %v964 = vpop.f32.mrf.mxu0
  %965 = vmatprep.mubr.bf16.mxu0 0
  %966 = vmatmul.mubr.bf16.gmra.mxu0 %v417
  %v967 = vpop.f32.mrf.mxu0
  %v968 = vadd.f32 %v743, %v967
  %v969 = vpop.f32.mrf.mxu0
  %v970 = vpop.f32.mrf.mxu0
  %v971 = vadd.f32 %v746, %v970
  %v972 = vpop.f32.mrf.mxu0
  %973 = vmatprep.mubr.bf16.mxu0 0
  %974 = vmatmul.mubr.bf16.gmra.mxu0 %v420
  %v975 = vpop.f32.mrf.mxu0
  %v976 = vadd.f32 %v751, %v975
  %v977 = vpop.f32.mrf.mxu0
  %v978 = vpop.f32.mrf.mxu0
  %v979 = vadd.f32 %v754, %v978
  %v980 = vpop.f32.mrf.mxu0
  %981 = vmatprep.mubr.bf16.mxu0 0
  %982 = vmatmul.mubr.bf16.gmra.mxu0 %v423
  %v983 = vpop.f32.mrf.mxu0
  %v984 = vadd.f32 %v759, %v983
  %v985 = vpop.f32.mrf.mxu0
  %v986 = vpop.f32.mrf.mxu0
  %v987 = vadd.f32 %v762, %v986
  %v988 = vpop.f32.mrf.mxu0
  %989 = vmatprep.mubr.bf16.mxu0 0
  %990 = vmatmul.mubr.bf16.gmra.mxu0 %v426
  %v991 = vpop.f32.mrf.mxu0
  %v992 = vadd.f32 %v767, %v991
  %v993 = vpop.f32.mrf.mxu0
  %v994 = vpop.f32.mrf.mxu0
  %v995 = vadd.f32 %v770, %v994
  %v996 = vpop.f32.mrf.mxu0
  %997 = vmatprep.mubr.bf16.mxu0 0
  %998 = vmatmul.mubr.bf16.gmra.mxu0 %v429
  %v999 = vpop.f32.mrf.mxu0
  %v1000 = vadd.f32 %v775, %v999
  %v1001 = vpop.f32.mrf.mxu0
  %v1002 = vpop.f32.mrf.mxu0
  %v1003 = vadd.f32 %v778, %v1002
  %v1004 = vpop.f32.mrf.mxu0
  %1005 = vmatprep.mubr.bf16.mxu0 0
  %1006 = vmatmul.mubr.bf16.gmra.mxu0 %v432
  %v1007 = vpop.f32.mrf.mxu0
  %v1008 = vadd.f32 %v783, %v1007
  %v1009 = vpop.f32.mrf.mxu0
  %v1010 = vpop.f32.mrf.mxu0
  %v1011 = vadd.f32 %v786, %v1010
  %v1012 = vpop.f32.mrf.mxu0
  %1013 = vmatprep.mubr.bf16.mxu0 0
  %1014 = vmatmul.mubr.bf16.gmra.mxu0 %v435
  %v1015 = vpop.f32.mrf.mxu0
  %v1016 = vadd.f32 %v791, %v1015
  %v1017 = vpop.f32.mrf.mxu0
  %v1018 = vpop.f32.mrf.mxu0
  %v1019 = vadd.f32 %v794, %v1018
  %v1020 = vpop.f32.mrf.mxu0
  %1021 = vmatprep.mubr.bf16.mxu0 0
  %1022 = vmatmul.mubr.bf16.gmra.mxu0 %v438
  %v1023 = vpop.f32.mrf.mxu0
  %v1024 = vadd.f32 %v799, %v1023
  %v1025 = vpop.f32.mrf.mxu0
  %v1026 = vpop.f32.mrf.mxu0
  %v1027 = vadd.f32 %v802, %v1026
  %v1028 = vpop.f32.mrf.mxu0
  %1029 = vmatprep.mubr.bf16.mxu0 0
  %1030 = vmatmul.mubr.bf16.gmra.mxu0 %v441
  %v1031 = vpop.f32.mrf.mxu0
  %v1032 = vadd.f32 %v807, %v1031
  %v1033 = vpop.f32.mrf.mxu0
  %v1034 = vpop.f32.mrf.mxu0
  %v1035 = vadd.f32 %v810, %v1034
  %v1036 = vpop.f32.mrf.mxu0
  %1037 = vmatprep.mubr.bf16.mxu0 0
  %1038 = vmatmul.mubr.bf16.gmra.mxu0 %v444
  %v1039 = vpop.f32.mrf.mxu0
  %v1040 = vadd.f32 %v815, %v1039
  %v1041 = vpop.f32.mrf.mxu0
  %v1042 = vpop.f32.mrf.mxu0
  %v1043 = vadd.f32 %v818, %v1042
  %v1044 = vpop.f32.mrf.mxu0
  %1045 = vmatprep.mubr.bf16.mxu0 0
  %1046 = vmatmul.mubr.bf16.gmra.mxu0 %v447
  %v1047 = vpop.f32.mrf.mxu0
  %v1048 = vadd.f32 %v823, %v1047
  %v1049 = vpop.f32.mrf.mxu0
  %v1050 = vpop.f32.mrf.mxu0
  %v1051 = vadd.f32 %v826, %v1050
  %v1052 = vpop.f32.mrf.mxu0
  %1053 = vmatprep.mubr.bf16.mxu0 0
  %1054 = vmatmul.mubr.bf16.gmra.mxu0 %v450
  %v1055 = vpop.f32.mrf.mxu0
  %v1056 = vadd.f32 %v831, %v1055
  %v1057 = vpop.f32.mrf.mxu0
  %v1058 = vpop.f32.mrf.mxu0
  %v1059 = vadd.f32 %v834, %v1058
  %v1060 = vpop.f32.mrf.mxu0
  %1061 = vmatprep.mubr.bf16.mxu0 0
  %1062 = vmatmul.mubr.bf16.gmra.mxu0 %v453
  %v1063 = vpop.f32.mrf.mxu0
  %v1064 = vadd.f32 %v839, %v1063
  %v1065 = vpop.f32.mrf.mxu0
  %v1066 = vpop.f32.mrf.mxu0
  %v1067 = vadd.f32 %v842, %v1066
  %v1068 = vpop.f32.mrf.mxu0
  %1069 = vmatprep.mubr.bf16.mxu0 0
  %1070 = vmatmul.mubr.bf16.gmra.mxu0 %v456
  %v1071 = vpop.f32.mrf.mxu0
  %v1072 = vadd.f32 %v847, %v1071
  %v1073 = vpop.f32.mrf.mxu0
  %v1074 = vpop.f32.mrf.mxu0
  %v1075 = vadd.f32 %v850, %v1074
  %v1076 = vpop.f32.mrf.mxu0
  %1077 = vmatprep.mubr.bf16.mxu0 0
  %1078 = vmatmul.mubr.bf16.gmra.mxu0 %v459
  %v1079 = vpop.f32.mrf.mxu0
  %v1080 = vadd.f32 %v855, %v1079
  %v1081 = vpop.f32.mrf.mxu0
  %v1082 = vpop.f32.mrf.mxu0
  %v1083 = vadd.f32 %v858, %v1082
  %v1084 = vpop.f32.mrf.mxu0
  %1085 = vmatprep.mubr.bf16.mxu0 0
  %1086 = vmatmul.mubr.bf16.gmra.mxu0 %v462
  %v1087 = vpop.f32.mrf.mxu0
  %v1088 = vadd.f32 %v863, %v1087
  %v1089 = vpop.f32.mrf.mxu0
  %v1090 = vpop.f32.mrf.mxu0
  %v1091 = vadd.f32 %v866, %v1090
  %v1092 = vpop.f32.mrf.mxu0
  %1093 = vmatprep.mubr.bf16.mxu0 0
  %1094 = vmatmul.mubr.bf16.gmra.mxu0 %v465
  %v1095 = vpop.f32.mrf.mxu0
  %v1096 = vadd.f32 %v871, %v1095
  %v1097 = vpop.f32.mrf.mxu0
  %v1098 = vpop.f32.mrf.mxu0
  %v1099 = vadd.f32 %v874, %v1098
  %v1100 = vpop.f32.mrf.mxu0
  %1101 = vmatprep.mubr.bf16.mxu0 0
  %1102 = vmatmul.mubr.bf16.gmra.mxu0 %v468
  %v1103 = vpop.f32.mrf.mxu0
  %v1104 = vadd.f32 %v879, %v1103
  %v1105 = vpop.f32.mrf.mxu0
  %v1106 = vpop.f32.mrf.mxu0
  %v1107 = vadd.f32 %v882, %v1106
  %v1108 = vpop.f32.mrf.mxu0
  %1109 = vmatprep.mubr.bf16.mxu0 0
  %1110 = vmatmul.mubr.bf16.gmra.mxu0 %v471
  %v1111 = vpop.f32.mrf.mxu0
  %v1112 = vadd.f32 %v887, %v1111
  %v1113 = vpop.f32.mrf.mxu0
  %v1114 = vpop.f32.mrf.mxu0
  %v1115 = vadd.f32 %v890, %v1114
  %v1116 = vpop.f32.mrf.mxu0
  %1117 = vmatprep.mubr.bf16.mxu0 0
  %1118 = vmatmul.mubr.bf16.gmra.mxu0 %v474
  %v1119 = vpop.f32.mrf.mxu0
  %v1120 = vadd.f32 %v895, %v1119
  %v1121 = vpop.f32.mrf.mxu0
  %v1122 = vpop.f32.mrf.mxu0
  %v1123 = vadd.f32 %v898, %v1122
  %v1124 = vpop.f32.mrf.mxu0
  %1125 = vmatprep.mubr.bf16.mxu0 0
  %1126 = vmatmul.mubr.bf16.gmra.mxu0 %v477
  %v1127 = vpop.f32.mrf.mxu0
  %v1128 = vadd.f32 %v903, %v1127
  %v1129 = vpop.f32.mrf.mxu0
  %v1130 = vpop.f32.mrf.mxu0
  %v1131 = vadd.f32 %v906, %v1130
  %v1132 = vpop.f32.mrf.mxu0
  %1133 = vmatprep.mubr.bf16.mxu0 0
  %1134 = vmatmul.mubr.bf16.gmra.mxu0 %v480
  %v1135 = vpop.f32.mrf.mxu0
  %v1136 = vadd.f32 %v911, %v1135
  %v1137 = vpop.f32.mrf.mxu0
  %v1138 = vpop.f32.mrf.mxu0
  %v1139 = vadd.f32 %v914, %v1138
  %v1140 = vpop.f32.mrf.mxu0
  %1141 = vmatprep.mubr.bf16.mxu0 0
  %1142 = vmatmul.mubr.bf16.gmra.mxu0 %v483
  %v1143 = vpop.f32.mrf.mxu0
  %v1144 = vadd.f32 %v919, %v1143
  %v1145 = vpop.f32.mrf.mxu0
  %v1146 = vpop.f32.mrf.mxu0
  %v1147 = vadd.f32 %v922, %v1146
  %v1148 = vpop.f32.mrf.mxu0
  %1149 = vdwg.mxu0
  %v1150 = vpack.c.bf16 %v963, %v960
  %v1151 = vpack.c.bf16 %v971, %v968
  %v1152 = vpack.c.bf16 %v979, %v976
  %v1153 = vpack.c.bf16 %v987, %v984
  %v1154 = vpack.c.bf16 %v995, %v992
  %v1155 = vpack.c.bf16 %v1003, %v1000
  %v1156 = vpack.c.bf16 %v1011, %v1008
  %v1157 = vpack.c.bf16 %v1019, %v1016
  %v1158 = vpack.c.bf16 %v1027, %v1024
  %v1159 = vpack.c.bf16 %v1035, %v1032
  %v1160 = vpack.c.bf16 %v1043, %v1040
  %v1161 = vpack.c.bf16 %v1051, %v1048
  %v1162 = vpack.c.bf16 %v1059, %v1056
  %v1163 = vpack.c.bf16 %v1067, %v1064
  %v1164 = vpack.c.bf16 %v1075, %v1072
  %v1165 = vpack.c.bf16 %v1083, %v1080
  %v1166 = vpack.c.bf16 %v1091, %v1088
  %v1167 = vpack.c.bf16 %v1099, %v1096
  %v1168 = vpack.c.bf16 %v1107, %v1104
  %v1169 = vpack.c.bf16 %v1115, %v1112
  %v1170 = vpack.c.bf16 %v1123, %v1120
  %v1171 = vpack.c.bf16 %v1131, %v1128
  %v1172 = vpack.c.bf16 %v1139, %v1136
  %v1173 = vpack.c.bf16 %v1147, %v1144
  %v1174 = vld [vmem:[%s3] sm:$0xf]
  %v1175 = vld [vmem:[%s3 + $0x4] sm:$0xf]
  %v1178 = vunpack.c.l.b16 %v1174
  %v1179 = vunpack.c.l.b16 %v1175
  %v1180 = vpack.c.b16 %v1179, %v1178
  %vm1182 = vcmask 130048
  %v1184 = vsel %vm1182, %v1150, 0
  %v1187 = vsel %vm1182, %v1151, 0
  %v1190 = vsel %vm1182, %v1152, 0
  %v1193 = vsel %vm1182, %v1153, 0
  %v1196 = vsel %vm1182, %v1154, 0
  %v1199 = vsel %vm1182, %v1155, 0
  %v1202 = vsel %vm1182, %v1156, 0
  %v1205 = vsel %vm1182, %v1157, 0
  %v1208 = vsel %vm1182, %v1158, 0
  %v1211 = vsel %vm1182, %v1159, 0
  %v1214 = vsel %vm1182, %v1160, 0
  %v1217 = vsel %vm1182, %v1161, 0
  %v1220 = vsel %vm1182, %v1162, 0
  %v1223 = vsel %vm1182, %v1163, 0
  %v1226 = vsel %vm1182, %v1164, 0
  %v1229 = vsel %vm1182, %v1165, 0
  %v1232 = vsel %vm1182, %v1166, 0
  %v1235 = vsel %vm1182, %v1167, 0
  %v1238 = vsel %vm1182, %v1168, 0
  %v1241 = vsel %vm1182, %v1169, 0
  %v1244 = vsel %vm1182, %v1170, 0
  %v1247 = vsel %vm1182, %v1171, 0
  %v1250 = vsel %vm1182, %v1172, 0
  %v1253 = vsel %vm1182, %v1173, 0
  %1255 = vmatprep.subr.bf16.mxu0 0
  %1256 = vmatpush1.bf16.msra.mxu0 0
  %1257 = vmatprep.subr.bf16.mxu0 0
  %1258 = vmatpush1.bf16.msra.mxu0 0
  %1259 = vmatprep.subr.bf16.mxu0 0
  %1260 = vmatpush1.bf16.msra.mxu0 0
  %1261 = vmatprep.subr.bf16.mxu0 0
  %1262 = vmatpush1.bf16.msra.mxu0 0
  %1263 = vmatprep.subr.bf16.mxu0 0
  %1264 = vmatpush1.bf16.msra.mxu0 0
  %1265 = vmatprep.subr.bf16.mxu0 0
  %1266 = vmatpush1.bf16.msra.mxu0 0
  %1267 = vmatprep.subr.bf16.mxu0 0
  %1268 = vmatpush1.bf16.msra.mxu0 0
  %1269 = vmatprep.subr.bf16.mxu0 0
  %1270 = vmatpush1.bf16.msra.mxu0 %v1180
  %1271 = vmatprep.subr.bf16.mxu0 0
  %1272 = vmatpush2.bf16.msra.mxu0 0
  %1273 = vmatprep.subr.bf16.mxu0 0
  %1274 = vmatpush2.bf16.msra.mxu0 0
  %1275 = vmatprep.subr.bf16.mxu0 0
  %1276 = vmatpush2.bf16.msra.mxu0 0
  %1277 = vmatprep.subr.bf16.mxu0 0
  %1278 = vmatpush2.bf16.msra.mxu0 0
  %1279 = vmatprep.subr.bf16.mxu0 0
  %1280 = vmatpush2.bf16.msra.mxu0 0
  %1281 = vmatprep.subr.bf16.mxu0 0
  %1282 = vmatpush2.bf16.msra.mxu0 0
  %1283 = vmatprep.subr.bf16.mxu0 0
  %1284 = vmatpush2.bf16.msra.mxu0 0
  %1285 = vmatprep.subr.bf16.mxu0 0
  %1286 = vmatpush2.bf16.msra.mxu0 0
  %1287 = vmatprep.mubr.bf16.mxu0 0
  %1288 = vmatmul.mubr.bf16.gmra.mxu0 %v1184
  %v1289 = vpop.f32.mrf.mxu0
  %v1290 = vadd.f32 0.0, %v1289
  %v1291 = vpop.f32.mrf.mxu0
  %v1292 = vpop.f32.mrf.mxu0
  %v1293 = vadd.f32 0.0, %v1292
  %v1294 = vpop.f32.mrf.mxu0
  %1295 = vmatprep.mubr.bf16.mxu0 0
  %1296 = vmatmul.mubr.bf16.gmra.mxu0 %v1187
  %v1297 = vpop.f32.mrf.mxu0
  %v1298 = vadd.f32 0.0, %v1297
  %v1299 = vpop.f32.mrf.mxu0
  %v1300 = vpop.f32.mrf.mxu0
  %v1301 = vadd.f32 0.0, %v1300
  %v1302 = vpop.f32.mrf.mxu0
  %1303 = vmatprep.mubr.bf16.mxu0 0
  %1304 = vmatmul.mubr.bf16.gmra.mxu0 %v1190
  %v1305 = vpop.f32.mrf.mxu0
  %v1306 = vadd.f32 0.0, %v1305
  %v1307 = vpop.f32.mrf.mxu0
  %v1308 = vpop.f32.mrf.mxu0
  %v1309 = vadd.f32 0.0, %v1308
  %v1310 = vpop.f32.mrf.mxu0
  %1311 = vmatprep.mubr.bf16.mxu0 0
  %1312 = vmatmul.mubr.bf16.gmra.mxu0 %v1193
  %v1313 = vpop.f32.mrf.mxu0
  %v1314 = vadd.f32 0.0, %v1313
  %v1315 = vpop.f32.mrf.mxu0
  %v1316 = vpop.f32.mrf.mxu0
  %v1317 = vadd.f32 0.0, %v1316
  %v1318 = vpop.f32.mrf.mxu0
  %1319 = vmatprep.mubr.bf16.mxu0 0
  %1320 = vmatmul.mubr.bf16.gmra.mxu0 %v1196
  %v1321 = vpop.f32.mrf.mxu0
  %v1322 = vadd.f32 0.0, %v1321
  %v1323 = vpop.f32.mrf.mxu0
  %v1324 = vpop.f32.mrf.mxu0
  %v1325 = vadd.f32 0.0, %v1324
  %v1326 = vpop.f32.mrf.mxu0
  %1327 = vmatprep.mubr.bf16.mxu0 0
  %1328 = vmatmul.mubr.bf16.gmra.mxu0 %v1199
  %v1329 = vpop.f32.mrf.mxu0
  %v1330 = vadd.f32 0.0, %v1329
  %v1331 = vpop.f32.mrf.mxu0
  %v1332 = vpop.f32.mrf.mxu0
  %v1333 = vadd.f32 0.0, %v1332
  %v1334 = vpop.f32.mrf.mxu0
  %1335 = vmatprep.mubr.bf16.mxu0 0
  %1336 = vmatmul.mubr.bf16.gmra.mxu0 %v1202
  %v1337 = vpop.f32.mrf.mxu0
  %v1338 = vadd.f32 0.0, %v1337
  %v1339 = vpop.f32.mrf.mxu0
  %v1340 = vpop.f32.mrf.mxu0
  %v1341 = vadd.f32 0.0, %v1340
  %v1342 = vpop.f32.mrf.mxu0
  %1343 = vmatprep.mubr.bf16.mxu0 0
  %1344 = vmatmul.mubr.bf16.gmra.mxu0 %v1205
  %v1345 = vpop.f32.mrf.mxu0
  %v1346 = vadd.f32 0.0, %v1345
  %v1347 = vpop.f32.mrf.mxu0
  %v1348 = vpop.f32.mrf.mxu0
  %v1349 = vadd.f32 0.0, %v1348
  %v1350 = vpop.f32.mrf.mxu0
  %1351 = vmatprep.mubr.bf16.mxu0 0
  %1352 = vmatmul.mubr.bf16.gmra.mxu0 %v1208
  %v1353 = vpop.f32.mrf.mxu0
  %v1354 = vadd.f32 0.0, %v1353
  %v1355 = vpop.f32.mrf.mxu0
  %v1356 = vpop.f32.mrf.mxu0
  %v1357 = vadd.f32 0.0, %v1356
  %v1358 = vpop.f32.mrf.mxu0
  %1359 = vmatprep.mubr.bf16.mxu0 0
  %1360 = vmatmul.mubr.bf16.gmra.mxu0 %v1211
  %v1361 = vpop.f32.mrf.mxu0
  %v1362 = vadd.f32 0.0, %v1361
  %v1363 = vpop.f32.mrf.mxu0
  %v1364 = vpop.f32.mrf.mxu0
  %v1365 = vadd.f32 0.0, %v1364
  %v1366 = vpop.f32.mrf.mxu0
  %1367 = vmatprep.mubr.bf16.mxu0 0
  %1368 = vmatmul.mubr.bf16.gmra.mxu0 %v1214
  %v1369 = vpop.f32.mrf.mxu0
  %v1370 = vadd.f32 0.0, %v1369
  %v1371 = vpop.f32.mrf.mxu0
  %v1372 = vpop.f32.mrf.mxu0
  %v1373 = vadd.f32 0.0, %v1372
  %v1374 = vpop.f32.mrf.mxu0
  %1375 = vmatprep.mubr.bf16.mxu0 0
  %1376 = vmatmul.mubr.bf16.gmra.mxu0 %v1217
  %v1377 = vpop.f32.mrf.mxu0
  %v1378 = vadd.f32 0.0, %v1377
  %v1379 = vpop.f32.mrf.mxu0
  %v1380 = vpop.f32.mrf.mxu0
  %v1381 = vadd.f32 0.0, %v1380
  %v1382 = vpop.f32.mrf.mxu0
  %1383 = vmatprep.mubr.bf16.mxu0 0
  %1384 = vmatmul.mubr.bf16.gmra.mxu0 %v1220
  %v1385 = vpop.f32.mrf.mxu0
  %v1386 = vadd.f32 0.0, %v1385
  %v1387 = vpop.f32.mrf.mxu0
  %v1388 = vpop.f32.mrf.mxu0
  %v1389 = vadd.f32 0.0, %v1388
  %v1390 = vpop.f32.mrf.mxu0
  %1391 = vmatprep.mubr.bf16.mxu0 0
  %1392 = vmatmul.mubr.bf16.gmra.mxu0 %v1223
  %v1393 = vpop.f32.mrf.mxu0
  %v1394 = vadd.f32 0.0, %v1393
  %v1395 = vpop.f32.mrf.mxu0
  %v1396 = vpop.f32.mrf.mxu0
  %v1397 = vadd.f32 0.0, %v1396
  %v1398 = vpop.f32.mrf.mxu0
  %1399 = vmatprep.mubr.bf16.mxu0 0
  %1400 = vmatmul.mubr.bf16.gmra.mxu0 %v1226
  %v1401 = vpop.f32.mrf.mxu0
  %v1402 = vadd.f32 0.0, %v1401
  %v1403 = vpop.f32.mrf.mxu0
  %v1404 = vpop.f32.mrf.mxu0
  %v1405 = vadd.f32 0.0, %v1404
  %v1406 = vpop.f32.mrf.mxu0
  %1407 = vmatprep.mubr.bf16.mxu0 0
  %1408 = vmatmul.mubr.bf16.gmra.mxu0 %v1229
  %v1409 = vpop.f32.mrf.mxu0
  %v1410 = vadd.f32 0.0, %v1409
  %v1411 = vpop.f32.mrf.mxu0
  %v1412 = vpop.f32.mrf.mxu0
  %v1413 = vadd.f32 0.0, %v1412
  %v1414 = vpop.f32.mrf.mxu0
  %1415 = vmatprep.mubr.bf16.mxu0 0
  %1416 = vmatmul.mubr.bf16.gmra.mxu0 %v1232
  %v1417 = vpop.f32.mrf.mxu0
  %v1418 = vadd.f32 0.0, %v1417
  %v1419 = vpop.f32.mrf.mxu0
  %v1420 = vpop.f32.mrf.mxu0
  %v1421 = vadd.f32 0.0, %v1420
  %v1422 = vpop.f32.mrf.mxu0
  %1423 = vmatprep.mubr.bf16.mxu0 0
  %1424 = vmatmul.mubr.bf16.gmra.mxu0 %v1235
  %v1425 = vpop.f32.mrf.mxu0
  %v1426 = vadd.f32 0.0, %v1425
  %v1427 = vpop.f32.mrf.mxu0
  %v1428 = vpop.f32.mrf.mxu0
  %v1429 = vadd.f32 0.0, %v1428
  %v1430 = vpop.f32.mrf.mxu0
  %1431 = vmatprep.mubr.bf16.mxu0 0
  %1432 = vmatmul.mubr.bf16.gmra.mxu0 %v1238
  %v1433 = vpop.f32.mrf.mxu0
  %v1434 = vadd.f32 0.0, %v1433
  %v1435 = vpop.f32.mrf.mxu0
  %v1436 = vpop.f32.mrf.mxu0
  %v1437 = vadd.f32 0.0, %v1436
  %v1438 = vpop.f32.mrf.mxu0
  %1439 = vmatprep.mubr.bf16.mxu0 0
  %1440 = vmatmul.mubr.bf16.gmra.mxu0 %v1241
  %v1441 = vpop.f32.mrf.mxu0
  %v1442 = vadd.f32 0.0, %v1441
  %v1443 = vpop.f32.mrf.mxu0
  %v1444 = vpop.f32.mrf.mxu0
  %v1445 = vadd.f32 0.0, %v1444
  %v1446 = vpop.f32.mrf.mxu0
  %1447 = vmatprep.mubr.bf16.mxu0 0
  %1448 = vmatmul.mubr.bf16.gmra.mxu0 %v1244
  %v1449 = vpop.f32.mrf.mxu0
  %v1450 = vadd.f32 0.0, %v1449
  %v1451 = vpop.f32.mrf.mxu0
  %v1452 = vpop.f32.mrf.mxu0
  %v1453 = vadd.f32 0.0, %v1452
  %v1454 = vpop.f32.mrf.mxu0
  %1455 = vmatprep.mubr.bf16.mxu0 0
  %1456 = vmatmul.mubr.bf16.gmra.mxu0 %v1247
  %v1457 = vpop.f32.mrf.mxu0
  %v1458 = vadd.f32 0.0, %v1457
  %v1459 = vpop.f32.mrf.mxu0
  %v1460 = vpop.f32.mrf.mxu0
  %v1461 = vadd.f32 0.0, %v1460
  %v1462 = vpop.f32.mrf.mxu0
  %1463 = vmatprep.mubr.bf16.mxu0 0
  %1464 = vmatmul.mubr.bf16.gmra.mxu0 %v1250
  %v1465 = vpop.f32.mrf.mxu0
  %v1466 = vadd.f32 0.0, %v1465
  %v1467 = vpop.f32.mrf.mxu0
  %v1468 = vpop.f32.mrf.mxu0
  %v1469 = vadd.f32 0.0, %v1468
  %v1470 = vpop.f32.mrf.mxu0
  %1471 = vmatprep.mubr.bf16.mxu0 0
  %1472 = vmatmul.mubr.bf16.gmra.mxu0 %v1253
  %v1473 = vpop.f32.mrf.mxu0
  %v1474 = vadd.f32 0.0, %v1473
  %v1475 = vpop.f32.mrf.mxu0
  %v1476 = vpop.f32.mrf.mxu0
  %v1477 = vadd.f32 0.0, %v1476
  %v1478 = vpop.f32.mrf.mxu0
  %1479 = vdwg.mxu0
  %v1480 = vpack.c.bf16 %v1293, %v1290
  %v1481 = vpack.c.bf16 %v1301, %v1298
  %v1482 = vpack.c.bf16 %v1309, %v1306
  %v1483 = vpack.c.bf16 %v1317, %v1314
  %v1484 = vpack.c.bf16 %v1325, %v1322
  %v1485 = vpack.c.bf16 %v1333, %v1330
  %v1486 = vpack.c.bf16 %v1341, %v1338
  %v1487 = vpack.c.bf16 %v1349, %v1346
  %v1488 = vpack.c.bf16 %v1357, %v1354
  %v1489 = vpack.c.bf16 %v1365, %v1362
  %v1490 = vpack.c.bf16 %v1373, %v1370
  %v1491 = vpack.c.bf16 %v1381, %v1378
  %v1492 = vpack.c.bf16 %v1389, %v1386
  %v1493 = vpack.c.bf16 %v1397, %v1394
  %v1494 = vpack.c.bf16 %v1405, %v1402
  %v1495 = vpack.c.bf16 %v1413, %v1410
  %v1496 = vpack.c.bf16 %v1421, %v1418
  %v1497 = vpack.c.bf16 %v1429, %v1426
  %v1498 = vpack.c.bf16 %v1437, %v1434
  %v1499 = vpack.c.bf16 %v1445, %v1442
  %v1500 = vpack.c.bf16 %v1453, %v1450
  %v1501 = vpack.c.bf16 %v1461, %v1458
  %v1502 = vpack.c.bf16 %v1469, %v1466
  %v1503 = vpack.c.bf16 %v1477, %v1474
  %v1504 = vld [vmem:[%s4] sm:$0x1]
  %v1506 = vlaneseq
  %v1507 = vshrl.u32 %v1506, 7
  %v1508 = vsub.s32 0, %v1507
  %v1509 = vrot.slane %v1504, %v1508
  %1511 = vmatprep.subr.bf16.mxu0 0
  %1512 = vmatpush1.bf16.msra.mxu0 %v1487
  %1513 = vmatprep.subr.bf16.mxu0 0
  %1514 = vmatpush1.bf16.msra.mxu0 %v1486
  %1515 = vmatprep.subr.bf16.mxu0 0
  %1516 = vmatpush1.bf16.msra.mxu0 %v1485
  %1517 = vmatprep.subr.bf16.mxu0 0
  %1518 = vmatpush1.bf16.msra.mxu0 %v1484
  %1519 = vmatprep.subr.bf16.mxu0 0
  %1520 = vmatpush1.bf16.msra.mxu0 %v1483
  %1521 = vmatprep.subr.bf16.mxu0 0
  %1522 = vmatpush1.bf16.msra.mxu0 %v1482
  %1523 = vmatprep.subr.bf16.mxu0 0
  %1524 = vmatpush1.bf16.msra.mxu0 %v1481
  %1525 = vmatprep.subr.bf16.mxu0 0
  %1526 = vmatpush1.bf16.msra.mxu0 %v1480
  %1527 = vmatprep.subr.bf16.mxu0 0
  %1528 = vmatpush2.bf16.msra.mxu0 %v1495
  %1529 = vmatprep.subr.bf16.mxu0 0
  %1530 = vmatpush2.bf16.msra.mxu0 %v1494
  %1531 = vmatprep.subr.bf16.mxu0 0
  %1532 = vmatpush2.bf16.msra.mxu0 %v1493
  %1533 = vmatprep.subr.bf16.mxu0 0
  %1534 = vmatpush2.bf16.msra.mxu0 %v1492
  %1535 = vmatprep.subr.bf16.mxu0 0
  %1536 = vmatpush2.bf16.msra.mxu0 %v1491
  %1537 = vmatprep.subr.bf16.mxu0 0
  %1538 = vmatpush2.bf16.msra.mxu0 %v1490
  %1539 = vmatprep.subr.bf16.mxu0 0
  %1540 = vmatpush2.bf16.msra.mxu0 %v1489
  %1541 = vmatprep.subr.bf16.mxu0 0
  %1542 = vmatpush2.bf16.msra.mxu0 %v1488
  %1543 = vmatprep.mubr.bf16.mxu0 %v413
  %1544 = vmatmul.mubr.bf16.gmra.mxu0 %v412
  %v1545 = vpop.f32.mrf.mxu0
  %v1546 = vadd.f32 %v1509, %v1545
  %v1547 = vpop.f32.mrf.mxu0
  %v1548 = vpop.f32.mrf.mxu0
  %v1549 = vadd.f32 %v1509, %v1548
  %v1550 = vpop.f32.mrf.mxu0
  %1551 = vmatprep.mubr.bf16.mxu0 %v416
  %1552 = vmatmul.mubr.bf16.gmra.mxu0 %v415
  %v1553 = vpop.f32.mrf.mxu0
  %v1554 = vadd.f32 %v1509, %v1553
  %v1555 = vpop.f32.mrf.mxu0
  %v1556 = vpop.f32.mrf.mxu0
  %v1557 = vadd.f32 %v1509, %v1556
  %v1558 = vpop.f32.mrf.mxu0
  %1559 = vmatprep.mubr.bf16.mxu0 %v419
  %1560 = vmatmul.mubr.bf16.gmra.mxu0 %v418
  %v1561 = vpop.f32.mrf.mxu0
  %v1562 = vadd.f32 %v1509, %v1561
  %v1563 = vpop.f32.mrf.mxu0
  %v1564 = vpop.f32.mrf.mxu0
  %v1565 = vadd.f32 %v1509, %v1564
  %v1566 = vpop.f32.mrf.mxu0
  %1567 = vmatprep.mubr.bf16.mxu0 %v422
  %1568 = vmatmul.mubr.bf16.gmra.mxu0 %v421
  %v1569 = vpop.f32.mrf.mxu0
  %v1570 = vadd.f32 %v1509, %v1569
  %v1571 = vpop.f32.mrf.mxu0
  %v1572 = vpop.f32.mrf.mxu0
  %v1573 = vadd.f32 %v1509, %v1572
  %v1574 = vpop.f32.mrf.mxu0
  %1575 = vmatprep.mubr.bf16.mxu0 %v425
  %1576 = vmatmul.mubr.bf16.gmra.mxu0 %v424
  %v1577 = vpop.f32.mrf.mxu0
  %v1578 = vadd.f32 %v1509, %v1577
  %v1579 = vpop.f32.mrf.mxu0
  %v1580 = vpop.f32.mrf.mxu0
  %v1581 = vadd.f32 %v1509, %v1580
  %v1582 = vpop.f32.mrf.mxu0
  %1583 = vmatprep.mubr.bf16.mxu0 %v428
  %1584 = vmatmul.mubr.bf16.gmra.mxu0 %v427
  %v1585 = vpop.f32.mrf.mxu0
  %v1586 = vadd.f32 %v1509, %v1585
  %v1587 = vpop.f32.mrf.mxu0
  %v1588 = vpop.f32.mrf.mxu0
  %v1589 = vadd.f32 %v1509, %v1588
  %v1590 = vpop.f32.mrf.mxu0
  %1591 = vmatprep.mubr.bf16.mxu0 %v431
  %1592 = vmatmul.mubr.bf16.gmra.mxu0 %v430
  %v1593 = vpop.f32.mrf.mxu0
  %v1594 = vadd.f32 %v1509, %v1593
  %v1595 = vpop.f32.mrf.mxu0
  %v1596 = vpop.f32.mrf.mxu0
  %v1597 = vadd.f32 %v1509, %v1596
  %v1598 = vpop.f32.mrf.mxu0
  %1599 = vmatprep.mubr.bf16.mxu0 %v434
  %1600 = vmatmul.mubr.bf16.gmra.mxu0 %v433
  %v1601 = vpop.f32.mrf.mxu0
  %v1602 = vadd.f32 %v1509, %v1601
  %v1603 = vpop.f32.mrf.mxu0
  %v1604 = vpop.f32.mrf.mxu0
  %v1605 = vadd.f32 %v1509, %v1604
  %v1606 = vpop.f32.mrf.mxu0
  %1607 = vmatprep.mubr.bf16.mxu0 %v437
  %1608 = vmatmul.mubr.bf16.gmra.mxu0 %v436
  %v1609 = vpop.f32.mrf.mxu0
  %v1610 = vadd.f32 %v1509, %v1609
  %v1611 = vpop.f32.mrf.mxu0
  %v1612 = vpop.f32.mrf.mxu0
  %v1613 = vadd.f32 %v1509, %v1612
  %v1614 = vpop.f32.mrf.mxu0
  %1615 = vmatprep.mubr.bf16.mxu0 %v440
  %1616 = vmatmul.mubr.bf16.gmra.mxu0 %v439
  %v1617 = vpop.f32.mrf.mxu0
  %v1618 = vadd.f32 %v1509, %v1617
  %v1619 = vpop.f32.mrf.mxu0
  %v1620 = vpop.f32.mrf.mxu0
  %v1621 = vadd.f32 %v1509, %v1620
  %v1622 = vpop.f32.mrf.mxu0
  %1623 = vmatprep.mubr.bf16.mxu0 %v443
  %1624 = vmatmul.mubr.bf16.gmra.mxu0 %v442
  %v1625 = vpop.f32.mrf.mxu0
  %v1626 = vadd.f32 %v1509, %v1625
  %v1627 = vpop.f32.mrf.mxu0
  %v1628 = vpop.f32.mrf.mxu0
  %v1629 = vadd.f32 %v1509, %v1628
  %v1630 = vpop.f32.mrf.mxu0
  %1631 = vmatprep.mubr.bf16.mxu0 %v446
  %1632 = vmatmul.mubr.bf16.gmra.mxu0 %v445
  %v1633 = vpop.f32.mrf.mxu0
  %v1634 = vadd.f32 %v1509, %v1633
  %v1635 = vpop.f32.mrf.mxu0
  %v1636 = vpop.f32.mrf.mxu0
  %v1637 = vadd.f32 %v1509, %v1636
  %v1638 = vpop.f32.mrf.mxu0
  %1639 = vmatprep.mubr.bf16.mxu0 %v449
  %1640 = vmatmul.mubr.bf16.gmra.mxu0 %v448
  %v1641 = vpop.f32.mrf.mxu0
  %v1642 = vadd.f32 %v1509, %v1641
  %v1643 = vpop.f32.mrf.mxu0
  %v1644 = vpop.f32.mrf.mxu0
  %v1645 = vadd.f32 %v1509, %v1644
  %v1646 = vpop.f32.mrf.mxu0
  %1647 = vmatprep.mubr.bf16.mxu0 %v452
  %1648 = vmatmul.mubr.bf16.gmra.mxu0 %v451
  %v1649 = vpop.f32.mrf.mxu0
  %v1650 = vadd.f32 %v1509, %v1649
  %v1651 = vpop.f32.mrf.mxu0
  %v1652 = vpop.f32.mrf.mxu0
  %v1653 = vadd.f32 %v1509, %v1652
  %v1654 = vpop.f32.mrf.mxu0
  %1655 = vmatprep.mubr.bf16.mxu0 %v455
  %1656 = vmatmul.mubr.bf16.gmra.mxu0 %v454
  %v1657 = vpop.f32.mrf.mxu0
  %v1658 = vadd.f32 %v1509, %v1657
  %v1659 = vpop.f32.mrf.mxu0
  %v1660 = vpop.f32.mrf.mxu0
  %v1661 = vadd.f32 %v1509, %v1660
  %v1662 = vpop.f32.mrf.mxu0
  %1663 = vmatprep.mubr.bf16.mxu0 %v458
  %1664 = vmatmul.mubr.bf16.gmra.mxu0 %v457
  %v1665 = vpop.f32.mrf.mxu0
  %v1666 = vadd.f32 %v1509, %v1665
  %v1667 = vpop.f32.mrf.mxu0
  %v1668 = vpop.f32.mrf.mxu0
  %v1669 = vadd.f32 %v1509, %v1668
  %v1670 = vpop.f32.mrf.mxu0
  %1671 = vmatprep.mubr.bf16.mxu0 %v461
  %1672 = vmatmul.mubr.bf16.gmra.mxu0 %v460
  %v1673 = vpop.f32.mrf.mxu0
  %v1674 = vadd.f32 %v1509, %v1673
  %v1675 = vpop.f32.mrf.mxu0
  %v1676 = vpop.f32.mrf.mxu0
  %v1677 = vadd.f32 %v1509, %v1676
  %v1678 = vpop.f32.mrf.mxu0
  %1679 = vmatprep.mubr.bf16.mxu0 %v464
  %1680 = vmatmul.mubr.bf16.gmra.mxu0 %v463
  %v1681 = vpop.f32.mrf.mxu0
  %v1682 = vadd.f32 %v1509, %v1681
  %v1683 = vpop.f32.mrf.mxu0
  %v1684 = vpop.f32.mrf.mxu0
  %v1685 = vadd.f32 %v1509, %v1684
  %v1686 = vpop.f32.mrf.mxu0
  %1687 = vmatprep.mubr.bf16.mxu0 %v467
  %1688 = vmatmul.mubr.bf16.gmra.mxu0 %v466
  %v1689 = vpop.f32.mrf.mxu0
  %v1690 = vadd.f32 %v1509, %v1689
  %v1691 = vpop.f32.mrf.mxu0
  %v1692 = vpop.f32.mrf.mxu0
  %v1693 = vadd.f32 %v1509, %v1692
  %v1694 = vpop.f32.mrf.mxu0
  %1695 = vmatprep.mubr.bf16.mxu0 %v470
  %1696 = vmatmul.mubr.bf16.gmra.mxu0 %v469
  %v1697 = vpop.f32.mrf.mxu0
  %v1698 = vadd.f32 %v1509, %v1697
  %v1699 = vpop.f32.mrf.mxu0
  %v1700 = vpop.f32.mrf.mxu0
  %v1701 = vadd.f32 %v1509, %v1700
  %v1702 = vpop.f32.mrf.mxu0
  %1703 = vmatprep.mubr.bf16.mxu0 %v473
  %1704 = vmatmul.mubr.bf16.gmra.mxu0 %v472
  %v1705 = vpop.f32.mrf.mxu0
  %v1706 = vadd.f32 %v1509, %v1705
  %v1707 = vpop.f32.mrf.mxu0
  %v1708 = vpop.f32.mrf.mxu0
  %v1709 = vadd.f32 %v1509, %v1708
  %v1710 = vpop.f32.mrf.mxu0
  %1711 = vmatprep.mubr.bf16.mxu0 %v476
  %1712 = vmatmul.mubr.bf16.gmra.mxu0 %v475
  %v1713 = vpop.f32.mrf.mxu0
  %v1714 = vadd.f32 %v1509, %v1713
  %v1715 = vpop.f32.mrf.mxu0
  %v1716 = vpop.f32.mrf.mxu0
  %v1717 = vadd.f32 %v1509, %v1716
  %v1718 = vpop.f32.mrf.mxu0
  %1719 = vmatprep.mubr.bf16.mxu0 %v479
  %1720 = vmatmul.mubr.bf16.gmra.mxu0 %v478
  %v1721 = vpop.f32.mrf.mxu0
  %v1722 = vadd.f32 %v1509, %v1721
  %v1723 = vpop.f32.mrf.mxu0
  %v1724 = vpop.f32.mrf.mxu0
  %v1725 = vadd.f32 %v1509, %v1724
  %v1726 = vpop.f32.mrf.mxu0
  %1727 = vmatprep.mubr.bf16.mxu0 %v482
  %1728 = vmatmul.mubr.bf16.gmra.mxu0 %v481
  %v1729 = vpop.f32.mrf.mxu0
  %v1730 = vadd.f32 %v1509, %v1729
  %v1731 = vpop.f32.mrf.mxu0
  %v1732 = vpop.f32.mrf.mxu0
  %v1733 = vadd.f32 %v1509, %v1732
  %v1734 = vpop.f32.mrf.mxu0
  %1735 = vdwg.mxu0
  %1736 = vmatprep.subr.bf16.mxu0 0
  %1737 = vmatpush1.bf16.msra.mxu0 %v1503
  %1738 = vmatprep.subr.bf16.mxu0 0
  %1739 = vmatpush1.bf16.msra.mxu0 %v1502
  %1740 = vmatprep.subr.bf16.mxu0 0
  %1741 = vmatpush1.bf16.msra.mxu0 %v1501
  %1742 = vmatprep.subr.bf16.mxu0 0
  %1743 = vmatpush1.bf16.msra.mxu0 %v1500
  %1744 = vmatprep.subr.bf16.mxu0 0
  %1745 = vmatpush1.bf16.msra.mxu0 %v1499
  %1746 = vmatprep.subr.bf16.mxu0 0
  %1747 = vmatpush1.bf16.msra.mxu0 %v1498
  %1748 = vmatprep.subr.bf16.mxu0 0
  %1749 = vmatpush1.bf16.msra.mxu0 %v1497
  %1750 = vmatprep.subr.bf16.mxu0 0
  %1751 = vmatpush1.bf16.msra.mxu0 %v1496
  %1752 = vmatprep.subr.bf16.mxu0 0
  %1753 = vmatpush2.bf16.msra.mxu0 0
  %1754 = vmatprep.subr.bf16.mxu0 0
  %1755 = vmatpush2.bf16.msra.mxu0 0
  %1756 = vmatprep.subr.bf16.mxu0 0
  %1757 = vmatpush2.bf16.msra.mxu0 0
  %1758 = vmatprep.subr.bf16.mxu0 0
  %1759 = vmatpush2.bf16.msra.mxu0 0
  %1760 = vmatprep.subr.bf16.mxu0 0
  %1761 = vmatpush2.bf16.msra.mxu0 0
  %1762 = vmatprep.subr.bf16.mxu0 0
  %1763 = vmatpush2.bf16.msra.mxu0 0
  %1764 = vmatprep.subr.bf16.mxu0 0
  %1765 = vmatpush2.bf16.msra.mxu0 0
  %1766 = vmatprep.subr.bf16.mxu0 0
  %1767 = vmatpush2.bf16.msra.mxu0 0
  %1768 = vmatprep.mubr.bf16.mxu0 0
  %1769 = vmatmul.mubr.bf16.gmra.mxu0 %v414
  %v1770 = vpop.f32.mrf.mxu0
  %v1771 = vadd.f32 %v1546, %v1770
  %v1772 = vpop.f32.mrf.mxu0
  %v1773 = vpop.f32.mrf.mxu0
  %v1774 = vadd.f32 %v1549, %v1773
  %v1775 = vpop.f32.mrf.mxu0
  %1776 = vmatprep.mubr.bf16.mxu0 0
  %1777 = vmatmul.mubr.bf16.gmra.mxu0 %v417
  %v1778 = vpop.f32.mrf.mxu0
  %v1779 = vadd.f32 %v1554, %v1778
  %v1780 = vpop.f32.mrf.mxu0
  %v1781 = vpop.f32.mrf.mxu0
  %v1782 = vadd.f32 %v1557, %v1781
  %v1783 = vpop.f32.mrf.mxu0
  %1784 = vmatprep.mubr.bf16.mxu0 0
  %1785 = vmatmul.mubr.bf16.gmra.mxu0 %v420
  %v1786 = vpop.f32.mrf.mxu0
  %v1787 = vadd.f32 %v1562, %v1786
  %v1788 = vpop.f32.mrf.mxu0
  %v1789 = vpop.f32.mrf.mxu0
  %v1790 = vadd.f32 %v1565, %v1789
  %v1791 = vpop.f32.mrf.mxu0
  %1792 = vmatprep.mubr.bf16.mxu0 0
  %1793 = vmatmul.mubr.bf16.gmra.mxu0 %v423
  %v1794 = vpop.f32.mrf.mxu0
  %v1795 = vadd.f32 %v1570, %v1794
  %v1796 = vpop.f32.mrf.mxu0
  %v1797 = vpop.f32.mrf.mxu0
  %v1798 = vadd.f32 %v1573, %v1797
  %v1799 = vpop.f32.mrf.mxu0
  %1800 = vmatprep.mubr.bf16.mxu0 0
  %1801 = vmatmul.mubr.bf16.gmra.mxu0 %v426
  %v1802 = vpop.f32.mrf.mxu0
  %v1803 = vadd.f32 %v1578, %v1802
  %v1804 = vpop.f32.mrf.mxu0
  %v1805 = vpop.f32.mrf.mxu0
  %v1806 = vadd.f32 %v1581, %v1805
  %v1807 = vpop.f32.mrf.mxu0
  %1808 = vmatprep.mubr.bf16.mxu0 0
  %1809 = vmatmul.mubr.bf16.gmra.mxu0 %v429
  %v1810 = vpop.f32.mrf.mxu0
  %v1811 = vadd.f32 %v1586, %v1810
  %v1812 = vpop.f32.mrf.mxu0
  %v1813 = vpop.f32.mrf.mxu0
  %v1814 = vadd.f32 %v1589, %v1813
  %v1815 = vpop.f32.mrf.mxu0
  %1816 = vmatprep.mubr.bf16.mxu0 0
  %1817 = vmatmul.mubr.bf16.gmra.mxu0 %v432
  %v1818 = vpop.f32.mrf.mxu0
  %v1819 = vadd.f32 %v1594, %v1818
  %v1820 = vpop.f32.mrf.mxu0
  %v1821 = vpop.f32.mrf.mxu0
  %v1822 = vadd.f32 %v1597, %v1821
  %v1823 = vpop.f32.mrf.mxu0
  %1824 = vmatprep.mubr.bf16.mxu0 0
  %1825 = vmatmul.mubr.bf16.gmra.mxu0 %v435
  %v1826 = vpop.f32.mrf.mxu0
  %v1827 = vadd.f32 %v1602, %v1826
  %v1828 = vpop.f32.mrf.mxu0
  %v1829 = vpop.f32.mrf.mxu0
  %v1830 = vadd.f32 %v1605, %v1829
  %v1831 = vpop.f32.mrf.mxu0
  %1832 = vmatprep.mubr.bf16.mxu0 0
  %1833 = vmatmul.mubr.bf16.gmra.mxu0 %v438
  %v1834 = vpop.f32.mrf.mxu0
  %v1835 = vadd.f32 %v1610, %v1834
  %v1836 = vpop.f32.mrf.mxu0
  %v1837 = vpop.f32.mrf.mxu0
  %v1838 = vadd.f32 %v1613, %v1837
  %v1839 = vpop.f32.mrf.mxu0
  %1840 = vmatprep.mubr.bf16.mxu0 0
  %1841 = vmatmul.mubr.bf16.gmra.mxu0 %v441
  %v1842 = vpop.f32.mrf.mxu0
  %v1843 = vadd.f32 %v1618, %v1842
  %v1844 = vpop.f32.mrf.mxu0
  %v1845 = vpop.f32.mrf.mxu0
  %v1846 = vadd.f32 %v1621, %v1845
  %v1847 = vpop.f32.mrf.mxu0
  %1848 = vmatprep.mubr.bf16.mxu0 0
  %1849 = vmatmul.mubr.bf16.gmra.mxu0 %v444
  %v1850 = vpop.f32.mrf.mxu0
  %v1851 = vadd.f32 %v1626, %v1850
  %v1852 = vpop.f32.mrf.mxu0
  %v1853 = vpop.f32.mrf.mxu0
  %v1854 = vadd.f32 %v1629, %v1853
  %v1855 = vpop.f32.mrf.mxu0
  %1856 = vmatprep.mubr.bf16.mxu0 0
  %1857 = vmatmul.mubr.bf16.gmra.mxu0 %v447
  %v1858 = vpop.f32.mrf.mxu0
  %v1859 = vadd.f32 %v1634, %v1858
  %v1860 = vpop.f32.mrf.mxu0
  %v1861 = vpop.f32.mrf.mxu0
  %v1862 = vadd.f32 %v1637, %v1861
  %v1863 = vpop.f32.mrf.mxu0
  %1864 = vmatprep.mubr.bf16.mxu0 0
  %1865 = vmatmul.mubr.bf16.gmra.mxu0 %v450
  %v1866 = vpop.f32.mrf.mxu0
  %v1867 = vadd.f32 %v1642, %v1866
  %v1868 = vpop.f32.mrf.mxu0
  %v1869 = vpop.f32.mrf.mxu0
  %v1870 = vadd.f32 %v1645, %v1869
  %v1871 = vpop.f32.mrf.mxu0
  %1872 = vmatprep.mubr.bf16.mxu0 0
  %1873 = vmatmul.mubr.bf16.gmra.mxu0 %v453
  %v1874 = vpop.f32.mrf.mxu0
  %v1875 = vadd.f32 %v1650, %v1874
  %v1876 = vpop.f32.mrf.mxu0
  %v1877 = vpop.f32.mrf.mxu0
  %v1878 = vadd.f32 %v1653, %v1877
  %v1879 = vpop.f32.mrf.mxu0
  %1880 = vmatprep.mubr.bf16.mxu0 0
  %1881 = vmatmul.mubr.bf16.gmra.mxu0 %v456
  %v1882 = vpop.f32.mrf.mxu0
  %v1883 = vadd.f32 %v1658, %v1882
  %v1884 = vpop.f32.mrf.mxu0
  %v1885 = vpop.f32.mrf.mxu0
  %v1886 = vadd.f32 %v1661, %v1885
  %v1887 = vpop.f32.mrf.mxu0
  %1888 = vmatprep.mubr.bf16.mxu0 0
  %1889 = vmatmul.mubr.bf16.gmra.mxu0 %v459
  %v1890 = vpop.f32.mrf.mxu0
  %v1891 = vadd.f32 %v1666, %v1890
  %v1892 = vpop.f32.mrf.mxu0
  %v1893 = vpop.f32.mrf.mxu0
  %v1894 = vadd.f32 %v1669, %v1893
  %v1895 = vpop.f32.mrf.mxu0
  %1896 = vmatprep.mubr.bf16.mxu0 0
  %1897 = vmatmul.mubr.bf16.gmra.mxu0 %v462
  %v1898 = vpop.f32.mrf.mxu0
  %v1899 = vadd.f32 %v1674, %v1898
  %v1900 = vpop.f32.mrf.mxu0
  %v1901 = vpop.f32.mrf.mxu0
  %v1902 = vadd.f32 %v1677, %v1901
  %v1903 = vpop.f32.mrf.mxu0
  %1904 = vmatprep.mubr.bf16.mxu0 0
  %1905 = vmatmul.mubr.bf16.gmra.mxu0 %v465
  %v1906 = vpop.f32.mrf.mxu0
  %v1907 = vadd.f32 %v1682, %v1906
  %v1908 = vpop.f32.mrf.mxu0
  %v1909 = vpop.f32.mrf.mxu0
  %v1910 = vadd.f32 %v1685, %v1909
  %v1911 = vpop.f32.mrf.mxu0
  %1912 = vmatprep.mubr.bf16.mxu0 0
  %1913 = vmatmul.mubr.bf16.gmra.mxu0 %v468
  %v1914 = vpop.f32.mrf.mxu0
  %v1915 = vadd.f32 %v1690, %v1914
  %v1916 = vpop.f32.mrf.mxu0
  %v1917 = vpop.f32.mrf.mxu0
  %v1918 = vadd.f32 %v1693, %v1917
  %v1919 = vpop.f32.mrf.mxu0
  %1920 = vmatprep.mubr.bf16.mxu0 0
  %1921 = vmatmul.mubr.bf16.gmra.mxu0 %v471
  %v1922 = vpop.f32.mrf.mxu0
  %v1923 = vadd.f32 %v1698, %v1922
  %v1924 = vpop.f32.mrf.mxu0
  %v1925 = vpop.f32.mrf.mxu0
  %v1926 = vadd.f32 %v1701, %v1925
  %v1927 = vpop.f32.mrf.mxu0
  %1928 = vmatprep.mubr.bf16.mxu0 0
  %1929 = vmatmul.mubr.bf16.gmra.mxu0 %v474
  %v1930 = vpop.f32.mrf.mxu0
  %v1931 = vadd.f32 %v1706, %v1930
  %v1932 = vpop.f32.mrf.mxu0
  %v1933 = vpop.f32.mrf.mxu0
  %v1934 = vadd.f32 %v1709, %v1933
  %v1935 = vpop.f32.mrf.mxu0
  %1936 = vmatprep.mubr.bf16.mxu0 0
  %1937 = vmatmul.mubr.bf16.gmra.mxu0 %v477
  %v1938 = vpop.f32.mrf.mxu0
  %v1939 = vadd.f32 %v1714, %v1938
  %v1940 = vpop.f32.mrf.mxu0
  %v1941 = vpop.f32.mrf.mxu0
  %v1942 = vadd.f32 %v1717, %v1941
  %v1943 = vpop.f32.mrf.mxu0
  %1944 = vmatprep.mubr.bf16.mxu0 0
  %1945 = vmatmul.mubr.bf16.gmra.mxu0 %v480
  %v1946 = vpop.f32.mrf.mxu0
  %v1947 = vadd.f32 %v1722, %v1946
  %v1948 = vpop.f32.mrf.mxu0
  %v1949 = vpop.f32.mrf.mxu0
  %v1950 = vadd.f32 %v1725, %v1949
  %v1951 = vpop.f32.mrf.mxu0
  %1952 = vmatprep.mubr.bf16.mxu0 0
  %1953 = vmatmul.mubr.bf16.gmra.mxu0 %v483
  %v1954 = vpop.f32.mrf.mxu0
  %v1955 = vadd.f32 %v1730, %v1954
  %v1956 = vpop.f32.mrf.mxu0
  %v1957 = vpop.f32.mrf.mxu0
  %v1958 = vadd.f32 %v1733, %v1957
  %v1959 = vpop.f32.mrf.mxu0
  %1960 = vdwg.mxu0
  %vm1961 = vcmask 64512
  %1962 = vst.msk [vmem:[%s5] sm:$0xff] %vm1961, %v1771
  %1963 = vst.msk [vmem:[%s5 + $0x8] sm:$0xff] %vm1961, %v1774
  %1964 = vst.msk [vmem:[%s5 + $0x10] sm:$0xff] %vm1961, %v1779
  %1965 = vst.msk [vmem:[%s5 + $0x18] sm:$0xff] %vm1961, %v1782
  %1966 = vst.msk [vmem:[%s5 + $0x20] sm:$0xff] %vm1961, %v1787
  %1967 = vst.msk [vmem:[%s5 + $0x28] sm:$0xff] %vm1961, %v1790
  %1968 = vst.msk [vmem:[%s5 + $0x30] sm:$0xff] %vm1961, %v1795
  %1969 = vst.msk [vmem:[%s5 + $0x38] sm:$0xff] %vm1961, %v1798
  %1970 = vst.msk [vmem:[%s5 + $0x40] sm:$0xff] %vm1961, %v1803
  %1971 = vst.msk [vmem:[%s5 + $0x48] sm:$0xff] %vm1961, %v1806
  %1972 = vst.msk [vmem:[%s5 + $0x50] sm:$0xff] %vm1961, %v1811
  %1973 = vst.msk [vmem:[%s5 + $0x58] sm:$0xff] %vm1961, %v1814
  %1974 = vst.msk [vmem:[%s5 + $0x60] sm:$0xff] %vm1961, %v1819
  %1975 = vst.msk [vmem:[%s5 + $0x68] sm:$0xff] %vm1961, %v1822
  %1976 = vst.msk [vmem:[%s5 + $0x70] sm:$0xff] %vm1961, %v1827
  %1977 = vst.msk [vmem:[%s5 + $0x78] sm:$0xff] %vm1961, %v1830
  %1978 = vst.msk [vmem:[%s5 + $0x80] sm:$0xff] %vm1961, %v1835
  %1979 = vst.msk [vmem:[%s5 + $0x88] sm:$0xff] %vm1961, %v1838
  %1980 = vst.msk [vmem:[%s5 + $0x90] sm:$0xff] %vm1961, %v1843
  %1981 = vst.msk [vmem:[%s5 + $0x98] sm:$0xff] %vm1961, %v1846
  %1982 = vst.msk [vmem:[%s5 + $0xa0] sm:$0xff] %vm1961, %v1851
  %1983 = vst.msk [vmem:[%s5 + $0xa8] sm:$0xff] %vm1961, %v1854
  %1984 = vst.msk [vmem:[%s5 + $0xb0] sm:$0xff] %vm1961, %v1859
  %1985 = vst.msk [vmem:[%s5 + $0xb8] sm:$0xff] %vm1961, %v1862
  %1986 = vst.msk [vmem:[%s5 + $0xc0] sm:$0xff] %vm1961, %v1867
  %1987 = vst.msk [vmem:[%s5 + $0xc8] sm:$0xff] %vm1961, %v1870
  %1988 = vst.msk [vmem:[%s5 + $0xd0] sm:$0xff] %vm1961, %v1875
  %1989 = vst.msk [vmem:[%s5 + $0xd8] sm:$0xff] %vm1961, %v1878
  %1990 = vst.msk [vmem:[%s5 + $0xe0] sm:$0xff] %vm1961, %v1883
  %1991 = vst.msk [vmem:[%s5 + $0xe8] sm:$0xff] %vm1961, %v1886
  %1992 = vst.msk [vmem:[%s5 + $0xf0] sm:$0xff] %vm1961, %v1891
  %1993 = vst.msk [vmem:[%s5 + $0xf8] sm:$0xff] %vm1961, %v1894
  %1994 = vst.msk [vmem:[%s5 + $0x100] sm:$0xff] %vm1961, %v1899
  %1995 = vst.msk [vmem:[%s5 + $0x108] sm:$0xff] %vm1961, %v1902
  %1996 = vst.msk [vmem:[%s5 + $0x110] sm:$0xff] %vm1961, %v1907
  %1997 = vst.msk [vmem:[%s5 + $0x118] sm:$0xff] %vm1961, %v1910
  %1998 = vst.msk [vmem:[%s5 + $0x120] sm:$0xff] %vm1961, %v1915
  %1999 = vst.msk [vmem:[%s5 + $0x128] sm:$0xff] %vm1961, %v1918
  %2000 = vst.msk [vmem:[%s5 + $0x130] sm:$0xff] %vm1961, %v1923
  %2001 = vst.msk [vmem:[%s5 + $0x138] sm:$0xff] %vm1961, %v1926
  %2002 = vst.msk [vmem:[%s5 + $0x140] sm:$0xff] %vm1961, %v1931
  %2003 = vst.msk [vmem:[%s5 + $0x148] sm:$0xff] %vm1961, %v1934
  %2004 = vst.msk [vmem:[%s5 + $0x150] sm:$0xff] %vm1961, %v1939
  %2005 = vst.msk [vmem:[%s5 + $0x158] sm:$0xff] %vm1961, %v1942
  %2006 = vst.msk [vmem:[%s5 + $0x160] sm:$0xff] %vm1961, %v1947
  %2007 = vst.msk [vmem:[%s5 + $0x168] sm:$0xff] %vm1961, %v1950
  %2008 = vst.msk [vmem:[%s5 + $0x170] sm:$0xff] %vm1961, %v1955
  %2009 = vst.msk [vmem:[%s5 + $0x178] sm:$0xff] %vm1961, %v1958
  // Predicated region
  $region22: #{gcn_merge_forward.2} parent=0 // pred_check
    _
  $region23: #{gcn_merge_forward.2} parent=0 // pred_check_branch
    %2011 = sbr.rel (0) target = $region25
  $region24: #{gcn_merge_forward.2} parent=0 // pred_region
    _
  $region25: #{gcn_merge_forward.2} parent=0 // pred_fallthru
    _
  // Predicated region
  $region26: #{gcn_merge_forward.2} parent=0 // pred_check
    _
  $region27: #{gcn_merge_forward.2} parent=0 // pred_check_branch
    %2013 = sbr.rel (0) target = $region29
  $region28: #{gcn_merge_forward.2} parent=0 // pred_region
    _
  $region29: #{gcn_merge_forward.2} parent=0 // pred_fallthru
    _

</llo_original>
